<compile_context>
chip_gen: v6e
topology: v6e:2x2x1
jax: 0.10.0
libtpu: 0.0.40
codegen_flags: <defaults>
</compile_context>

<pallas_src>
import functools

import jax
import jax.numpy as jnp
from jax.experimental import pallas as pl
from jax.experimental.pallas import tpu as pltpu

# Layer widths of MyNet(input_dim=42)
DIMS = [42, 128, 256, 512, 1024, 512, 256, 128, 64, 32, 2]
N_LAYERS = len(DIMS) - 1  # 10 Linear layers

IN_PAD = 128  # input features padded 42 -> 128 (zeros; contributes nothing)

# Pack all biases into one (1, BIAS_TOT) array; each layer's bias starts at a
# 128-lane-aligned offset so in-kernel slices stay lane aligned.
def _round_up(n, m):
    return ((n + m - 1) // m) * m

BIAS_SEG = [_round_up(d, 128) for d in DIMS[1:]]          # per-layer segment width
BIAS_OFF = [sum(BIAS_SEG[:i]) for i in range(N_LAYERS)]   # lane-aligned offsets
BIAS_TOT = sum(BIAS_SEG)                                  # 3200


def _mlp_kernel(x_ref, *refs):
    """Fused forward pass for one batch tile.

    refs = (w0..w9 [bf16], bias_packed [f32, (1, BIAS_TOT)], o_ref).
    Matmuls run on the MXU in bf16 with f32 accumulation; bias add + ReLU run
    on the VPU in f32; activations are re-cast to bf16 between layers.
    """
    ws = refs[:N_LAYERS]
    b_ref = refs[N_LAYERS]
    o_ref = refs[N_LAYERS + 1]

    h = x_ref[...]  # (bb, IN_PAD) bf16
    for i in range(N_LAYERS):
        out_d = DIMS[i + 1]
        acc = jnp.dot(h, ws[i][...], preferred_element_type=jnp.float32)
        acc = acc + b_ref[:, BIAS_OFF[i]:BIAS_OFF[i] + out_d]  # (1, out) broadcast
        if i < N_LAYERS - 1:
            acc = jnp.maximum(acc, 0.0)          # ReLU (none after last Linear)
            h = acc.astype(jnp.bfloat16)         # bf16 operands for next MXU pass
        else:
            o_ref[...] = acc.astype(o_ref.dtype)
        # Dropout(0.1) between layer 3 and 4 is identity in eval mode.


@functools.partial(jax.jit, static_argnames=("block_b",))
def mynet_forward(x, weights, biases, *, block_b=256):
    """x: (B, 42) f32; weights[i]: (DIMS[i], DIMS[i+1]) f32; biases[i]: (1, DIMS[i+1]) f32."""
    B = x.shape[0]

    # Batch tile: multiple of 16 (bf16 sublane packing); shrink to the (padded)
    # batch if the batch is small so tiny inputs run as a single grid step.
    bb = min(_round_up(max(block_b, 16), 16), _round_up(B, 16))
    B_pad = _round_up(B, bb)
    grid = (B_pad // bb,)

    # --- Parameter / input prep (cheap XLA ops on tiny arrays) ---
    x_bf = x.astype(jnp.bfloat16)
    x_pad = jnp.pad(x_bf, ((0, B_pad - B), (0, IN_PAD - DIMS[0])))

    ws = [w.astype(jnp.bfloat16) for w in weights]
    ws[0] = jnp.pad(ws[0], ((0, IN_PAD - DIMS[0]), (0, 0)))  # zero rows: no effect

    b_parts = []
    for i, b in enumerate(biases):
        b2 = b.reshape(1, DIMS[i + 1]).astype(jnp.float32)
        b_parts.append(jnp.pad(b2, ((0, 0), (0, BIAS_SEG[i] - DIMS[i + 1]))))
    b_packed = jnp.concatenate(b_parts, axis=1)  # (1, BIAS_TOT)

    # --- BlockSpecs: batch-tiled x/out, full-array weight & bias blocks ---
    in_specs = [pl.BlockSpec((bb, IN_PAD), lambda i: (i, 0))]
    in_specs += [pl.BlockSpec(w.shape, lambda i: (0, 0)) for w in ws]
    in_specs += [pl.BlockSpec((1, BIAS_TOT), lambda i: (0, 0))]
    out_spec = pl.BlockSpec((bb, DIMS[-1]), lambda i: (i, 0))

    out = pl.pallas_call(
        _mlp_kernel,
        out_shape=jax.ShapeDtypeStruct((B_pad, DIMS[-1]), jnp.float32),
        grid_spec=pltpu.PrefetchScalarGridSpec(
            num_scalar_prefetch=0,
            grid=grid,
            in_specs=in_specs,
            out_specs=out_spec,
        ),
        compiler_params=pltpu.CompilerParams(
            dimension_semantics=("parallel",),      # megacore sharding on v7x
            vmem_limit_bytes=48 * 1024 * 1024,      # weights(bf16, 2x-buffered) + tiles + acts << 48 MiB
        ),
    )(x_pad, *ws, b_packed)

    return out[:B]


def init_params(key):
    """Deterministic init mimicking PyTorch Linear: U(-1/sqrt(fan_in), +1/sqrt(fan_in))."""
    weights, biases = [], []
    for li in range(N_LAYERS):
        fan_in, fan_out = DIMS[li], DIMS[li + 1]
        key, kw, kb = jax.random.split(key, 3)
        bound = 1.0 / jnp.sqrt(jnp.float32(fan_in))
        # stored as (in, out) == PyTorch weight.T
        w = jax.random.uniform(kw, (fan_in, fan_out), jnp.float32, -bound, bound)
        b = jax.random.uniform(kb, (1, fan_out), jnp.float32, -bound, bound)
        weights.append(w)
        biases.append(b)
    return weights, biases


def reference_forward(x, weights, biases):
    """Pure-JAX reference mimicking the kernel's dtype behavior (bf16 matmuls, f32 acc)."""
    h = x.astype(jnp.bfloat16)
    for i in range(N_LAYERS):
        acc = jnp.dot(h, weights[i].astype(jnp.bfloat16),
                      preferred_element_type=jnp.float32)
        acc = acc + biases[i].astype(jnp.float32)
        if i < N_LAYERS - 1:
            h = jnp.maximum(acc, 0.0).astype(jnp.bfloat16)
        else:
            return acc


if __name__ == "__main__":
    key = jax.random.PRNGKey(0)
    key, kx1, kx2 = jax.random.split(key, 3)
    weights, biases = init_params(key)

    # Small batch: runs as a single grid step (no pipeline overhead).
    B1 = 16
    x1 = jax.random.normal(kx1, (B1, DIMS[0]), jnp.float32)
    out1 = jax.block_until_ready(mynet_forward(x1, weights, biases))
    ref1 = reference_forward(x1, weights, biases)
    assert out1.shape == (B1, 2)
    assert jnp.allclose(out1, ref1, atol=2e-2, rtol=2e-2), "mismatch vs reference (B=16)"

    # Non-multiple batch: exercises padding + multi-step grid path.
    B2 = 40
    x2 = jax.random.normal(kx2, (B2, DIMS[0]), jnp.float32)
    out2 = jax.block_until_ready(mynet_forward(x2, weights, biases, block_b=16))
    ref2 = reference_forward(x2, weights, biases)
    assert out2.shape == (B2, 2)
    assert jnp.allclose(out2, ref2, atol=2e-2, rtol=2e-2), "mismatch vs reference (B=40)"

    print("KERNEL_OK")
</pallas_src>

<mosaic_0001>
module attributes {stable_mosaic.version = 11 : i64} {
  func.func @_mlp_kernel(%arg0: i32, %arg1: memref<16x128xbf16, #tpu.memory_space<vmem>>, %arg2: memref<128x128xbf16, #tpu.memory_space<vmem>>, %arg3: memref<128x256xbf16, #tpu.memory_space<vmem>>, %arg4: memref<256x512xbf16, #tpu.memory_space<vmem>>, %arg5: memref<512x1024xbf16, #tpu.memory_space<vmem>>, %arg6: memref<1024x512xbf16, #tpu.memory_space<vmem>>, %arg7: memref<512x256xbf16, #tpu.memory_space<vmem>>, %arg8: memref<256x128xbf16, #tpu.memory_space<vmem>>, %arg9: memref<128x64xbf16, #tpu.memory_space<vmem>>, %arg10: memref<64x32xbf16, #tpu.memory_space<vmem>>, %arg11: memref<32x2xbf16, #tpu.memory_space<vmem>>, %arg12: memref<1x3200xf32, #tpu.memory_space<vmem>>, %arg13: memref<16x2xf32, #tpu.memory_space<vmem>>) attributes {dimension_semantics = [#tpu.dimension_semantics<parallel>], iteration_bounds = array<i64: 1>, scalar_prefetch = 0 : i64, scratch_operands = 0 : i64, tpu.core_type = #tpu.core_type<tc>, window_params = [{transform_indices = @transform_0, window_bounds = array<i64: 16, 128>}, {pipeline_mode = #tpu.pipeline_mode<synchronous>, transform_indices = @transform_1, window_bounds = array<i64: 128, 128>}, {pipeline_mode = #tpu.pipeline_mode<synchronous>, transform_indices = @transform_2, window_bounds = array<i64: 128, 256>}, {pipeline_mode = #tpu.pipeline_mode<synchronous>, transform_indices = @transform_3, window_bounds = array<i64: 256, 512>}, {pipeline_mode = #tpu.pipeline_mode<synchronous>, transform_indices = @transform_4, window_bounds = array<i64: 512, 1024>}, {pipeline_mode = #tpu.pipeline_mode<synchronous>, transform_indices = @transform_5, window_bounds = array<i64: 1024, 512>}, {pipeline_mode = #tpu.pipeline_mode<synchronous>, transform_indices = @transform_6, window_bounds = array<i64: 512, 256>}, {pipeline_mode = #tpu.pipeline_mode<synchronous>, transform_indices = @transform_7, window_bounds = array<i64: 256, 128>}, {pipeline_mode = #tpu.pipeline_mode<synchronous>, transform_indices = @transform_8, window_bounds = array<i64: 128, 64>}, {pipeline_mode = #tpu.pipeline_mode<synchronous>, transform_indices = @transform_9, window_bounds = array<i64: 64, 32>}, {pipeline_mode = #tpu.pipeline_mode<synchronous>, transform_indices = @transform_10, window_bounds = array<i64: 32, 2>}, {pipeline_mode = #tpu.pipeline_mode<synchronous>, transform_indices = @transform_11, window_bounds = array<i64: 1, 3200>}, {transform_indices = @transform_12, window_bounds = array<i64: 16, 2>}]} {
    %c0 = arith.constant 0 : index
    %c0_0 = arith.constant 0 : index
    %0 = vector.load %arg1[%c0, %c0_0] : memref<16x128xbf16, #tpu.memory_space<vmem>>, vector<16x128xbf16>
    %c0_1 = arith.constant 0 : index
    %c0_2 = arith.constant 0 : index
    %1 = vector.load %arg2[%c0_1, %c0_2] : memref<128x128xbf16, #tpu.memory_space<vmem>>, vector<128x128xbf16>
    %cst = arith.constant dense<0.000000e+00> : vector<16x128xf32>
    %2 = tpu.matmul %0, %1, %cst {dimension_numbers = #tpu.dot_dimension_numbers<[1], [0], [0], [1], [0, 0, 1, 1], [], []>} : vector<16x128xbf16>, vector<128x128xbf16>, vector<16x128xf32> -> vector<16x128xf32>
    %c0_3 = arith.constant 0 : index
    %c0_4 = arith.constant 0 : index
    %3 = vector.load %arg12[%c0_3, %c0_4] : memref<1x3200xf32, #tpu.memory_space<vmem>>, vector<1x128xf32>
    %4 = vector.broadcast %3 : vector<1x128xf32> to vector<16x128xf32>
    %5 = arith.addf %2, %4 : vector<16x128xf32>
    %cst_5 = arith.constant 0.000000e+00 : f32
    %6 = vector.broadcast %cst_5 : f32 to vector<16x128xf32>
    %7 = arith.maximumf %5, %6 : vector<16x128xf32>
    %8 = arith.truncf %7 : vector<16x128xf32> to vector<16x128xbf16>
    %c0_6 = arith.constant 0 : index
    %c0_7 = arith.constant 0 : index
    %9 = vector.load %arg3[%c0_6, %c0_7] : memref<128x256xbf16, #tpu.memory_space<vmem>>, vector<128x256xbf16>
    %cst_8 = arith.constant dense<0.000000e+00> : vector<16x256xf32>
    %10 = tpu.matmul %8, %9, %cst_8 {dimension_numbers = #tpu.dot_dimension_numbers<[1], [0], [0], [1], [0, 0, 1, 1], [], []>} : vector<16x128xbf16>, vector<128x256xbf16>, vector<16x256xf32> -> vector<16x256xf32>
    %c0_9 = arith.constant 0 : index
    %c128 = arith.constant 128 : index
    %11 = vector.load %arg12[%c0_9, %c128] : memref<1x3200xf32, #tpu.memory_space<vmem>>, vector<1x256xf32>
    %12 = vector.broadcast %11 : vector<1x256xf32> to vector<16x256xf32>
    %13 = arith.addf %10, %12 : vector<16x256xf32>
    %cst_10 = arith.constant 0.000000e+00 : f32
    %14 = vector.broadcast %cst_10 : f32 to vector<16x256xf32>
    %15 = arith.maximumf %13, %14 : vector<16x256xf32>
    %16 = arith.truncf %15 : vector<16x256xf32> to vector<16x256xbf16>
    %c0_11 = arith.constant 0 : index
    %c0_12 = arith.constant 0 : index
    %17 = vector.load %arg4[%c0_11, %c0_12] : memref<256x512xbf16, #tpu.memory_space<vmem>>, vector<256x512xbf16>
    %cst_13 = arith.constant dense<0.000000e+00> : vector<16x512xf32>
    %18 = tpu.matmul %16, %17, %cst_13 {dimension_numbers = #tpu.dot_dimension_numbers<[1], [0], [0], [1], [0, 0, 1, 1], [], []>} : vector<16x256xbf16>, vector<256x512xbf16>, vector<16x512xf32> -> vector<16x512xf32>
    %c0_14 = arith.constant 0 : index
    %c384 = arith.constant 384 : index
    %19 = vector.load %arg12[%c0_14, %c384] : memref<1x3200xf32, #tpu.memory_space<vmem>>, vector<1x512xf32>
    %20 = vector.broadcast %19 : vector<1x512xf32> to vector<16x512xf32>
    %21 = arith.addf %18, %20 : vector<16x512xf32>
    %cst_15 = arith.constant 0.000000e+00 : f32
    %22 = vector.broadcast %cst_15 : f32 to vector<16x512xf32>
    %23 = arith.maximumf %21, %22 : vector<16x512xf32>
    %24 = arith.truncf %23 : vector<16x512xf32> to vector<16x512xbf16>
    %c0_16 = arith.constant 0 : index
    %c0_17 = arith.constant 0 : index
    %25 = vector.load %arg5[%c0_16, %c0_17] : memref<512x1024xbf16, #tpu.memory_space<vmem>>, vector<512x1024xbf16>
    %cst_18 = arith.constant dense<0.000000e+00> : vector<16x1024xf32>
    %26 = tpu.matmul %24, %25, %cst_18 {dimension_numbers = #tpu.dot_dimension_numbers<[1], [0], [0], [1], [0, 0, 1, 1], [], []>} : vector<16x512xbf16>, vector<512x1024xbf16>, vector<16x1024xf32> -> vector<16x1024xf32>
    %c0_19 = arith.constant 0 : index
    %c896 = arith.constant 896 : index
    %27 = vector.load %arg12[%c0_19, %c896] : memref<1x3200xf32, #tpu.memory_space<vmem>>, vector<1x1024xf32>
    %28 = vector.broadcast %27 : vector<1x1024xf32> to vector<16x1024xf32>
    %29 = arith.addf %26, %28 : vector<16x1024xf32>
    %cst_20 = arith.constant 0.000000e+00 : f32
    %30 = vector.broadcast %cst_20 : f32 to vector<16x1024xf32>
    %31 = arith.maximumf %29, %30 : vector<16x1024xf32>
    %32 = arith.truncf %31 : vector<16x1024xf32> to vector<16x1024xbf16>
    %c0_21 = arith.constant 0 : index
    %c0_22 = arith.constant 0 : index
    %33 = vector.load %arg6[%c0_21, %c0_22] : memref<1024x512xbf16, #tpu.memory_space<vmem>>, vector<1024x512xbf16>
    %cst_23 = arith.constant dense<0.000000e+00> : vector<16x512xf32>
    %34 = tpu.matmul %32, %33, %cst_23 {dimension_numbers = #tpu.dot_dimension_numbers<[1], [0], [0], [1], [0, 0, 1, 1], [], []>} : vector<16x1024xbf16>, vector<1024x512xbf16>, vector<16x512xf32> -> vector<16x512xf32>
    %c0_24 = arith.constant 0 : index
    %c1920 = arith.constant 1920 : index
    %35 = vector.load %arg12[%c0_24, %c1920] : memref<1x3200xf32, #tpu.memory_space<vmem>>, vector<1x512xf32>
    %36 = vector.broadcast %35 : vector<1x512xf32> to vector<16x512xf32>
    %37 = arith.addf %34, %36 : vector<16x512xf32>
    %cst_25 = arith.constant 0.000000e+00 : f32
    %38 = vector.broadcast %cst_25 : f32 to vector<16x512xf32>
    %39 = arith.maximumf %37, %38 : vector<16x512xf32>
    %40 = arith.truncf %39 : vector<16x512xf32> to vector<16x512xbf16>
    %c0_26 = arith.constant 0 : index
    %c0_27 = arith.constant 0 : index
    %41 = vector.load %arg7[%c0_26, %c0_27] : memref<512x256xbf16, #tpu.memory_space<vmem>>, vector<512x256xbf16>
    %cst_28 = arith.constant dense<0.000000e+00> : vector<16x256xf32>
    %42 = tpu.matmul %40, %41, %cst_28 {dimension_numbers = #tpu.dot_dimension_numbers<[1], [0], [0], [1], [0, 0, 1, 1], [], []>} : vector<16x512xbf16>, vector<512x256xbf16>, vector<16x256xf32> -> vector<16x256xf32>
    %c0_29 = arith.constant 0 : index
    %c2432 = arith.constant 2432 : index
    %43 = vector.load %arg12[%c0_29, %c2432] : memref<1x3200xf32, #tpu.memory_space<vmem>>, vector<1x256xf32>
    %44 = vector.broadcast %43 : vector<1x256xf32> to vector<16x256xf32>
    %45 = arith.addf %42, %44 : vector<16x256xf32>
    %cst_30 = arith.constant 0.000000e+00 : f32
    %46 = vector.broadcast %cst_30 : f32 to vector<16x256xf32>
    %47 = arith.maximumf %45, %46 : vector<16x256xf32>
    %48 = arith.truncf %47 : vector<16x256xf32> to vector<16x256xbf16>
    %c0_31 = arith.constant 0 : index
    %c0_32 = arith.constant 0 : index
    %49 = vector.load %arg8[%c0_31, %c0_32] : memref<256x128xbf16, #tpu.memory_space<vmem>>, vector<256x128xbf16>
    %cst_33 = arith.constant dense<0.000000e+00> : vector<16x128xf32>
    %50 = tpu.matmul %48, %49, %cst_33 {dimension_numbers = #tpu.dot_dimension_numbers<[1], [0], [0], [1], [0, 0, 1, 1], [], []>} : vector<16x256xbf16>, vector<256x128xbf16>, vector<16x128xf32> -> vector<16x128xf32>
    %c0_34 = arith.constant 0 : index
    %c2688 = arith.constant 2688 : index
    %51 = vector.load %arg12[%c0_34, %c2688] : memref<1x3200xf32, #tpu.memory_space<vmem>>, vector<1x128xf32>
    %52 = vector.broadcast %51 : vector<1x128xf32> to vector<16x128xf32>
    %53 = arith.addf %50, %52 : vector<16x128xf32>
    %cst_35 = arith.constant 0.000000e+00 : f32
    %54 = vector.broadcast %cst_35 : f32 to vector<16x128xf32>
    %55 = arith.maximumf %53, %54 : vector<16x128xf32>
    %56 = arith.truncf %55 : vector<16x128xf32> to vector<16x128xbf16>
    %c0_36 = arith.constant 0 : index
    %c0_37 = arith.constant 0 : index
    %57 = vector.load %arg9[%c0_36, %c0_37] : memref<128x64xbf16, #tpu.memory_space<vmem>>, vector<128x64xbf16>
    %cst_38 = arith.constant dense<0.000000e+00> : vector<16x64xf32>
    %58 = tpu.matmul %56, %57, %cst_38 {dimension_numbers = #tpu.dot_dimension_numbers<[1], [0], [0], [1], [0, 0, 1, 1], [], []>} : vector<16x128xbf16>, vector<128x64xbf16>, vector<16x64xf32> -> vector<16x64xf32>
    %c0_39 = arith.constant 0 : index
    %c2816 = arith.constant 2816 : index
    %59 = vector.load %arg12[%c0_39, %c2816] : memref<1x3200xf32, #tpu.memory_space<vmem>>, vector<1x64xf32>
    %60 = vector.broadcast %59 : vector<1x64xf32> to vector<16x64xf32>
    %61 = arith.addf %58, %60 : vector<16x64xf32>
    %cst_40 = arith.constant 0.000000e+00 : f32
    %62 = vector.broadcast %cst_40 : f32 to vector<16x64xf32>
    %63 = arith.maximumf %61, %62 : vector<16x64xf32>
    %64 = arith.truncf %63 : vector<16x64xf32> to vector<16x64xbf16>
    %c0_41 = arith.constant 0 : index
    %c0_42 = arith.constant 0 : index
    %65 = vector.load %arg10[%c0_41, %c0_42] : memref<64x32xbf16, #tpu.memory_space<vmem>>, vector<64x32xbf16>
    %cst_43 = arith.constant dense<0.000000e+00> : vector<16x32xf32>
    %66 = tpu.matmul %64, %65, %cst_43 {dimension_numbers = #tpu.dot_dimension_numbers<[1], [0], [0], [1], [0, 0, 1, 1], [], []>} : vector<16x64xbf16>, vector<64x32xbf16>, vector<16x32xf32> -> vector<16x32xf32>
    %c0_44 = arith.constant 0 : index
    %c2944 = arith.constant 2944 : index
    %67 = vector.load %arg12[%c0_44, %c2944] : memref<1x3200xf32, #tpu.memory_space<vmem>>, vector<1x32xf32>
    %68 = vector.broadcast %67 : vector<1x32xf32> to vector<16x32xf32>
    %69 = arith.addf %66, %68 : vector<16x32xf32>
    %cst_45 = arith.constant 0.000000e+00 : f32
    %70 = vector.broadcast %cst_45 : f32 to vector<16x32xf32>
    %71 = arith.maximumf %69, %70 : vector<16x32xf32>
    %72 = arith.truncf %71 : vector<16x32xf32> to vector<16x32xbf16>
    %c0_46 = arith.constant 0 : index
    %c0_47 = arith.constant 0 : index
    %73 = vector.load %arg11[%c0_46, %c0_47] : memref<32x2xbf16, #tpu.memory_space<vmem>>, vector<32x2xbf16>
    %cst_48 = arith.constant dense<0.000000e+00> : vector<16x2xf32>
    %74 = tpu.matmul %72, %73, %cst_48 {dimension_numbers = #tpu.dot_dimension_numbers<[1], [0], [0], [1], [0, 0, 1, 1], [], []>} : vector<16x32xbf16>, vector<32x2xbf16>, vector<16x2xf32> -> vector<16x2xf32>
    %c0_49 = arith.constant 0 : index
    %c3072 = arith.constant 3072 : index
    %75 = vector.load %arg12[%c0_49, %c3072] : memref<1x3200xf32, #tpu.memory_space<vmem>>, vector<1x2xf32>
    %76 = vector.broadcast %75 : vector<1x2xf32> to vector<16x2xf32>
    %77 = arith.addf %74, %76 : vector<16x2xf32>
    %c0_50 = arith.constant 0 : index
    %c0_51 = arith.constant 0 : index
    %78 = vector.load %arg13[%c0_50, %c0_51] : memref<16x2xf32, #tpu.memory_space<vmem>>, vector<16x2xf32>
    tpu.vector_store %arg13[%c0_50, %c0_51], %77 {strides = array<i32>} : memref<16x2xf32, #tpu.memory_space<vmem>>, vector<16x2xf32>,
    return
  }
  func.func @transform_0(%arg0: i32) -> (i32, i32) {
    %c0_i32 = arith.constant 0 : i32
    %c0_i32_0 = arith.constant 0 : i32
    return %arg0, %c0_i32 : i32, i32
  }
  func.func @transform_1(%arg0: i32) -> (i32, i32) {
    %c0_i32 = arith.constant 0 : i32
    %c0_i32_0 = arith.constant 0 : i32
    %c0_i32_1 = arith.constant 0 : i32
    return %c0_i32, %c0_i32_0 : i32, i32
  }
  func.func @transform_2(%arg0: i32) -> (i32, i32) {
    %c0_i32 = arith.constant 0 : i32
    %c0_i32_0 = arith.constant 0 : i32
    %c0_i32_1 = arith.constant 0 : i32
    return %c0_i32, %c0_i32_0 : i32, i32
  }
  func.func @transform_3(%arg0: i32) -> (i32, i32) {
    %c0_i32 = arith.constant 0 : i32
    %c0_i32_0 = arith.constant 0 : i32
    %c0_i32_1 = arith.constant 0 : i32
    return %c0_i32, %c0_i32_0 : i32, i32
  }
  func.func @transform_4(%arg0: i32) -> (i32, i32) {
    %c0_i32 = arith.constant 0 : i32
    %c0_i32_0 = arith.constant 0 : i32
    %c0_i32_1 = arith.constant 0 : i32
    return %c0_i32, %c0_i32_0 : i32, i32
  }
  func.func @transform_5(%arg0: i32) -> (i32, i32) {
    %c0_i32 = arith.constant 0 : i32
    %c0_i32_0 = arith.constant 0 : i32
    %c0_i32_1 = arith.constant 0 : i32
    return %c0_i32, %c0_i32_0 : i32, i32
  }
  func.func @transform_6(%arg0: i32) -> (i32, i32) {
    %c0_i32 = arith.constant 0 : i32
    %c0_i32_0 = arith.constant 0 : i32
    %c0_i32_1 = arith.constant 0 : i32
    return %c0_i32, %c0_i32_0 : i32, i32
  }
  func.func @transform_7(%arg0: i32) -> (i32, i32) {
    %c0_i32 = arith.constant 0 : i32
    %c0_i32_0 = arith.constant 0 : i32
    %c0_i32_1 = arith.constant 0 : i32
    return %c0_i32, %c0_i32_0 : i32, i32
  }
  func.func @transform_8(%arg0: i32) -> (i32, i32) {
    %c0_i32 = arith.constant 0 : i32
    %c0_i32_0 = arith.constant 0 : i32
    %c0_i32_1 = arith.constant 0 : i32
    return %c0_i32, %c0_i32_0 : i32, i32
  }
  func.func @transform_9(%arg0: i32) -> (i32, i32) {
    %c0_i32 = arith.constant 0 : i32
    %c0_i32_0 = arith.constant 0 : i32
    %c0_i32_1 = arith.constant 0 : i32
    return %c0_i32, %c0_i32_0 : i32, i32
  }
  func.func @transform_10(%arg0: i32) -> (i32, i32) {
    %c0_i32 = arith.constant 0 : i32
    %c0_i32_0 = arith.constant 0 : i32
    %c0_i32_1 = arith.constant 0 : i32
    return %c0_i32, %c0_i32_0 : i32, i32
  }
  func.func @transform_11(%arg0: i32) -> (i32, i32) {
    %c0_i32 = arith.constant 0 : i32
    %c0_i32_0 = arith.constant 0 : i32
    %c0_i32_1 = arith.constant 0 : i32
    return %c0_i32, %c0_i32_0 : i32, i32
  }
  func.func @transform_12(%arg0: i32) -> (i32, i32) {
    %c0_i32 = arith.constant 0 : i32
    %c0_i32_0 = arith.constant 0 : i32
    return %arg0, %c0_i32 : i32, i32
  }
}

</mosaic_0001>

<llo_original>
// kernel: mynet_forward.1
$region0: #{mynet_forward.1}
  #allocation0 [shape = 'u32[]', space=smem, size = 0x4, offset = 0x4, fixed_abs, tag = 'smem constant byte address 0x4 - core index']
  #allocation1 [shape = 'u32[144,128]{1,0:T(1,128)}', space=vmem, size = 0x12000, scoped, tag = 'internal scratch']
  %s0 = inlined_call_operand.vmem [shape: bf16[16,128], index: 0, kind: input, shape index: {}]
  %s1 = inlined_call_operand.vmem [shape: bf16[128,128], index: 1, kind: input, shape index: {}]
  %s2 = inlined_call_operand.vmem [shape: bf16[128,256], index: 2, kind: input, shape index: {}]
  %s3 = inlined_call_operand.vmem [shape: bf16[256,512], index: 3, kind: input, shape index: {}]
  %s4 = inlined_call_operand.vmem [shape: bf16[512,1024], index: 4, kind: input, shape index: {}]
  %s5 = inlined_call_operand.vmem [shape: bf16[1024,512], index: 5, kind: input, shape index: {}]
  %s6 = inlined_call_operand.vmem [shape: bf16[512,256], index: 6, kind: input, shape index: {}]
  %s7 = inlined_call_operand.vmem [shape: bf16[256,128], index: 7, kind: input, shape index: {}]
  %s8 = inlined_call_operand.vmem [shape: bf16[128,64], index: 8, kind: input, shape index: {}]
  %s9 = inlined_call_operand.vmem [shape: bf16[64,32], index: 9, kind: input, shape index: {}]
  %s10 = inlined_call_operand.vmem [shape: bf16[32,2], index: 10, kind: input, shape index: {}]
  %s11 = inlined_call_operand.vmem [shape: f32[1,3200], index: 11, kind: input, shape index: {}]
  %s12 = inlined_call_operand.vmem [shape: f32[16,2], index: 12, kind: output, shape index: {}]
  %s13 = sld [smem:[#allocation0]]
  $region58: #{mynet_forward.1} parent=0
    _
  %s15 = ssub.s32 1, %s13
  %s16 = scalar_select 0, %s15, %s13
  // Predicated region
  $region2: #{mynet_forward.1} parent=0 // pred_check
    _
  $region3: #{mynet_forward.1} parent=0 // pred_check_branch
    %18 = sbr.rel (0) target = $region5
  $region4: #{mynet_forward.1} parent=0 // pred_region
    _
  $region5: #{mynet_forward.1} parent=0 // pred_fallthru
    _
  // Predicated region
  $region6: #{mynet_forward.1} parent=0 // pred_check
    _
  $region7: #{mynet_forward.1} parent=0 // pred_check_branch
    %20 = sbr.rel (0) target = $region9
  $region8: #{mynet_forward.1} parent=0 // pred_region
    _
  $region9: #{mynet_forward.1} parent=0 // pred_fallthru
    _
  // Predicated region
  $region10: #{mynet_forward.1} parent=0 // pred_check
    _
  $region11: #{mynet_forward.1} parent=0 // pred_check_branch
    %22 = sbr.rel (0) target = $region13
  $region12: #{mynet_forward.1} parent=0 // pred_region
    _
  $region13: #{mynet_forward.1} parent=0 // pred_fallthru
    _
  // Predicated region
  $region14: #{mynet_forward.1} parent=0 // pred_check
    _
  $region15: #{mynet_forward.1} parent=0 // pred_check_branch
    %24 = sbr.rel (0) target = $region17
  $region16: #{mynet_forward.1} parent=0 // pred_region
    _
  $region17: #{mynet_forward.1} parent=0 // pred_fallthru
    _
  // Predicated region
  $region18: #{mynet_forward.1} parent=0 // pred_check
    _
  $region19: #{mynet_forward.1} parent=0 // pred_check_branch
    %26 = sbr.rel (0) target = $region21
  $region20: #{mynet_forward.1} parent=0 // pred_region
    _
  $region21: #{mynet_forward.1} parent=0 // pred_fallthru
    _
  // Predicated region
  $region22: #{mynet_forward.1} parent=0 // pred_check
    _
  $region23: #{mynet_forward.1} parent=0 // pred_check_branch
    %28 = sbr.rel (0) target = $region25
  $region24: #{mynet_forward.1} parent=0 // pred_region
    _
  $region25: #{mynet_forward.1} parent=0 // pred_fallthru
    _
  // Predicated region
  $region26: #{mynet_forward.1} parent=0 // pred_check
    _
  $region27: #{mynet_forward.1} parent=0 // pred_check_branch
    %30 = sbr.rel (0) target = $region29
  $region28: #{mynet_forward.1} parent=0 // pred_region
    _
  $region29: #{mynet_forward.1} parent=0 // pred_fallthru
    _
  // Predicated region
  $region30: #{mynet_forward.1} parent=0 // pred_check
    _
  $region31: #{mynet_forward.1} parent=0 // pred_check_branch
    %32 = sbr.rel (0) target = $region33
  $region32: #{mynet_forward.1} parent=0 // pred_region
    _
  $region33: #{mynet_forward.1} parent=0 // pred_fallthru
    _
  // Predicated region
  $region34: #{mynet_forward.1} parent=0 // pred_check
    _
  $region35: #{mynet_forward.1} parent=0 // pred_check_branch
    %34 = sbr.rel (0) target = $region37
  $region36: #{mynet_forward.1} parent=0 // pred_region
    _
  $region37: #{mynet_forward.1} parent=0 // pred_fallthru
    _
  // Predicated region
  $region38: #{mynet_forward.1} parent=0 // pred_check
    _
  $region39: #{mynet_forward.1} parent=0 // pred_check_branch
    %36 = sbr.rel (0) target = $region41
  $region40: #{mynet_forward.1} parent=0 // pred_region
    _
  $region41: #{mynet_forward.1} parent=0 // pred_fallthru
    _
  // Predicated region
  $region42: #{mynet_forward.1} parent=0 // pred_check
    _
  $region43: #{mynet_forward.1} parent=0 // pred_check_branch
    %38 = sbr.rel (0) target = $region45
  $region44: #{mynet_forward.1} parent=0 // pred_region
    _
  $region45: #{mynet_forward.1} parent=0 // pred_fallthru
    _
  // Predicated region
  $region46: #{mynet_forward.1} parent=0 // pred_check
    _
  $region47: #{mynet_forward.1} parent=0 // pred_check_branch
    %40 = sbr.rel (0) target = $region49
  $region48: #{mynet_forward.1} parent=0 // pred_region
    _
  $region49: #{mynet_forward.1} parent=0 // pred_fallthru
    _
  %v42 = vld [vmem:[%s0] sm:$0xf]
  %v43 = vld [vmem:[%s0 + $0x4] sm:$0xf]
  %v44 = vld [vmem:[%s1] sm:$0xf]
  %v45 = vld [vmem:[%s1 + $0x4] sm:$0xf]
  %v46 = vld [vmem:[%s1 + $0x8] sm:$0xf]
  %v47 = vld [vmem:[%s1 + $0xc] sm:$0xf]
  %v48 = vld [vmem:[%s1 + $0x10] sm:$0xf]
  %v49 = vld [vmem:[%s1 + $0x14] sm:$0xf]
  %v50 = vld [vmem:[%s1 + $0x18] sm:$0xf]
  %v51 = vld [vmem:[%s1 + $0x1c] sm:$0xf]
  %v52 = vld [vmem:[%s1 + $0x20] sm:$0xf]
  %v53 = vld [vmem:[%s1 + $0x24] sm:$0xf]
  %v54 = vld [vmem:[%s1 + $0x28] sm:$0xf]
  %v55 = vld [vmem:[%s1 + $0x2c] sm:$0xf]
  %v56 = vld [vmem:[%s1 + $0x30] sm:$0xf]
  %v57 = vld [vmem:[%s1 + $0x34] sm:$0xf]
  %v58 = vld [vmem:[%s1 + $0x38] sm:$0xf]
  %v59 = vld [vmem:[%s1 + $0x3c] sm:$0xf]
  %v60 = vld [vmem:[%s11] sm:$0x1]
  %v62 = vlaneseq
  %v63 = vshrl.u32 %v62, 7
  %v64 = vsub.s32 0, %v63
  %v65 = vrot.slane %v60, %v64
  %v69 = vunpack.c.l.b16 %v42
  %v70 = vunpack.c.l.b16 %v43
  %v71 = vpack.c.b16 %v70, %v69
  %v89 = vunpack.c.l.b16 %v44
  %v90 = vunpack.c.l.b16 %v45
  %v91 = vunpack.c.l.b16 %v46
  %v92 = vunpack.c.l.b16 %v47
  %v93 = vunpack.c.l.b16 %v48
  %v94 = vunpack.c.l.b16 %v49
  %v95 = vunpack.c.l.b16 %v50
  %v96 = vunpack.c.l.b16 %v51
  %v97 = vunpack.c.l.b16 %v52
  %v98 = vunpack.c.l.b16 %v53
  %v99 = vunpack.c.l.b16 %v54
  %v100 = vunpack.c.l.b16 %v55
  %v101 = vunpack.c.l.b16 %v56
  %v102 = vunpack.c.l.b16 %v57
  %v103 = vunpack.c.l.b16 %v58
  %v104 = vunpack.c.l.b16 %v59
  %v105 = vpack.c.b16 %v90, %v89
  %v106 = vpack.c.b16 %v92, %v91
  %v107 = vpack.c.b16 %v94, %v93
  %v108 = vpack.c.b16 %v96, %v95
  %v109 = vpack.c.b16 %v98, %v97
  %v110 = vpack.c.b16 %v100, %v99
  %v111 = vpack.c.b16 %v102, %v101
  %v112 = vpack.c.b16 %v104, %v103
  %121 = vmatprep.subr.bf16.mxu0 0
  %122 = vmatpush1.bf16.msra.mxu0 %v112
  %123 = vmatprep.subr.bf16.mxu0 0
  %124 = vmatpush1.bf16.msra.mxu0 %v111
  %125 = vmatprep.subr.bf16.mxu0 0
  %126 = vmatpush1.bf16.msra.mxu0 %v110
  %127 = vmatprep.subr.bf16.mxu0 0
  %128 = vmatpush1.bf16.msra.mxu0 %v109
  %129 = vmatprep.subr.bf16.mxu0 0
  %130 = vmatpush1.bf16.msra.mxu0 %v108
  %131 = vmatprep.subr.bf16.mxu0 0
  %132 = vmatpush1.bf16.msra.mxu0 %v107
  %133 = vmatprep.subr.bf16.mxu0 0
  %134 = vmatpush1.bf16.msra.mxu0 %v106
  %135 = vmatprep.subr.bf16.mxu0 0
  %136 = vmatpush1.bf16.msra.mxu0 %v105
  %137 = vmatprep.subr.bf16.mxu0 0
  %138 = vmatpush2.bf16.msra.mxu0 0
  %139 = vmatprep.subr.bf16.mxu0 0
  %140 = vmatpush2.bf16.msra.mxu0 0
  %141 = vmatprep.subr.bf16.mxu0 0
  %142 = vmatpush2.bf16.msra.mxu0 0
  %143 = vmatprep.subr.bf16.mxu0 0
  %144 = vmatpush2.bf16.msra.mxu0 0
  %145 = vmatprep.subr.bf16.mxu0 0
  %146 = vmatpush2.bf16.msra.mxu0 0
  %147 = vmatprep.subr.bf16.mxu0 0
  %148 = vmatpush2.bf16.msra.mxu0 0
  %149 = vmatprep.subr.bf16.mxu0 0
  %150 = vmatpush2.bf16.msra.mxu0 0
  %151 = vmatprep.subr.bf16.mxu0 0
  %152 = vmatpush2.bf16.msra.mxu0 0
  %153 = vmatprep.mubr.bf16.mxu0 0
  %154 = vmatmul.mubr.bf16.gmra.mxu0 %v71
  %v155 = vpop.f32.mrf.mxu0
  %v156 = vadd.f32 %v65, %v155
  %v157 = vpop.f32.mrf.mxu0
  %v158 = vpop.f32.mrf.mxu0
  %v159 = vadd.f32 %v65, %v158
  %v160 = vpop.f32.mrf.mxu0
  %161 = vdwg.mxu0
  %v162 = vmax.f32 %v156, 0.0
  %v163 = vmax.f32 %v159, 0.0
  %v164 = vpack.c.bf16 %v163, %v162
  %v165 = vld [vmem:[%s2] sm:$0xff]
  %v166 = vld [vmem:[%s2 + $0x8] sm:$0xff]
  %v167 = vld [vmem:[%s2 + $0x10] sm:$0xff]
  %v168 = vld [vmem:[%s2 + $0x18] sm:$0xff]
  %v169 = vld [vmem:[%s2 + $0x20] sm:$0xff]
  %v170 = vld [vmem:[%s2 + $0x28] sm:$0xff]
  %v171 = vld [vmem:[%s2 + $0x30] sm:$0xff]
  %v172 = vld [vmem:[%s2 + $0x38] sm:$0xff]
  %v173 = vld [vmem:[%s2 + $0x40] sm:$0xff]
  %v174 = vld [vmem:[%s2 + $0x48] sm:$0xff]
  %v175 = vld [vmem:[%s2 + $0x50] sm:$0xff]
  %v176 = vld [vmem:[%s2 + $0x58] sm:$0xff]
  %v177 = vld [vmem:[%s2 + $0x60] sm:$0xff]
  %v178 = vld [vmem:[%s2 + $0x68] sm:$0xff]
  %v179 = vld [vmem:[%s2 + $0x70] sm:$0xff]
  %v180 = vld [vmem:[%s2 + $0x78] sm:$0xff]
  %v181 = vld [vmem:[%s11 + $0x1] sm:$0x3]
  %v183 = vlaneseq
  %v184 = vshrl.u32 %v183, 7
  %v185 = vsub.s32 0, %v184
  %v186 = vrot.slane %v181, %v185
  %v187 = vlaneseq
  %v188 = vshrl.u32 %v187, 7
  %v189 = vsub.s32 1, %v188
  %v190 = vrot.slane %v181, %v189
  %v209 = vunpack.c.l.b16 %v165
  %v210 = vunpack.c.h.b16 %v165
  %v211 = vunpack.c.l.b16 %v166
  %v212 = vunpack.c.h.b16 %v166
  %v213 = vunpack.c.l.b16 %v167
  %v214 = vunpack.c.h.b16 %v167
  %v215 = vunpack.c.l.b16 %v168
  %v216 = vunpack.c.h.b16 %v168
  %v217 = vunpack.c.l.b16 %v169
  %v218 = vunpack.c.h.b16 %v169
  %v219 = vunpack.c.l.b16 %v170
  %v220 = vunpack.c.h.b16 %v170
  %v221 = vunpack.c.l.b16 %v171
  %v222 = vunpack.c.h.b16 %v171
  %v223 = vunpack.c.l.b16 %v172
  %v224 = vunpack.c.h.b16 %v172
  %v225 = vunpack.c.l.b16 %v173
  %v226 = vunpack.c.h.b16 %v173
  %v227 = vunpack.c.l.b16 %v174
  %v228 = vunpack.c.h.b16 %v174
  %v229 = vunpack.c.l.b16 %v175
  %v230 = vunpack.c.h.b16 %v175
  %v231 = vunpack.c.l.b16 %v176
  %v232 = vunpack.c.h.b16 %v176
  %v233 = vunpack.c.l.b16 %v177
  %v234 = vunpack.c.h.b16 %v177
  %v235 = vunpack.c.l.b16 %v178
  %v236 = vunpack.c.h.b16 %v178
  %v237 = vunpack.c.l.b16 %v179
  %v238 = vunpack.c.h.b16 %v179
  %v239 = vunpack.c.l.b16 %v180
  %v240 = vunpack.c.h.b16 %v180
  %v241 = vpack.c.b16 %v211, %v209
  %v242 = vpack.c.b16 %v212, %v210
  %v243 = vpack.c.b16 %v215, %v213
  %v244 = vpack.c.b16 %v216, %v214
  %v245 = vpack.c.b16 %v219, %v217
  %v246 = vpack.c.b16 %v220, %v218
  %v247 = vpack.c.b16 %v223, %v221
  %v248 = vpack.c.b16 %v224, %v222
  %v249 = vpack.c.b16 %v227, %v225
  %v250 = vpack.c.b16 %v228, %v226
  %v251 = vpack.c.b16 %v231, %v229
  %v252 = vpack.c.b16 %v232, %v230
  %v253 = vpack.c.b16 %v235, %v233
  %v254 = vpack.c.b16 %v236, %v234
  %v255 = vpack.c.b16 %v239, %v237
  %v256 = vpack.c.b16 %v240, %v238
  %273 = vmatprep.subr.bf16.mxu0 %v256
  %274 = vmatpush1.bf16.msra.mxu0 %v255
  %275 = vmatprep.subr.bf16.mxu0 %v254
  %276 = vmatpush1.bf16.msra.mxu0 %v253
  %277 = vmatprep.subr.bf16.mxu0 %v252
  %278 = vmatpush1.bf16.msra.mxu0 %v251
  %279 = vmatprep.subr.bf16.mxu0 %v250
  %280 = vmatpush1.bf16.msra.mxu0 %v249
  %281 = vmatprep.subr.bf16.mxu0 %v248
  %282 = vmatpush1.bf16.msra.mxu0 %v247
  %283 = vmatprep.subr.bf16.mxu0 %v246
  %284 = vmatpush1.bf16.msra.mxu0 %v245
  %285 = vmatprep.subr.bf16.mxu0 %v244
  %286 = vmatpush1.bf16.msra.mxu0 %v243
  %287 = vmatprep.subr.bf16.mxu0 %v242
  %288 = vmatpush1.bf16.msra.mxu0 %v241
  %289 = vmatprep.subr.bf16.mxu0 0
  %290 = vmatpush2.bf16.msra.mxu0 0
  %291 = vmatprep.subr.bf16.mxu0 0
  %292 = vmatpush2.bf16.msra.mxu0 0
  %293 = vmatprep.subr.bf16.mxu0 0
  %294 = vmatpush2.bf16.msra.mxu0 0
  %295 = vmatprep.subr.bf16.mxu0 0
  %296 = vmatpush2.bf16.msra.mxu0 0
  %297 = vmatprep.subr.bf16.mxu0 0
  %298 = vmatpush2.bf16.msra.mxu0 0
  %299 = vmatprep.subr.bf16.mxu0 0
  %300 = vmatpush2.bf16.msra.mxu0 0
  %301 = vmatprep.subr.bf16.mxu0 0
  %302 = vmatpush2.bf16.msra.mxu0 0
  %303 = vmatprep.subr.bf16.mxu0 0
  %304 = vmatpush2.bf16.msra.mxu0 0
  %305 = vmatprep.mubr.bf16.mxu0 0
  %306 = vmatmul.mubr.bf16.gmra.mxu0 %v164
  %v307 = vpop.f32.mrf.mxu0
  %v308 = vadd.f32 %v186, %v307
  %v309 = vpop.f32.mrf.mxu0
  %v310 = vadd.f32 %v190, %v309
  %v311 = vpop.f32.mrf.mxu0
  %v312 = vadd.f32 %v186, %v311
  %v313 = vpop.f32.mrf.mxu0
  %v314 = vadd.f32 %v190, %v313
  %315 = vdwg.mxu0
  %v316 = vmax.f32 %v308, 0.0
  %v317 = vmax.f32 %v310, 0.0
  %v318 = vmax.f32 %v312, 0.0
  %v319 = vmax.f32 %v314, 0.0
  %v320 = vpack.c.bf16 %v318, %v316
  %v321 = vpack.c.bf16 %v319, %v317
  %v322 = vld [vmem:[%s3] sm:$0xff]
  %v323 = vld [vmem:[%s3 + $0x8] sm:$0xff]
  %v324 = vld [vmem:[%s3 + $0x10] sm:$0xff]
  %v325 = vld [vmem:[%s3 + $0x18] sm:$0xff]
  %v326 = vld [vmem:[%s3 + $0x20] sm:$0xff]
  %v327 = vld [vmem:[%s3 + $0x28] sm:$0xff]
  %v328 = vld [vmem:[%s3 + $0x30] sm:$0xff]
  %v329 = vld [vmem:[%s3 + $0x38] sm:$0xff]
  %v330 = vld [vmem:[%s3 + $0x40] sm:$0xff]
  %v331 = vld [vmem:[%s3 + $0x48] sm:$0xff]
  %v332 = vld [vmem:[%s3 + $0x50] sm:$0xff]
  %v333 = vld [vmem:[%s3 + $0x58] sm:$0xff]
  %v334 = vld [vmem:[%s3 + $0x60] sm:$0xff]
  %v335 = vld [vmem:[%s3 + $0x68] sm:$0xff]
  %v336 = vld [vmem:[%s3 + $0x70] sm:$0xff]
  %v337 = vld [vmem:[%s3 + $0x78] sm:$0xff]
  %v338 = vld [vmem:[%s3 + $0x80] sm:$0xff]
  %v339 = vld [vmem:[%s3 + $0x88] sm:$0xff]
  %v340 = vld [vmem:[%s3 + $0x90] sm:$0xff]
  %v341 = vld [vmem:[%s3 + $0x98] sm:$0xff]
  %v342 = vld [vmem:[%s3 + $0xa0] sm:$0xff]
  %v343 = vld [vmem:[%s3 + $0xa8] sm:$0xff]
  %v344 = vld [vmem:[%s3 + $0xb0] sm:$0xff]
  %v345 = vld [vmem:[%s3 + $0xb8] sm:$0xff]
  %v346 = vld [vmem:[%s3 + $0xc0] sm:$0xff]
  %v347 = vld [vmem:[%s3 + $0xc8] sm:$0xff]
  %v348 = vld [vmem:[%s3 + $0xd0] sm:$0xff]
  %v349 = vld [vmem:[%s3 + $0xd8] sm:$0xff]
  %v350 = vld [vmem:[%s3 + $0xe0] sm:$0xff]
  %v351 = vld [vmem:[%s3 + $0xe8] sm:$0xff]
  %v352 = vld [vmem:[%s3 + $0xf0] sm:$0xff]
  %v353 = vld [vmem:[%s3 + $0xf8] sm:$0xff]
  %v354 = vld [vmem:[%s3 + $0x100] sm:$0xff]
  %v355 = vld [vmem:[%s3 + $0x108] sm:$0xff]
  %v356 = vld [vmem:[%s3 + $0x110] sm:$0xff]
  %v357 = vld [vmem:[%s3 + $0x118] sm:$0xff]
  %v358 = vld [vmem:[%s3 + $0x120] sm:$0xff]
  %v359 = vld [vmem:[%s3 + $0x128] sm:$0xff]
  %v360 = vld [vmem:[%s3 + $0x130] sm:$0xff]
  %v361 = vld [vmem:[%s3 + $0x138] sm:$0xff]
  %v362 = vld [vmem:[%s3 + $0x140] sm:$0xff]
  %v363 = vld [vmem:[%s3 + $0x148] sm:$0xff]
  %v364 = vld [vmem:[%s3 + $0x150] sm:$0xff]
  %v365 = vld [vmem:[%s3 + $0x158] sm:$0xff]
  %v366 = vld [vmem:[%s3 + $0x160] sm:$0xff]
  %v367 = vld [vmem:[%s3 + $0x168] sm:$0xff]
  %v368 = vld [vmem:[%s3 + $0x170] sm:$0xff]
  %v369 = vld [vmem:[%s3 + $0x178] sm:$0xff]
  %v370 = vld [vmem:[%s3 + $0x180] sm:$0xff]
  %v371 = vld [vmem:[%s3 + $0x188] sm:$0xff]
  %v372 = vld [vmem:[%s3 + $0x190] sm:$0xff]
  %v373 = vld [vmem:[%s3 + $0x198] sm:$0xff]
  %v374 = vld [vmem:[%s3 + $0x1a0] sm:$0xff]
  %v375 = vld [vmem:[%s3 + $0x1a8] sm:$0xff]
  %v376 = vld [vmem:[%s3 + $0x1b0] sm:$0xff]
  %v377 = vld [vmem:[%s3 + $0x1b8] sm:$0xff]
  %v378 = vld [vmem:[%s3 + $0x1c0] sm:$0xff]
  %v379 = vld [vmem:[%s3 + $0x1c8] sm:$0xff]
  %v380 = vld [vmem:[%s3 + $0x1d0] sm:$0xff]
  %v381 = vld [vmem:[%s3 + $0x1d8] sm:$0xff]
  %v382 = vld [vmem:[%s3 + $0x1e0] sm:$0xff]
  %v383 = vld [vmem:[%s3 + $0x1e8] sm:$0xff]
  %v384 = vld [vmem:[%s3 + $0x1f0] sm:$0xff]
  %v385 = vld [vmem:[%s3 + $0x1f8] sm:$0xff]
  %v386 = vld [vmem:[%s11 + $0x3] sm:$0xf]
  %v388 = vlaneseq
  %v389 = vshrl.u32 %v388, 7
  %v390 = vsub.s32 0, %v389
  %v391 = vrot.slane %v386, %v390
  %v392 = vlaneseq
  %v393 = vshrl.u32 %v392, 7
  %v394 = vsub.s32 1, %v393
  %v395 = vrot.slane %v386, %v394
  %v396 = vlaneseq
  %v397 = vshrl.u32 %v396, 7
  %v398 = vsub.s32 2, %v397
  %v399 = vrot.slane %v386, %v398
  %v400 = vlaneseq
  %v401 = vshrl.u32 %v400, 7
  %v402 = vsub.s32 3, %v401
  %v403 = vrot.slane %v386, %v402
  %v472 = vunpack.c.l.b16 %v322
  %v473 = vunpack.c.h.b16 %v322
  %v474 = vunpack.c.l.b16 %v323
  %v475 = vunpack.c.h.b16 %v323
  %v476 = vunpack.c.l.b16 %v324
  %v477 = vunpack.c.h.b16 %v324
  %v478 = vunpack.c.l.b16 %v325
  %v479 = vunpack.c.h.b16 %v325
  %v480 = vunpack.c.l.b16 %v326
  %v481 = vunpack.c.h.b16 %v326
  %v482 = vunpack.c.l.b16 %v327
  %v483 = vunpack.c.h.b16 %v327
  %v484 = vunpack.c.l.b16 %v328
  %v485 = vunpack.c.h.b16 %v328
  %v486 = vunpack.c.l.b16 %v329
  %v487 = vunpack.c.h.b16 %v329
  %v488 = vunpack.c.l.b16 %v330
  %v489 = vunpack.c.h.b16 %v330
  %v490 = vunpack.c.l.b16 %v331
  %v491 = vunpack.c.h.b16 %v331
  %v492 = vunpack.c.l.b16 %v332
  %v493 = vunpack.c.h.b16 %v332
  %v494 = vunpack.c.l.b16 %v333
  %v495 = vunpack.c.h.b16 %v333
  %v496 = vunpack.c.l.b16 %v334
  %v497 = vunpack.c.h.b16 %v334
  %v498 = vunpack.c.l.b16 %v335
  %v499 = vunpack.c.h.b16 %v335
  %v500 = vunpack.c.l.b16 %v336
  %v501 = vunpack.c.h.b16 %v336
  %v502 = vunpack.c.l.b16 %v337
  %v503 = vunpack.c.h.b16 %v337
  %v504 = vunpack.c.l.b16 %v338
  %v505 = vunpack.c.h.b16 %v338
  %v506 = vunpack.c.l.b16 %v339
  %v507 = vunpack.c.h.b16 %v339
  %v508 = vunpack.c.l.b16 %v340
  %v509 = vunpack.c.h.b16 %v340
  %v510 = vunpack.c.l.b16 %v341
  %v511 = vunpack.c.h.b16 %v341
  %v512 = vunpack.c.l.b16 %v342
  %v513 = vunpack.c.h.b16 %v342
  %v514 = vunpack.c.l.b16 %v343
  %v515 = vunpack.c.h.b16 %v343
  %v516 = vunpack.c.l.b16 %v344
  %v517 = vunpack.c.h.b16 %v344
  %v518 = vunpack.c.l.b16 %v345
  %v519 = vunpack.c.h.b16 %v345
  %v520 = vunpack.c.l.b16 %v346
  %v521 = vunpack.c.h.b16 %v346
  %v522 = vunpack.c.l.b16 %v347
  %v523 = vunpack.c.h.b16 %v347
  %v524 = vunpack.c.l.b16 %v348
  %v525 = vunpack.c.h.b16 %v348
  %v526 = vunpack.c.l.b16 %v349
  %v527 = vunpack.c.h.b16 %v349
  %v528 = vunpack.c.l.b16 %v350
  %v529 = vunpack.c.h.b16 %v350
  %v530 = vunpack.c.l.b16 %v351
  %v531 = vunpack.c.h.b16 %v351
  %v532 = vunpack.c.l.b16 %v352
  %v533 = vunpack.c.h.b16 %v352
  %v534 = vunpack.c.l.b16 %v353
  %v535 = vunpack.c.h.b16 %v353
  %v536 = vunpack.c.l.b16 %v354
  %v537 = vunpack.c.h.b16 %v354
  %v538 = vunpack.c.l.b16 %v355
  %v539 = vunpack.c.h.b16 %v355
  %v540 = vunpack.c.l.b16 %v356
  %v541 = vunpack.c.h.b16 %v356
  %v542 = vunpack.c.l.b16 %v357
  %v543 = vunpack.c.h.b16 %v357
  %v544 = vunpack.c.l.b16 %v358
  %v545 = vunpack.c.h.b16 %v358
  %v546 = vunpack.c.l.b16 %v359
  %v547 = vunpack.c.h.b16 %v359
  %v548 = vunpack.c.l.b16 %v360
  %v549 = vunpack.c.h.b16 %v360
  %v550 = vunpack.c.l.b16 %v361
  %v551 = vunpack.c.h.b16 %v361
  %v552 = vunpack.c.l.b16 %v362
  %v553 = vunpack.c.h.b16 %v362
  %v554 = vunpack.c.l.b16 %v363
  %v555 = vunpack.c.h.b16 %v363
  %v556 = vunpack.c.l.b16 %v364
  %v557 = vunpack.c.h.b16 %v364
  %v558 = vunpack.c.l.b16 %v365
  %v559 = vunpack.c.h.b16 %v365
  %v560 = vunpack.c.l.b16 %v366
  %v561 = vunpack.c.h.b16 %v366
  %v562 = vunpack.c.l.b16 %v367
  %v563 = vunpack.c.h.b16 %v367
  %v564 = vunpack.c.l.b16 %v368
  %v565 = vunpack.c.h.b16 %v368
  %v566 = vunpack.c.l.b16 %v369
  %v567 = vunpack.c.h.b16 %v369
  %v568 = vunpack.c.l.b16 %v370
  %v569 = vunpack.c.h.b16 %v370
  %v570 = vunpack.c.l.b16 %v371
  %v571 = vunpack.c.h.b16 %v371
  %v572 = vunpack.c.l.b16 %v372
  %v573 = vunpack.c.h.b16 %v372
  %v574 = vunpack.c.l.b16 %v373
  %v575 = vunpack.c.h.b16 %v373
  %v576 = vunpack.c.l.b16 %v374
  %v577 = vunpack.c.h.b16 %v374
  %v578 = vunpack.c.l.b16 %v375
  %v579 = vunpack.c.h.b16 %v375
  %v580 = vunpack.c.l.b16 %v376
  %v581 = vunpack.c.h.b16 %v376
  %v582 = vunpack.c.l.b16 %v377
  %v583 = vunpack.c.h.b16 %v377
  %v584 = vunpack.c.l.b16 %v378
  %v585 = vunpack.c.h.b16 %v378
  %v586 = vunpack.c.l.b16 %v379
  %v587 = vunpack.c.h.b16 %v379
  %v588 = vunpack.c.l.b16 %v380
  %v589 = vunpack.c.h.b16 %v380
  %v590 = vunpack.c.l.b16 %v381
  %v591 = vunpack.c.h.b16 %v381
  %v592 = vunpack.c.l.b16 %v382
  %v593 = vunpack.c.h.b16 %v382
  %v594 = vunpack.c.l.b16 %v383
  %v595 = vunpack.c.h.b16 %v383
  %v596 = vunpack.c.l.b16 %v384
  %v597 = vunpack.c.h.b16 %v384
  %v598 = vunpack.c.l.b16 %v385
  %v599 = vunpack.c.h.b16 %v385
  %v600 = vpack.c.b16 %v476, %v472
  %v601 = vpack.c.b16 %v477, %v473
  %v602 = vpack.c.b16 %v478, %v474
  %v603 = vpack.c.b16 %v479, %v475
  %v604 = vpack.c.b16 %v484, %v480
  %v605 = vpack.c.b16 %v485, %v481
  %v606 = vpack.c.b16 %v486, %v482
  %v607 = vpack.c.b16 %v487, %v483
  %v608 = vpack.c.b16 %v492, %v488
  %v609 = vpack.c.b16 %v493, %v489
  %v610 = vpack.c.b16 %v494, %v490
  %v611 = vpack.c.b16 %v495, %v491
  %v612 = vpack.c.b16 %v500, %v496
  %v613 = vpack.c.b16 %v501, %v497
  %v614 = vpack.c.b16 %v502, %v498
  %v615 = vpack.c.b16 %v503, %v499
  %v616 = vpack.c.b16 %v508, %v504
  %v617 = vpack.c.b16 %v509, %v505
  %v618 = vpack.c.b16 %v510, %v506
  %v619 = vpack.c.b16 %v511, %v507
  %v620 = vpack.c.b16 %v516, %v512
  %v621 = vpack.c.b16 %v517, %v513
  %v622 = vpack.c.b16 %v518, %v514
  %v623 = vpack.c.b16 %v519, %v515
  %v624 = vpack.c.b16 %v524, %v520
  %v625 = vpack.c.b16 %v525, %v521
  %v626 = vpack.c.b16 %v526, %v522
  %v627 = vpack.c.b16 %v527, %v523
  %v628 = vpack.c.b16 %v532, %v528
  %v629 = vpack.c.b16 %v533, %v529
  %v630 = vpack.c.b16 %v534, %v530
  %v631 = vpack.c.b16 %v535, %v531
  %v632 = vpack.c.b16 %v540, %v536
  %v633 = vpack.c.b16 %v541, %v537
  %v634 = vpack.c.b16 %v542, %v538
  %v635 = vpack.c.b16 %v543, %v539
  %v636 = vpack.c.b16 %v548, %v544
  %v637 = vpack.c.b16 %v549, %v545
  %v638 = vpack.c.b16 %v550, %v546
  %v639 = vpack.c.b16 %v551, %v547
  %v640 = vpack.c.b16 %v556, %v552
  %v641 = vpack.c.b16 %v557, %v553
  %v642 = vpack.c.b16 %v558, %v554
  %v643 = vpack.c.b16 %v559, %v555
  %v644 = vpack.c.b16 %v564, %v560
  %v645 = vpack.c.b16 %v565, %v561
  %v646 = vpack.c.b16 %v566, %v562
  %v647 = vpack.c.b16 %v567, %v563
  %v648 = vpack.c.b16 %v572, %v568
  %v649 = vpack.c.b16 %v573, %v569
  %v650 = vpack.c.b16 %v574, %v570
  %v651 = vpack.c.b16 %v575, %v571
  %v652 = vpack.c.b16 %v580, %v576
  %v653 = vpack.c.b16 %v581, %v577
  %v654 = vpack.c.b16 %v582, %v578
  %v655 = vpack.c.b16 %v583, %v579
  %v656 = vpack.c.b16 %v588, %v584
  %v657 = vpack.c.b16 %v589, %v585
  %v658 = vpack.c.b16 %v590, %v586
  %v659 = vpack.c.b16 %v591, %v587
  %v660 = vpack.c.b16 %v596, %v592
  %v661 = vpack.c.b16 %v597, %v593
  %v662 = vpack.c.b16 %v598, %v594
  %v663 = vpack.c.b16 %v599, %v595
  %728 = vmatprep.subr.bf16.mxu0 %v629
  %729 = vmatpush1.bf16.msra.mxu0 %v628
  %730 = vmatprep.subr.bf16.mxu0 %v625
  %731 = vmatpush1.bf16.msra.mxu0 %v624
  %732 = vmatprep.subr.bf16.mxu0 %v621
  %733 = vmatpush1.bf16.msra.mxu0 %v620
  %734 = vmatprep.subr.bf16.mxu0 %v617
  %735 = vmatpush1.bf16.msra.mxu0 %v616
  %736 = vmatprep.subr.bf16.mxu0 %v613
  %737 = vmatpush1.bf16.msra.mxu0 %v612
  %738 = vmatprep.subr.bf16.mxu0 %v609
  %739 = vmatpush1.bf16.msra.mxu0 %v608
  %740 = vmatprep.subr.bf16.mxu0 %v605
  %741 = vmatpush1.bf16.msra.mxu0 %v604
  %742 = vmatprep.subr.bf16.mxu0 %v601
  %743 = vmatpush1.bf16.msra.mxu0 %v600
  %744 = vmatprep.subr.bf16.mxu0 %v661
  %745 = vmatpush2.bf16.msra.mxu0 %v660
  %746 = vmatprep.subr.bf16.mxu0 %v657
  %747 = vmatpush2.bf16.msra.mxu0 %v656
  %748 = vmatprep.subr.bf16.mxu0 %v653
  %749 = vmatpush2.bf16.msra.mxu0 %v652
  %750 = vmatprep.subr.bf16.mxu0 %v649
  %751 = vmatpush2.bf16.msra.mxu0 %v648
  %752 = vmatprep.subr.bf16.mxu0 %v645
  %753 = vmatpush2.bf16.msra.mxu0 %v644
  %754 = vmatprep.subr.bf16.mxu0 %v641
  %755 = vmatpush2.bf16.msra.mxu0 %v640
  %756 = vmatprep.subr.bf16.mxu0 %v637
  %757 = vmatpush2.bf16.msra.mxu0 %v636
  %758 = vmatprep.subr.bf16.mxu0 %v633
  %759 = vmatpush2.bf16.msra.mxu0 %v632
  %760 = vmatprep.mubr.bf16.mxu0 %v321
  %761 = vmatmul.mubr.bf16.gmra.mxu0 %v320
  %v762 = vpop.f32.mrf.mxu0
  %v763 = vadd.f32 %v391, %v762
  %v764 = vpop.f32.mrf.mxu0
  %v765 = vadd.f32 %v395, %v764
  %v766 = vpop.f32.mrf.mxu0
  %v767 = vadd.f32 %v391, %v766
  %v768 = vpop.f32.mrf.mxu0
  %v769 = vadd.f32 %v395, %v768
  %770 = vdwg.mxu0
  %771 = vmatprep.subr.bf16.mxu0 %v631
  %772 = vmatpush1.bf16.msra.mxu0 %v630
  %773 = vmatprep.subr.bf16.mxu0 %v627
  %774 = vmatpush1.bf16.msra.mxu0 %v626
  %775 = vmatprep.subr.bf16.mxu0 %v623
  %776 = vmatpush1.bf16.msra.mxu0 %v622
  %777 = vmatprep.subr.bf16.mxu0 %v619
  %778 = vmatpush1.bf16.msra.mxu0 %v618
  %779 = vmatprep.subr.bf16.mxu0 %v615
  %780 = vmatpush1.bf16.msra.mxu0 %v614
  %781 = vmatprep.subr.bf16.mxu0 %v611
  %782 = vmatpush1.bf16.msra.mxu0 %v610
  %783 = vmatprep.subr.bf16.mxu0 %v607
  %784 = vmatpush1.bf16.msra.mxu0 %v606
  %785 = vmatprep.subr.bf16.mxu0 %v603
  %786 = vmatpush1.bf16.msra.mxu0 %v602
  %787 = vmatprep.subr.bf16.mxu0 %v663
  %788 = vmatpush2.bf16.msra.mxu0 %v662
  %789 = vmatprep.subr.bf16.mxu0 %v659
  %790 = vmatpush2.bf16.msra.mxu0 %v658
  %791 = vmatprep.subr.bf16.mxu0 %v655
  %792 = vmatpush2.bf16.msra.mxu0 %v654
  %793 = vmatprep.subr.bf16.mxu0 %v651
  %794 = vmatpush2.bf16.msra.mxu0 %v650
  %795 = vmatprep.subr.bf16.mxu0 %v647
  %796 = vmatpush2.bf16.msra.mxu0 %v646
  %797 = vmatprep.subr.bf16.mxu0 %v643
  %798 = vmatpush2.bf16.msra.mxu0 %v642
  %799 = vmatprep.subr.bf16.mxu0 %v639
  %800 = vmatpush2.bf16.msra.mxu0 %v638
  %801 = vmatprep.subr.bf16.mxu0 %v635
  %802 = vmatpush2.bf16.msra.mxu0 %v634
  %803 = vmatprep.mubr.bf16.mxu0 %v321
  %804 = vmatmul.mubr.bf16.gmra.mxu0 %v320
  %v805 = vpop.f32.mrf.mxu0
  %v806 = vadd.f32 %v399, %v805
  %v807 = vpop.f32.mrf.mxu0
  %v808 = vadd.f32 %v403, %v807
  %v809 = vpop.f32.mrf.mxu0
  %v810 = vadd.f32 %v399, %v809
  %v811 = vpop.f32.mrf.mxu0
  %v812 = vadd.f32 %v403, %v811
  %813 = vdwg.mxu0
  %v814 = vmax.f32 %v763, 0.0
  %v815 = vmax.f32 %v765, 0.0
  %v816 = vmax.f32 %v806, 0.0
  %v817 = vmax.f32 %v808, 0.0
  %v818 = vmax.f32 %v767, 0.0
  %v819 = vmax.f32 %v769, 0.0
  %v820 = vmax.f32 %v810, 0.0
  %v821 = vmax.f32 %v812, 0.0
  %v822 = vpack.c.bf16 %v818, %v814
  %v823 = vpack.c.bf16 %v819, %v815
  %v824 = vpack.c.bf16 %v820, %v816
  %v825 = vpack.c.bf16 %v821, %v817
  %v826 = vld [vmem:[%s4] sm:$0xff]
  %v827 = vld [vmem:[%s4 + $0x8] sm:$0xff]
  %v828 = vld [vmem:[%s4 + $0x10] sm:$0xff]
  %v829 = vld [vmem:[%s4 + $0x18] sm:$0xff]
  %v830 = vld [vmem:[%s4 + $0x20] sm:$0xff]
  %v831 = vld [vmem:[%s4 + $0x28] sm:$0xff]
  %v832 = vld [vmem:[%s4 + $0x30] sm:$0xff]
  %v833 = vld [vmem:[%s4 + $0x38] sm:$0xff]
  %v834 = vld [vmem:[%s4 + $0x40] sm:$0xff]
  %v835 = vld [vmem:[%s4 + $0x48] sm:$0xff]
  %v836 = vld [vmem:[%s4 + $0x50] sm:$0xff]
  %v837 = vld [vmem:[%s4 + $0x58] sm:$0xff]
  %v838 = vld [vmem:[%s4 + $0x60] sm:$0xff]
  %v839 = vld [vmem:[%s4 + $0x68] sm:$0xff]
  %v840 = vld [vmem:[%s4 + $0x70] sm:$0xff]
  %v841 = vld [vmem:[%s4 + $0x78] sm:$0xff]
  %v842 = vld [vmem:[%s4 + $0x80] sm:$0xff]
  %v843 = vld [vmem:[%s4 + $0x88] sm:$0xff]
  %v844 = vld [vmem:[%s4 + $0x90] sm:$0xff]
  %v845 = vld [vmem:[%s4 + $0x98] sm:$0xff]
  %v846 = vld [vmem:[%s4 + $0xa0] sm:$0xff]
  %v847 = vld [vmem:[%s4 + $0xa8] sm:$0xff]
  %v848 = vld [vmem:[%s4 + $0xb0] sm:$0xff]
  %v849 = vld [vmem:[%s4 + $0xb8] sm:$0xff]
  %v850 = vld [vmem:[%s4 + $0xc0] sm:$0xff]
  %v851 = vld [vmem:[%s4 + $0xc8] sm:$0xff]
  %v852 = vld [vmem:[%s4 + $0xd0] sm:$0xff]
  %v853 = vld [vmem:[%s4 + $0xd8] sm:$0xff]
  %v854 = vld [vmem:[%s4 + $0xe0] sm:$0xff]
  %v855 = vld [vmem:[%s4 + $0xe8] sm:$0xff]
  %v856 = vld [vmem:[%s4 + $0xf0] sm:$0xff]
  %v857 = vld [vmem:[%s4 + $0xf8] sm:$0xff]
  %v858 = vld [vmem:[%s4 + $0x100] sm:$0xff]
  %v859 = vld [vmem:[%s4 + $0x108] sm:$0xff]
  %v860 = vld [vmem:[%s4 + $0x110] sm:$0xff]
  %v861 = vld [vmem:[%s4 + $0x118] sm:$0xff]
  %v862 = vld [vmem:[%s4 + $0x120] sm:$0xff]
  %v863 = vld [vmem:[%s4 + $0x128] sm:$0xff]
  %v864 = vld [vmem:[%s4 + $0x130] sm:$0xff]
  %v865 = vld [vmem:[%s4 + $0x138] sm:$0xff]
  %v866 = vld [vmem:[%s4 + $0x140] sm:$0xff]
  %v867 = vld [vmem:[%s4 + $0x148] sm:$0xff]
  %v868 = vld [vmem:[%s4 + $0x150] sm:$0xff]
  %v869 = vld [vmem:[%s4 + $0x158] sm:$0xff]
  %v870 = vld [vmem:[%s4 + $0x160] sm:$0xff]
  %v871 = vld [vmem:[%s4 + $0x168] sm:$0xff]
  %v872 = vld [vmem:[%s4 + $0x170] sm:$0xff]
  %v873 = vld [vmem:[%s4 + $0x178] sm:$0xff]
  %v874 = vld [vmem:[%s4 + $0x180] sm:$0xff]
  %v875 = vld [vmem:[%s4 + $0x188] sm:$0xff]
  %v876 = vld [vmem:[%s4 + $0x190] sm:$0xff]
  %v877 = vld [vmem:[%s4 + $0x198] sm:$0xff]
  %v878 = vld [vmem:[%s4 + $0x1a0] sm:$0xff]
  %v879 = vld [vmem:[%s4 + $0x1a8] sm:$0xff]
  %v880 = vld [vmem:[%s4 + $0x1b0] sm:$0xff]
  %v881 = vld [vmem:[%s4 + $0x1b8] sm:$0xff]
  %v882 = vld [vmem:[%s4 + $0x1c0] sm:$0xff]
  %v883 = vld [vmem:[%s4 + $0x1c8] sm:$0xff]
  %v884 = vld [vmem:[%s4 + $0x1d0] sm:$0xff]
  %v885 = vld [vmem:[%s4 + $0x1d8] sm:$0xff]
  %v886 = vld [vmem:[%s4 + $0x1e0] sm:$0xff]
  %v887 = vld [vmem:[%s4 + $0x1e8] sm:$0xff]
  %v888 = vld [vmem:[%s4 + $0x1f0] sm:$0xff]
  %v889 = vld [vmem:[%s4 + $0x1f8] sm:$0xff]
  %v890 = vld [vmem:[%s4 + $0x200] sm:$0xff]
  %v891 = vld [vmem:[%s4 + $0x208] sm:$0xff]
  %v892 = vld [vmem:[%s4 + $0x210] sm:$0xff]
  %v893 = vld [vmem:[%s4 + $0x218] sm:$0xff]
  %v894 = vld [vmem:[%s4 + $0x220] sm:$0xff]
  %v895 = vld [vmem:[%s4 + $0x228] sm:$0xff]
  %v896 = vld [vmem:[%s4 + $0x230] sm:$0xff]
  %v897 = vld [vmem:[%s4 + $0x238] sm:$0xff]
  %v898 = vld [vmem:[%s4 + $0x240] sm:$0xff]
  %v899 = vld [vmem:[%s4 + $0x248] sm:$0xff]
  %v900 = vld [vmem:[%s4 + $0x250] sm:$0xff]
  %v901 = vld [vmem:[%s4 + $0x258] sm:$0xff]
  %v902 = vld [vmem:[%s4 + $0x260] sm:$0xff]
  %v903 = vld [vmem:[%s4 + $0x268] sm:$0xff]
  %v904 = vld [vmem:[%s4 + $0x270] sm:$0xff]
  %v905 = vld [vmem:[%s4 + $0x278] sm:$0xff]
  %v906 = vld [vmem:[%s4 + $0x280] sm:$0xff]
  %v907 = vld [vmem:[%s4 + $0x288] sm:$0xff]
  %v908 = vld [vmem:[%s4 + $0x290] sm:$0xff]
  %v909 = vld [vmem:[%s4 + $0x298] sm:$0xff]
  %v910 = vld [vmem:[%s4 + $0x2a0] sm:$0xff]
  %v911 = vld [vmem:[%s4 + $0x2a8] sm:$0xff]
  %v912 = vld [vmem:[%s4 + $0x2b0] sm:$0xff]
  %v913 = vld [vmem:[%s4 + $0x2b8] sm:$0xff]
  %v914 = vld [vmem:[%s4 + $0x2c0] sm:$0xff]
  %v915 = vld [vmem:[%s4 + $0x2c8] sm:$0xff]
  %v916 = vld [vmem:[%s4 + $0x2d0] sm:$0xff]
  %v917 = vld [vmem:[%s4 + $0x2d8] sm:$0xff]
  %v918 = vld [vmem:[%s4 + $0x2e0] sm:$0xff]
  %v919 = vld [vmem:[%s4 + $0x2e8] sm:$0xff]
  %v920 = vld [vmem:[%s4 + $0x2f0] sm:$0xff]
  %v921 = vld [vmem:[%s4 + $0x2f8] sm:$0xff]
  %v922 = vld [vmem:[%s4 + $0x300] sm:$0xff]
  %v923 = vld [vmem:[%s4 + $0x308] sm:$0xff]
  %v924 = vld [vmem:[%s4 + $0x310] sm:$0xff]
  %v925 = vld [vmem:[%s4 + $0x318] sm:$0xff]
  %v926 = vld [vmem:[%s4 + $0x320] sm:$0xff]
  %v927 = vld [vmem:[%s4 + $0x328] sm:$0xff]
  %v928 = vld [vmem:[%s4 + $0x330] sm:$0xff]
  %v929 = vld [vmem:[%s4 + $0x338] sm:$0xff]
  %v930 = vld [vmem:[%s4 + $0x340] sm:$0xff]
  %v931 = vld [vmem:[%s4 + $0x348] sm:$0xff]
  %v932 = vld [vmem:[%s4 + $0x350] sm:$0xff]
  %v933 = vld [vmem:[%s4 + $0x358] sm:$0xff]
  %v934 = vld [vmem:[%s4 + $0x360] sm:$0xff]
  %v935 = vld [vmem:[%s4 + $0x368] sm:$0xff]
  %v936 = vld [vmem:[%s4 + $0x370] sm:$0xff]
  %v937 = vld [vmem:[%s4 + $0x378] sm:$0xff]
  %v938 = vld [vmem:[%s4 + $0x380] sm:$0xff]
  %v939 = vld [vmem:[%s4 + $0x388] sm:$0xff]
  %v940 = vld [vmem:[%s4 + $0x390] sm:$0xff]
  %v941 = vld [vmem:[%s4 + $0x398] sm:$0xff]
  %v942 = vld [vmem:[%s4 + $0x3a0] sm:$0xff]
  %v943 = vld [vmem:[%s4 + $0x3a8] sm:$0xff]
  %v944 = vld [vmem:[%s4 + $0x3b0] sm:$0xff]
  %v945 = vld [vmem:[%s4 + $0x3b8] sm:$0xff]
  %v946 = vld [vmem:[%s4 + $0x3c0] sm:$0xff]
  %v947 = vld [vmem:[%s4 + $0x3c8] sm:$0xff]
  %v948 = vld [vmem:[%s4 + $0x3d0] sm:$0xff]
  %v949 = vld [vmem:[%s4 + $0x3d8] sm:$0xff]
  %v950 = vld [vmem:[%s4 + $0x3e0] sm:$0xff]
  %v951 = vld [vmem:[%s4 + $0x3e8] sm:$0xff]
  %v952 = vld [vmem:[%s4 + $0x3f0] sm:$0xff]
  %v953 = vld [vmem:[%s4 + $0x3f8] sm:$0xff]
  %v954 = vld [vmem:[%s4 + $0x400] sm:$0xff]
  %v955 = vld [vmem:[%s4 + $0x408] sm:$0xff]
  %v956 = vld [vmem:[%s4 + $0x410] sm:$0xff]
  %v957 = vld [vmem:[%s4 + $0x418] sm:$0xff]
  %v958 = vld [vmem:[%s4 + $0x420] sm:$0xff]
  %v959 = vld [vmem:[%s4 + $0x428] sm:$0xff]
  %v960 = vld [vmem:[%s4 + $0x430] sm:$0xff]
  %v961 = vld [vmem:[%s4 + $0x438] sm:$0xff]
  %v962 = vld [vmem:[%s4 + $0x440] sm:$0xff]
  %v963 = vld [vmem:[%s4 + $0x448] sm:$0xff]
  %v964 = vld [vmem:[%s4 + $0x450] sm:$0xff]
  %v965 = vld [vmem:[%s4 + $0x458] sm:$0xff]
  %v966 = vld [vmem:[%s4 + $0x460] sm:$0xff]
  %v967 = vld [vmem:[%s4 + $0x468] sm:$0xff]
  %v968 = vld [vmem:[%s4 + $0x470] sm:$0xff]
  %v969 = vld [vmem:[%s4 + $0x478] sm:$0xff]
  %v970 = vld [vmem:[%s4 + $0x480] sm:$0xff]
  %v971 = vld [vmem:[%s4 + $0x488] sm:$0xff]
  %v972 = vld [vmem:[%s4 + $0x490] sm:$0xff]
  %v973 = vld [vmem:[%s4 + $0x498] sm:$0xff]
  %v974 = vld [vmem:[%s4 + $0x4a0] sm:$0xff]
  %v975 = vld [vmem:[%s4 + $0x4a8] sm:$0xff]
  %v976 = vld [vmem:[%s4 + $0x4b0] sm:$0xff]
  %v977 = vld [vmem:[%s4 + $0x4b8] sm:$0xff]
  %v978 = vld [vmem:[%s4 + $0x4c0] sm:$0xff]
  %v979 = vld [vmem:[%s4 + $0x4c8] sm:$0xff]
  %v980 = vld [vmem:[%s4 + $0x4d0] sm:$0xff]
  %v981 = vld [vmem:[%s4 + $0x4d8] sm:$0xff]
  %v982 = vld [vmem:[%s4 + $0x4e0] sm:$0xff]
  %v983 = vld [vmem:[%s4 + $0x4e8] sm:$0xff]
  %v984 = vld [vmem:[%s4 + $0x4f0] sm:$0xff]
  %v985 = vld [vmem:[%s4 + $0x4f8] sm:$0xff]
  %v986 = vld [vmem:[%s4 + $0x500] sm:$0xff]
  %v987 = vld [vmem:[%s4 + $0x508] sm:$0xff]
  %v988 = vld [vmem:[%s4 + $0x510] sm:$0xff]
  %v989 = vld [vmem:[%s4 + $0x518] sm:$0xff]
  %v990 = vld [vmem:[%s4 + $0x520] sm:$0xff]
  %v991 = vld [vmem:[%s4 + $0x528] sm:$0xff]
  %v992 = vld [vmem:[%s4 + $0x530] sm:$0xff]
  %v993 = vld [vmem:[%s4 + $0x538] sm:$0xff]
  %v994 = vld [vmem:[%s4 + $0x540] sm:$0xff]
  %v995 = vld [vmem:[%s4 + $0x548] sm:$0xff]
  %v996 = vld [vmem:[%s4 + $0x550] sm:$0xff]
  %v997 = vld [vmem:[%s4 + $0x558] sm:$0xff]
  %v998 = vld [vmem:[%s4 + $0x560] sm:$0xff]
  %v999 = vld [vmem:[%s4 + $0x568] sm:$0xff]
  %v1000 = vld [vmem:[%s4 + $0x570] sm:$0xff]
  %v1001 = vld [vmem:[%s4 + $0x578] sm:$0xff]
  %v1002 = vld [vmem:[%s4 + $0x580] sm:$0xff]
  %v1003 = vld [vmem:[%s4 + $0x588] sm:$0xff]
  %v1004 = vld [vmem:[%s4 + $0x590] sm:$0xff]
  %v1005 = vld [vmem:[%s4 + $0x598] sm:$0xff]
  %v1006 = vld [vmem:[%s4 + $0x5a0] sm:$0xff]
  %v1007 = vld [vmem:[%s4 + $0x5a8] sm:$0xff]
  %v1008 = vld [vmem:[%s4 + $0x5b0] sm:$0xff]
  %v1009 = vld [vmem:[%s4 + $0x5b8] sm:$0xff]
  %v1010 = vld [vmem:[%s4 + $0x5c0] sm:$0xff]
  %v1011 = vld [vmem:[%s4 + $0x5c8] sm:$0xff]
  %v1012 = vld [vmem:[%s4 + $0x5d0] sm:$0xff]
  %v1013 = vld [vmem:[%s4 + $0x5d8] sm:$0xff]
  %v1014 = vld [vmem:[%s4 + $0x5e0] sm:$0xff]
  %v1015 = vld [vmem:[%s4 + $0x5e8] sm:$0xff]
  %v1016 = vld [vmem:[%s4 + $0x5f0] sm:$0xff]
  %v1017 = vld [vmem:[%s4 + $0x5f8] sm:$0xff]
  %v1018 = vld [vmem:[%s4 + $0x600] sm:$0xff]
  %v1019 = vld [vmem:[%s4 + $0x608] sm:$0xff]
  %v1020 = vld [vmem:[%s4 + $0x610] sm:$0xff]
  %v1021 = vld [vmem:[%s4 + $0x618] sm:$0xff]
  %v1022 = vld [vmem:[%s4 + $0x620] sm:$0xff]
  %v1023 = vld [vmem:[%s4 + $0x628] sm:$0xff]
  %v1024 = vld [vmem:[%s4 + $0x630] sm:$0xff]
  %v1025 = vld [vmem:[%s4 + $0x638] sm:$0xff]
  %v1026 = vld [vmem:[%s4 + $0x640] sm:$0xff]
  %v1027 = vld [vmem:[%s4 + $0x648] sm:$0xff]
  %v1028 = vld [vmem:[%s4 + $0x650] sm:$0xff]
  %v1029 = vld [vmem:[%s4 + $0x658] sm:$0xff]
  %v1030 = vld [vmem:[%s4 + $0x660] sm:$0xff]
  %v1031 = vld [vmem:[%s4 + $0x668] sm:$0xff]
  %v1032 = vld [vmem:[%s4 + $0x670] sm:$0xff]
  %v1033 = vld [vmem:[%s4 + $0x678] sm:$0xff]
  %v1034 = vld [vmem:[%s4 + $0x680] sm:$0xff]
  %v1035 = vld [vmem:[%s4 + $0x688] sm:$0xff]
  %v1036 = vld [vmem:[%s4 + $0x690] sm:$0xff]
  %v1037 = vld [vmem:[%s4 + $0x698] sm:$0xff]
  %v1038 = vld [vmem:[%s4 + $0x6a0] sm:$0xff]
  %v1039 = vld [vmem:[%s4 + $0x6a8] sm:$0xff]
  %v1040 = vld [vmem:[%s4 + $0x6b0] sm:$0xff]
  %v1041 = vld [vmem:[%s4 + $0x6b8] sm:$0xff]
  %v1042 = vld [vmem:[%s4 + $0x6c0] sm:$0xff]
  %v1043 = vld [vmem:[%s4 + $0x6c8] sm:$0xff]
  %v1044 = vld [vmem:[%s4 + $0x6d0] sm:$0xff]
  %v1045 = vld [vmem:[%s4 + $0x6d8] sm:$0xff]
  %v1046 = vld [vmem:[%s4 + $0x6e0] sm:$0xff]
  %v1047 = vld [vmem:[%s4 + $0x6e8] sm:$0xff]
  %v1048 = vld [vmem:[%s4 + $0x6f0] sm:$0xff]
  %v1049 = vld [vmem:[%s4 + $0x6f8] sm:$0xff]
  %v1050 = vld [vmem:[%s4 + $0x700] sm:$0xff]
  %v1051 = vld [vmem:[%s4 + $0x708] sm:$0xff]
  %v1052 = vld [vmem:[%s4 + $0x710] sm:$0xff]
  %v1053 = vld [vmem:[%s4 + $0x718] sm:$0xff]
  %v1054 = vld [vmem:[%s4 + $0x720] sm:$0xff]
  %v1055 = vld [vmem:[%s4 + $0x728] sm:$0xff]
  %v1056 = vld [vmem:[%s4 + $0x730] sm:$0xff]
  %v1057 = vld [vmem:[%s4 + $0x738] sm:$0xff]
  %v1058 = vld [vmem:[%s4 + $0x740] sm:$0xff]
  %v1059 = vld [vmem:[%s4 + $0x748] sm:$0xff]
  %v1060 = vld [vmem:[%s4 + $0x750] sm:$0xff]
  %v1061 = vld [vmem:[%s4 + $0x758] sm:$0xff]
  %v1062 = vld [vmem:[%s4 + $0x760] sm:$0xff]
  %v1063 = vld [vmem:[%s4 + $0x768] sm:$0xff]
  %v1064 = vld [vmem:[%s4 + $0x770] sm:$0xff]
  %v1065 = vld [vmem:[%s4 + $0x778] sm:$0xff]
  %v1066 = vld [vmem:[%s4 + $0x780] sm:$0xff]
  %v1067 = vld [vmem:[%s4 + $0x788] sm:$0xff]
  %v1068 = vld [vmem:[%s4 + $0x790] sm:$0xff]
  %v1069 = vld [vmem:[%s4 + $0x798] sm:$0xff]
  %v1070 = vld [vmem:[%s4 + $0x7a0] sm:$0xff]
  %v1071 = vld [vmem:[%s4 + $0x7a8] sm:$0xff]
  %v1072 = vld [vmem:[%s4 + $0x7b0] sm:$0xff]
  %v1073 = vld [vmem:[%s4 + $0x7b8] sm:$0xff]
  %v1074 = vld [vmem:[%s4 + $0x7c0] sm:$0xff]
  %v1075 = vld [vmem:[%s4 + $0x7c8] sm:$0xff]
  %v1076 = vld [vmem:[%s4 + $0x7d0] sm:$0xff]
  %v1077 = vld [vmem:[%s4 + $0x7d8] sm:$0xff]
  %v1078 = vld [vmem:[%s4 + $0x7e0] sm:$0xff]
  %v1079 = vld [vmem:[%s4 + $0x7e8] sm:$0xff]
  %v1080 = vld [vmem:[%s4 + $0x7f0] sm:$0xff]
  %v1081 = vld [vmem:[%s4 + $0x7f8] sm:$0xff]
  %v1082 = vld [vmem:[%s11 + $0x7] sm:$0xff]
  %v1084 = vlaneseq
  %v1085 = vshrl.u32 %v1084, 7
  %v1086 = vsub.s32 0, %v1085
  %v1087 = vrot.slane %v1082, %v1086
  %v1088 = vlaneseq
  %v1089 = vshrl.u32 %v1088, 7
  %v1090 = vsub.s32 1, %v1089
  %v1091 = vrot.slane %v1082, %v1090
  %v1092 = vlaneseq
  %v1093 = vshrl.u32 %v1092, 7
  %v1094 = vsub.s32 2, %v1093
  %v1095 = vrot.slane %v1082, %v1094
  %v1096 = vlaneseq
  %v1097 = vshrl.u32 %v1096, 7
  %v1098 = vsub.s32 3, %v1097
  %v1099 = vrot.slane %v1082, %v1098
  %v1100 = vlaneseq
  %v1101 = vshrl.u32 %v1100, 7
  %v1102 = vsub.s32 4, %v1101
  %v1103 = vrot.slane %v1082, %v1102
  %v1104 = vlaneseq
  %v1105 = vshrl.u32 %v1104, 7
  %v1106 = vsub.s32 5, %v1105
  %v1107 = vrot.slane %v1082, %v1106
  %v1108 = vlaneseq
  %v1109 = vshrl.u32 %v1108, 7
  %v1110 = vsub.s32 6, %v1109
  %v1111 = vrot.slane %v1082, %v1110
  %v1112 = vlaneseq
  %v1113 = vshrl.u32 %v1112, 7
  %v1114 = vsub.s32 7, %v1113
  %v1115 = vrot.slane %v1082, %v1114
  %v1380 = vunpack.c.l.b16 %v826
  %v1381 = vunpack.c.h.b16 %v826
  %v1382 = vunpack.c.l.b16 %v827
  %v1383 = vunpack.c.h.b16 %v827
  %v1384 = vunpack.c.l.b16 %v828
  %v1385 = vunpack.c.h.b16 %v828
  %v1386 = vunpack.c.l.b16 %v829
  %v1387 = vunpack.c.h.b16 %v829
  %v1388 = vunpack.c.l.b16 %v830
  %v1389 = vunpack.c.h.b16 %v830
  %v1390 = vunpack.c.l.b16 %v831
  %v1391 = vunpack.c.h.b16 %v831
  %v1392 = vunpack.c.l.b16 %v832
  %v1393 = vunpack.c.h.b16 %v832
  %v1394 = vunpack.c.l.b16 %v833
  %v1395 = vunpack.c.h.b16 %v833
  %v1396 = vunpack.c.l.b16 %v834
  %v1397 = vunpack.c.h.b16 %v834
  %v1398 = vunpack.c.l.b16 %v835
  %v1399 = vunpack.c.h.b16 %v835
  %v1400 = vunpack.c.l.b16 %v836
  %v1401 = vunpack.c.h.b16 %v836
  %v1402 = vunpack.c.l.b16 %v837
  %v1403 = vunpack.c.h.b16 %v837
  %v1404 = vunpack.c.l.b16 %v838
  %v1405 = vunpack.c.h.b16 %v838
  %v1406 = vunpack.c.l.b16 %v839
  %v1407 = vunpack.c.h.b16 %v839
  %v1408 = vunpack.c.l.b16 %v840
  %v1409 = vunpack.c.h.b16 %v840
  %v1410 = vunpack.c.l.b16 %v841
  %v1411 = vunpack.c.h.b16 %v841
  %v1412 = vunpack.c.l.b16 %v842
  %v1413 = vunpack.c.h.b16 %v842
  %v1414 = vunpack.c.l.b16 %v843
  %v1415 = vunpack.c.h.b16 %v843
  %v1416 = vunpack.c.l.b16 %v844
  %v1417 = vunpack.c.h.b16 %v844
  %v1418 = vunpack.c.l.b16 %v845
  %v1419 = vunpack.c.h.b16 %v845
  %v1420 = vunpack.c.l.b16 %v846
  %v1421 = vunpack.c.h.b16 %v846
  %v1422 = vunpack.c.l.b16 %v847
  %v1423 = vunpack.c.h.b16 %v847
  %v1424 = vunpack.c.l.b16 %v848
  %v1425 = vunpack.c.h.b16 %v848
  %v1426 = vunpack.c.l.b16 %v849
  %v1427 = vunpack.c.h.b16 %v849
  %v1428 = vunpack.c.l.b16 %v850
  %v1429 = vunpack.c.h.b16 %v850
  %v1430 = vunpack.c.l.b16 %v851
  %v1431 = vunpack.c.h.b16 %v851
  %v1432 = vunpack.c.l.b16 %v852
  %v1433 = vunpack.c.h.b16 %v852
  %v1434 = vunpack.c.l.b16 %v853
  %v1435 = vunpack.c.h.b16 %v853
  %v1436 = vunpack.c.l.b16 %v854
  %v1437 = vunpack.c.h.b16 %v854
  %v1438 = vunpack.c.l.b16 %v855
  %v1439 = vunpack.c.h.b16 %v855
  %v1440 = vunpack.c.l.b16 %v856
  %v1441 = vunpack.c.h.b16 %v856
  %v1442 = vunpack.c.l.b16 %v857
  %v1443 = vunpack.c.h.b16 %v857
  %v1444 = vunpack.c.l.b16 %v858
  %v1445 = vunpack.c.h.b16 %v858
  %v1446 = vunpack.c.l.b16 %v859
  %v1447 = vunpack.c.h.b16 %v859
  %v1448 = vunpack.c.l.b16 %v860
  %v1449 = vunpack.c.h.b16 %v860
  %v1450 = vunpack.c.l.b16 %v861
  %v1451 = vunpack.c.h.b16 %v861
  %v1452 = vunpack.c.l.b16 %v862
  %v1453 = vunpack.c.h.b16 %v862
  %v1454 = vunpack.c.l.b16 %v863
  %v1455 = vunpack.c.h.b16 %v863
  %v1456 = vunpack.c.l.b16 %v864
  %v1457 = vunpack.c.h.b16 %v864
  %v1458 = vunpack.c.l.b16 %v865
  %v1459 = vunpack.c.h.b16 %v865
  %v1460 = vunpack.c.l.b16 %v866
  %v1461 = vunpack.c.h.b16 %v866
  %v1462 = vunpack.c.l.b16 %v867
  %v1463 = vunpack.c.h.b16 %v867
  %v1464 = vunpack.c.l.b16 %v868
  %v1465 = vunpack.c.h.b16 %v868
  %v1466 = vunpack.c.l.b16 %v869
  %v1467 = vunpack.c.h.b16 %v869
  %v1468 = vunpack.c.l.b16 %v870
  %v1469 = vunpack.c.h.b16 %v870
  %v1470 = vunpack.c.l.b16 %v871
  %v1471 = vunpack.c.h.b16 %v871
  %v1472 = vunpack.c.l.b16 %v872
  %v1473 = vunpack.c.h.b16 %v872
  %v1474 = vunpack.c.l.b16 %v873
  %v1475 = vunpack.c.h.b16 %v873
  %v1476 = vunpack.c.l.b16 %v874
  %v1477 = vunpack.c.h.b16 %v874
  %v1478 = vunpack.c.l.b16 %v875
  %v1479 = vunpack.c.h.b16 %v875
  %v1480 = vunpack.c.l.b16 %v876
  %v1481 = vunpack.c.h.b16 %v876
  %v1482 = vunpack.c.l.b16 %v877
  %v1483 = vunpack.c.h.b16 %v877
  %v1484 = vunpack.c.l.b16 %v878
  %v1485 = vunpack.c.h.b16 %v878
  %v1486 = vunpack.c.l.b16 %v879
  %v1487 = vunpack.c.h.b16 %v879
  %v1488 = vunpack.c.l.b16 %v880
  %v1489 = vunpack.c.h.b16 %v880
  %v1490 = vunpack.c.l.b16 %v881
  %v1491 = vunpack.c.h.b16 %v881
  %v1492 = vunpack.c.l.b16 %v882
  %v1493 = vunpack.c.h.b16 %v882
  %v1494 = vunpack.c.l.b16 %v883
  %v1495 = vunpack.c.h.b16 %v883
  %v1496 = vunpack.c.l.b16 %v884
  %v1497 = vunpack.c.h.b16 %v884
  %v1498 = vunpack.c.l.b16 %v885
  %v1499 = vunpack.c.h.b16 %v885
  %v1500 = vunpack.c.l.b16 %v886
  %v1501 = vunpack.c.h.b16 %v886
  %v1502 = vunpack.c.l.b16 %v887
  %v1503 = vunpack.c.h.b16 %v887
  %v1504 = vunpack.c.l.b16 %v888
  %v1505 = vunpack.c.h.b16 %v888
  %v1506 = vunpack.c.l.b16 %v889
  %v1507 = vunpack.c.h.b16 %v889
  %v1508 = vunpack.c.l.b16 %v890
  %v1509 = vunpack.c.h.b16 %v890
  %v1510 = vunpack.c.l.b16 %v891
  %v1511 = vunpack.c.h.b16 %v891
  %v1512 = vunpack.c.l.b16 %v892
  %v1513 = vunpack.c.h.b16 %v892
  %v1514 = vunpack.c.l.b16 %v893
  %v1515 = vunpack.c.h.b16 %v893
  %v1516 = vunpack.c.l.b16 %v894
  %v1517 = vunpack.c.h.b16 %v894
  %v1518 = vunpack.c.l.b16 %v895
  %v1519 = vunpack.c.h.b16 %v895
  %v1520 = vunpack.c.l.b16 %v896
  %v1521 = vunpack.c.h.b16 %v896
  %v1522 = vunpack.c.l.b16 %v897
  %v1523 = vunpack.c.h.b16 %v897
  %v1524 = vunpack.c.l.b16 %v898
  %v1525 = vunpack.c.h.b16 %v898
  %v1526 = vunpack.c.l.b16 %v899
  %v1527 = vunpack.c.h.b16 %v899
  %v1528 = vunpack.c.l.b16 %v900
  %v1529 = vunpack.c.h.b16 %v900
  %v1530 = vunpack.c.l.b16 %v901
  %v1531 = vunpack.c.h.b16 %v901
  %v1532 = vunpack.c.l.b16 %v902
  %v1533 = vunpack.c.h.b16 %v902
  %v1534 = vunpack.c.l.b16 %v903
  %v1535 = vunpack.c.h.b16 %v903
  %v1536 = vunpack.c.l.b16 %v904
  %v1537 = vunpack.c.h.b16 %v904
  %v1538 = vunpack.c.l.b16 %v905
  %v1539 = vunpack.c.h.b16 %v905
  %v1540 = vunpack.c.l.b16 %v906
  %v1541 = vunpack.c.h.b16 %v906
  %v1542 = vunpack.c.l.b16 %v907
  %v1543 = vunpack.c.h.b16 %v907
  %v1544 = vunpack.c.l.b16 %v908
  %v1545 = vunpack.c.h.b16 %v908
  %v1546 = vunpack.c.l.b16 %v909
  %v1547 = vunpack.c.h.b16 %v909
  %v1548 = vunpack.c.l.b16 %v910
  %v1549 = vunpack.c.h.b16 %v910
  %v1550 = vunpack.c.l.b16 %v911
  %v1551 = vunpack.c.h.b16 %v911
  %v1552 = vunpack.c.l.b16 %v912
  %v1553 = vunpack.c.h.b16 %v912
  %v1554 = vunpack.c.l.b16 %v913
  %v1555 = vunpack.c.h.b16 %v913
  %v1556 = vunpack.c.l.b16 %v914
  %v1557 = vunpack.c.h.b16 %v914
  %v1558 = vunpack.c.l.b16 %v915
  %v1559 = vunpack.c.h.b16 %v915
  %v1560 = vunpack.c.l.b16 %v916
  %v1561 = vunpack.c.h.b16 %v916
  %v1562 = vunpack.c.l.b16 %v917
  %v1563 = vunpack.c.h.b16 %v917
  %v1564 = vunpack.c.l.b16 %v918
  %v1565 = vunpack.c.h.b16 %v918
  %v1566 = vunpack.c.l.b16 %v919
  %v1567 = vunpack.c.h.b16 %v919
  %v1568 = vunpack.c.l.b16 %v920
  %v1569 = vunpack.c.h.b16 %v920
  %v1570 = vunpack.c.l.b16 %v921
  %v1571 = vunpack.c.h.b16 %v921
  %v1572 = vunpack.c.l.b16 %v922
  %v1573 = vunpack.c.h.b16 %v922
  %v1574 = vunpack.c.l.b16 %v923
  %v1575 = vunpack.c.h.b16 %v923
  %v1576 = vunpack.c.l.b16 %v924
  %v1577 = vunpack.c.h.b16 %v924
  %v1578 = vunpack.c.l.b16 %v925
  %v1579 = vunpack.c.h.b16 %v925
  %v1580 = vunpack.c.l.b16 %v926
  %v1581 = vunpack.c.h.b16 %v926
  %v1582 = vunpack.c.l.b16 %v927
  %v1583 = vunpack.c.h.b16 %v927
  %v1584 = vunpack.c.l.b16 %v928
  %v1585 = vunpack.c.h.b16 %v928
  %v1586 = vunpack.c.l.b16 %v929
  %v1587 = vunpack.c.h.b16 %v929
  %v1588 = vunpack.c.l.b16 %v930
  %v1589 = vunpack.c.h.b16 %v930
  %v1590 = vunpack.c.l.b16 %v931
  %v1591 = vunpack.c.h.b16 %v931
  %v1592 = vunpack.c.l.b16 %v932
  %v1593 = vunpack.c.h.b16 %v932
  %v1594 = vunpack.c.l.b16 %v933
  %v1595 = vunpack.c.h.b16 %v933
  %v1596 = vunpack.c.l.b16 %v934
  %v1597 = vunpack.c.h.b16 %v934
  %v1598 = vunpack.c.l.b16 %v935
  %v1599 = vunpack.c.h.b16 %v935
  %v1600 = vunpack.c.l.b16 %v936
  %v1601 = vunpack.c.h.b16 %v936
  %v1602 = vunpack.c.l.b16 %v937
  %v1603 = vunpack.c.h.b16 %v937
  %v1604 = vunpack.c.l.b16 %v938
  %v1605 = vunpack.c.h.b16 %v938
  %v1606 = vunpack.c.l.b16 %v939
  %v1607 = vunpack.c.h.b16 %v939
  %v1608 = vunpack.c.l.b16 %v940
  %v1609 = vunpack.c.h.b16 %v940
  %v1610 = vunpack.c.l.b16 %v941
  %v1611 = vunpack.c.h.b16 %v941
  %v1612 = vunpack.c.l.b16 %v942
  %v1613 = vunpack.c.h.b16 %v942
  %v1614 = vunpack.c.l.b16 %v943
  %v1615 = vunpack.c.h.b16 %v943
  %v1616 = vunpack.c.l.b16 %v944
  %v1617 = vunpack.c.h.b16 %v944
  %v1618 = vunpack.c.l.b16 %v945
  %v1619 = vunpack.c.h.b16 %v945
  %v1620 = vunpack.c.l.b16 %v946
  %v1621 = vunpack.c.h.b16 %v946
  %v1622 = vunpack.c.l.b16 %v947
  %v1623 = vunpack.c.h.b16 %v947
  %v1624 = vunpack.c.l.b16 %v948
  %v1625 = vunpack.c.h.b16 %v948
  %v1626 = vunpack.c.l.b16 %v949
  %v1627 = vunpack.c.h.b16 %v949
  %v1628 = vunpack.c.l.b16 %v950
  %v1629 = vunpack.c.h.b16 %v950
  %v1630 = vunpack.c.l.b16 %v951
  %v1631 = vunpack.c.h.b16 %v951
  %v1632 = vunpack.c.l.b16 %v952
  %v1633 = vunpack.c.h.b16 %v952
  %v1634 = vunpack.c.l.b16 %v953
  %v1635 = vunpack.c.h.b16 %v953
  %v1636 = vunpack.c.l.b16 %v954
  %v1637 = vunpack.c.h.b16 %v954
  %v1638 = vunpack.c.l.b16 %v955
  %v1639 = vunpack.c.h.b16 %v955
  %v1640 = vunpack.c.l.b16 %v956
  %v1641 = vunpack.c.h.b16 %v956
  %v1642 = vunpack.c.l.b16 %v957
  %v1643 = vunpack.c.h.b16 %v957
  %v1644 = vunpack.c.l.b16 %v958
  %v1645 = vunpack.c.h.b16 %v958
  %v1646 = vunpack.c.l.b16 %v959
  %v1647 = vunpack.c.h.b16 %v959
  %v1648 = vunpack.c.l.b16 %v960
  %v1649 = vunpack.c.h.b16 %v960
  %v1650 = vunpack.c.l.b16 %v961
  %v1651 = vunpack.c.h.b16 %v961
  %v1652 = vunpack.c.l.b16 %v962
  %v1653 = vunpack.c.h.b16 %v962
  %v1654 = vunpack.c.l.b16 %v963
  %v1655 = vunpack.c.h.b16 %v963
  %v1656 = vunpack.c.l.b16 %v964
  %v1657 = vunpack.c.h.b16 %v964
  %v1658 = vunpack.c.l.b16 %v965
  %v1659 = vunpack.c.h.b16 %v965
  %v1660 = vunpack.c.l.b16 %v966
  %v1661 = vunpack.c.h.b16 %v966
  %v1662 = vunpack.c.l.b16 %v967
  %v1663 = vunpack.c.h.b16 %v967
  %v1664 = vunpack.c.l.b16 %v968
  %v1665 = vunpack.c.h.b16 %v968
  %v1666 = vunpack.c.l.b16 %v969
  %v1667 = vunpack.c.h.b16 %v969
  %v1668 = vunpack.c.l.b16 %v970
  %v1669 = vunpack.c.h.b16 %v970
  %v1670 = vunpack.c.l.b16 %v971
  %v1671 = vunpack.c.h.b16 %v971
  %v1672 = vunpack.c.l.b16 %v972
  %v1673 = vunpack.c.h.b16 %v972
  %v1674 = vunpack.c.l.b16 %v973
  %v1675 = vunpack.c.h.b16 %v973
  %v1676 = vunpack.c.l.b16 %v974
  %v1677 = vunpack.c.h.b16 %v974
  %v1678 = vunpack.c.l.b16 %v975
  %v1679 = vunpack.c.h.b16 %v975
  %v1680 = vunpack.c.l.b16 %v976
  %v1681 = vunpack.c.h.b16 %v976
  %v1682 = vunpack.c.l.b16 %v977
  %v1683 = vunpack.c.h.b16 %v977
  %v1684 = vunpack.c.l.b16 %v978
  %v1685 = vunpack.c.h.b16 %v978
  %v1686 = vunpack.c.l.b16 %v979
  %v1687 = vunpack.c.h.b16 %v979
  %v1688 = vunpack.c.l.b16 %v980
  %v1689 = vunpack.c.h.b16 %v980
  %v1690 = vunpack.c.l.b16 %v981
  %v1691 = vunpack.c.h.b16 %v981
  %v1692 = vunpack.c.l.b16 %v982
  %v1693 = vunpack.c.h.b16 %v982
  %v1694 = vunpack.c.l.b16 %v983
  %v1695 = vunpack.c.h.b16 %v983
  %v1696 = vunpack.c.l.b16 %v984
  %v1697 = vunpack.c.h.b16 %v984
  %v1698 = vunpack.c.l.b16 %v985
  %v1699 = vunpack.c.h.b16 %v985
  %v1700 = vunpack.c.l.b16 %v986
  %v1701 = vunpack.c.h.b16 %v986
  %v1702 = vunpack.c.l.b16 %v987
  %v1703 = vunpack.c.h.b16 %v987
  %v1704 = vunpack.c.l.b16 %v988
  %v1705 = vunpack.c.h.b16 %v988
  %v1706 = vunpack.c.l.b16 %v989
  %v1707 = vunpack.c.h.b16 %v989
  %v1708 = vunpack.c.l.b16 %v990
  %v1709 = vunpack.c.h.b16 %v990
  %v1710 = vunpack.c.l.b16 %v991
  %v1711 = vunpack.c.h.b16 %v991
  %v1712 = vunpack.c.l.b16 %v992
  %v1713 = vunpack.c.h.b16 %v992
  %v1714 = vunpack.c.l.b16 %v993
  %v1715 = vunpack.c.h.b16 %v993
  %v1716 = vunpack.c.l.b16 %v994
  %v1717 = vunpack.c.h.b16 %v994
  %v1718 = vunpack.c.l.b16 %v995
  %v1719 = vunpack.c.h.b16 %v995
  %v1720 = vunpack.c.l.b16 %v996
  %v1721 = vunpack.c.h.b16 %v996
  %v1722 = vunpack.c.l.b16 %v997
  %v1723 = vunpack.c.h.b16 %v997
  %v1724 = vunpack.c.l.b16 %v998
  %v1725 = vunpack.c.h.b16 %v998
  %v1726 = vunpack.c.l.b16 %v999
  %v1727 = vunpack.c.h.b16 %v999
  %v1728 = vunpack.c.l.b16 %v1000
  %v1729 = vunpack.c.h.b16 %v1000
  %v1730 = vunpack.c.l.b16 %v1001
  %v1731 = vunpack.c.h.b16 %v1001
  %v1732 = vunpack.c.l.b16 %v1002
  %v1733 = vunpack.c.h.b16 %v1002
  %v1734 = vunpack.c.l.b16 %v1003
  %v1735 = vunpack.c.h.b16 %v1003
  %v1736 = vunpack.c.l.b16 %v1004
  %v1737 = vunpack.c.h.b16 %v1004
  %v1738 = vunpack.c.l.b16 %v1005
  %v1739 = vunpack.c.h.b16 %v1005
  %v1740 = vunpack.c.l.b16 %v1006
  %v1741 = vunpack.c.h.b16 %v1006
  %v1742 = vunpack.c.l.b16 %v1007
  %v1743 = vunpack.c.h.b16 %v1007
  %v1744 = vunpack.c.l.b16 %v1008
  %v1745 = vunpack.c.h.b16 %v1008
  %v1746 = vunpack.c.l.b16 %v1009
  %v1747 = vunpack.c.h.b16 %v1009
  %v1748 = vunpack.c.l.b16 %v1010
  %v1749 = vunpack.c.h.b16 %v1010
  %v1750 = vunpack.c.l.b16 %v1011
  %v1751 = vunpack.c.h.b16 %v1011
  %v1752 = vunpack.c.l.b16 %v1012
  %v1753 = vunpack.c.h.b16 %v1012
  %v1754 = vunpack.c.l.b16 %v1013
  %v1755 = vunpack.c.h.b16 %v1013
  %v1756 = vunpack.c.l.b16 %v1014
  %v1757 = vunpack.c.h.b16 %v1014
  %v1758 = vunpack.c.l.b16 %v1015
  %v1759 = vunpack.c.h.b16 %v1015
  %v1760 = vunpack.c.l.b16 %v1016
  %v1761 = vunpack.c.h.b16 %v1016
  %v1762 = vunpack.c.l.b16 %v1017
  %v1763 = vunpack.c.h.b16 %v1017
  %v1764 = vunpack.c.l.b16 %v1018
  %v1765 = vunpack.c.h.b16 %v1018
  %v1766 = vunpack.c.l.b16 %v1019
  %v1767 = vunpack.c.h.b16 %v1019
  %v1768 = vunpack.c.l.b16 %v1020
  %v1769 = vunpack.c.h.b16 %v1020
  %v1770 = vunpack.c.l.b16 %v1021
  %v1771 = vunpack.c.h.b16 %v1021
  %v1772 = vunpack.c.l.b16 %v1022
  %v1773 = vunpack.c.h.b16 %v1022
  %v1774 = vunpack.c.l.b16 %v1023
  %v1775 = vunpack.c.h.b16 %v1023
  %v1776 = vunpack.c.l.b16 %v1024
  %v1777 = vunpack.c.h.b16 %v1024
  %v1778 = vunpack.c.l.b16 %v1025
  %v1779 = vunpack.c.h.b16 %v1025
  %v1780 = vunpack.c.l.b16 %v1026
  %v1781 = vunpack.c.h.b16 %v1026
  %v1782 = vunpack.c.l.b16 %v1027
  %v1783 = vunpack.c.h.b16 %v1027
  %v1784 = vunpack.c.l.b16 %v1028
  %v1785 = vunpack.c.h.b16 %v1028
  %v1786 = vunpack.c.l.b16 %v1029
  %v1787 = vunpack.c.h.b16 %v1029
  %v1788 = vunpack.c.l.b16 %v1030
  %v1789 = vunpack.c.h.b16 %v1030
  %v1790 = vunpack.c.l.b16 %v1031
  %v1791 = vunpack.c.h.b16 %v1031
  %v1792 = vunpack.c.l.b16 %v1032
  %v1793 = vunpack.c.h.b16 %v1032
  %v1794 = vunpack.c.l.b16 %v1033
  %v1795 = vunpack.c.h.b16 %v1033
  %v1796 = vunpack.c.l.b16 %v1034
  %v1797 = vunpack.c.h.b16 %v1034
  %v1798 = vunpack.c.l.b16 %v1035
  %v1799 = vunpack.c.h.b16 %v1035
  %v1800 = vunpack.c.l.b16 %v1036
  %v1801 = vunpack.c.h.b16 %v1036
  %v1802 = vunpack.c.l.b16 %v1037
  %v1803 = vunpack.c.h.b16 %v1037
  %v1804 = vunpack.c.l.b16 %v1038
  %v1805 = vunpack.c.h.b16 %v1038
  %v1806 = vunpack.c.l.b16 %v1039
  %v1807 = vunpack.c.h.b16 %v1039
  %v1808 = vunpack.c.l.b16 %v1040
  %v1809 = vunpack.c.h.b16 %v1040
  %v1810 = vunpack.c.l.b16 %v1041
  %v1811 = vunpack.c.h.b16 %v1041
  %v1812 = vunpack.c.l.b16 %v1042
  %v1813 = vunpack.c.h.b16 %v1042
  %v1814 = vunpack.c.l.b16 %v1043
  %v1815 = vunpack.c.h.b16 %v1043
  %v1816 = vunpack.c.l.b16 %v1044
  %v1817 = vunpack.c.h.b16 %v1044
  %v1818 = vunpack.c.l.b16 %v1045
  %v1819 = vunpack.c.h.b16 %v1045
  %v1820 = vunpack.c.l.b16 %v1046
  %v1821 = vunpack.c.h.b16 %v1046
  %v1822 = vunpack.c.l.b16 %v1047
  %v1823 = vunpack.c.h.b16 %v1047
  %v1824 = vunpack.c.l.b16 %v1048
  %v1825 = vunpack.c.h.b16 %v1048
  %v1826 = vunpack.c.l.b16 %v1049
  %v1827 = vunpack.c.h.b16 %v1049
  %v1828 = vunpack.c.l.b16 %v1050
  %v1829 = vunpack.c.h.b16 %v1050
  %v1830 = vunpack.c.l.b16 %v1051
  %v1831 = vunpack.c.h.b16 %v1051
  %v1832 = vunpack.c.l.b16 %v1052
  %v1833 = vunpack.c.h.b16 %v1052
  %v1834 = vunpack.c.l.b16 %v1053
  %v1835 = vunpack.c.h.b16 %v1053
  %v1836 = vunpack.c.l.b16 %v1054
  %v1837 = vunpack.c.h.b16 %v1054
  %v1838 = vunpack.c.l.b16 %v1055
  %v1839 = vunpack.c.h.b16 %v1055
  %v1840 = vunpack.c.l.b16 %v1056
  %v1841 = vunpack.c.h.b16 %v1056
  %v1842 = vunpack.c.l.b16 %v1057
  %v1843 = vunpack.c.h.b16 %v1057
  %v1844 = vunpack.c.l.b16 %v1058
  %v1845 = vunpack.c.h.b16 %v1058
  %v1846 = vunpack.c.l.b16 %v1059
  %v1847 = vunpack.c.h.b16 %v1059
  %v1848 = vunpack.c.l.b16 %v1060
  %v1849 = vunpack.c.h.b16 %v1060
  %v1850 = vunpack.c.l.b16 %v1061
  %v1851 = vunpack.c.h.b16 %v1061
  %v1852 = vunpack.c.l.b16 %v1062
  %v1853 = vunpack.c.h.b16 %v1062
  %v1854 = vunpack.c.l.b16 %v1063
  %v1855 = vunpack.c.h.b16 %v1063
  %v1856 = vunpack.c.l.b16 %v1064
  %v1857 = vunpack.c.h.b16 %v1064
  %v1858 = vunpack.c.l.b16 %v1065
  %v1859 = vunpack.c.h.b16 %v1065
  %v1860 = vunpack.c.l.b16 %v1066
  %v1861 = vunpack.c.h.b16 %v1066
  %v1862 = vunpack.c.l.b16 %v1067
  %v1863 = vunpack.c.h.b16 %v1067
  %v1864 = vunpack.c.l.b16 %v1068
  %v1865 = vunpack.c.h.b16 %v1068
  %v1866 = vunpack.c.l.b16 %v1069
  %v1867 = vunpack.c.h.b16 %v1069
  %v1868 = vunpack.c.l.b16 %v1070
  %v1869 = vunpack.c.h.b16 %v1070
  %v1870 = vunpack.c.l.b16 %v1071
  %v1871 = vunpack.c.h.b16 %v1071
  %v1872 = vunpack.c.l.b16 %v1072
  %v1873 = vunpack.c.h.b16 %v1072
  %v1874 = vunpack.c.l.b16 %v1073
  %v1875 = vunpack.c.h.b16 %v1073
  %v1876 = vunpack.c.l.b16 %v1074
  %v1877 = vunpack.c.h.b16 %v1074
  %v1878 = vunpack.c.l.b16 %v1075
  %v1879 = vunpack.c.h.b16 %v1075
  %v1880 = vunpack.c.l.b16 %v1076
  %v1881 = vunpack.c.h.b16 %v1076
  %v1882 = vunpack.c.l.b16 %v1077
  %v1883 = vunpack.c.h.b16 %v1077
  %v1884 = vunpack.c.l.b16 %v1078
  %v1885 = vunpack.c.h.b16 %v1078
  %v1886 = vunpack.c.l.b16 %v1079
  %v1887 = vunpack.c.h.b16 %v1079
  %v1888 = vunpack.c.l.b16 %v1080
  %v1889 = vunpack.c.h.b16 %v1080
  %v1890 = vunpack.c.l.b16 %v1081
  %v1891 = vunpack.c.h.b16 %v1081
  %v1892 = vpack.c.b16 %v1388, %v1380
  %v1893 = vpack.c.b16 %v1389, %v1381
  %v1894 = vpack.c.b16 %v1390, %v1382
  %v1895 = vpack.c.b16 %v1391, %v1383
  %v1896 = vpack.c.b16 %v1392, %v1384
  %v1897 = vpack.c.b16 %v1393, %v1385
  %v1898 = vpack.c.b16 %v1394, %v1386
  %v1899 = vpack.c.b16 %v1395, %v1387
  %v1900 = vpack.c.b16 %v1404, %v1396
  %v1901 = vpack.c.b16 %v1405, %v1397
  %v1902 = vpack.c.b16 %v1406, %v1398
  %v1903 = vpack.c.b16 %v1407, %v1399
  %v1904 = vpack.c.b16 %v1408, %v1400
  %v1905 = vpack.c.b16 %v1409, %v1401
  %v1906 = vpack.c.b16 %v1410, %v1402
  %v1907 = vpack.c.b16 %v1411, %v1403
  %v1908 = vpack.c.b16 %v1420, %v1412
  %v1909 = vpack.c.b16 %v1421, %v1413
  %v1910 = vpack.c.b16 %v1422, %v1414
  %v1911 = vpack.c.b16 %v1423, %v1415
  %v1912 = vpack.c.b16 %v1424, %v1416
  %v1913 = vpack.c.b16 %v1425, %v1417
  %v1914 = vpack.c.b16 %v1426, %v1418
  %v1915 = vpack.c.b16 %v1427, %v1419
  %v1916 = vpack.c.b16 %v1436, %v1428
  %v1917 = vpack.c.b16 %v1437, %v1429
  %v1918 = vpack.c.b16 %v1438, %v1430
  %v1919 = vpack.c.b16 %v1439, %v1431
  %v1920 = vpack.c.b16 %v1440, %v1432
  %v1921 = vpack.c.b16 %v1441, %v1433
  %v1922 = vpack.c.b16 %v1442, %v1434
  %v1923 = vpack.c.b16 %v1443, %v1435
  %v1924 = vpack.c.b16 %v1452, %v1444
  %v1925 = vpack.c.b16 %v1453, %v1445
  %v1926 = vpack.c.b16 %v1454, %v1446
  %v1927 = vpack.c.b16 %v1455, %v1447
  %v1928 = vpack.c.b16 %v1456, %v1448
  %v1929 = vpack.c.b16 %v1457, %v1449
  %v1930 = vpack.c.b16 %v1458, %v1450
  %v1931 = vpack.c.b16 %v1459, %v1451
  %v1932 = vpack.c.b16 %v1468, %v1460
  %v1933 = vpack.c.b16 %v1469, %v1461
  %v1934 = vpack.c.b16 %v1470, %v1462
  %v1935 = vpack.c.b16 %v1471, %v1463
  %v1936 = vpack.c.b16 %v1472, %v1464
  %v1937 = vpack.c.b16 %v1473, %v1465
  %v1938 = vpack.c.b16 %v1474, %v1466
  %v1939 = vpack.c.b16 %v1475, %v1467
  %v1940 = vpack.c.b16 %v1484, %v1476
  %v1941 = vpack.c.b16 %v1485, %v1477
  %v1942 = vpack.c.b16 %v1486, %v1478
  %v1943 = vpack.c.b16 %v1487, %v1479
  %v1944 = vpack.c.b16 %v1488, %v1480
  %v1945 = vpack.c.b16 %v1489, %v1481
  %v1946 = vpack.c.b16 %v1490, %v1482
  %v1947 = vpack.c.b16 %v1491, %v1483
  %v1948 = vpack.c.b16 %v1500, %v1492
  %v1949 = vpack.c.b16 %v1501, %v1493
  %v1950 = vpack.c.b16 %v1502, %v1494
  %v1951 = vpack.c.b16 %v1503, %v1495
  %v1952 = vpack.c.b16 %v1504, %v1496
  %v1953 = vpack.c.b16 %v1505, %v1497
  %v1954 = vpack.c.b16 %v1506, %v1498
  %v1955 = vpack.c.b16 %v1507, %v1499
  %v1956 = vpack.c.b16 %v1516, %v1508
  %v1957 = vpack.c.b16 %v1517, %v1509
  %v1958 = vpack.c.b16 %v1518, %v1510
  %v1959 = vpack.c.b16 %v1519, %v1511
  %v1960 = vpack.c.b16 %v1520, %v1512
  %v1961 = vpack.c.b16 %v1521, %v1513
  %v1962 = vpack.c.b16 %v1522, %v1514
  %v1963 = vpack.c.b16 %v1523, %v1515
  %v1964 = vpack.c.b16 %v1532, %v1524
  %v1965 = vpack.c.b16 %v1533, %v1525
  %v1966 = vpack.c.b16 %v1534, %v1526
  %v1967 = vpack.c.b16 %v1535, %v1527
  %v1968 = vpack.c.b16 %v1536, %v1528
  %v1969 = vpack.c.b16 %v1537, %v1529
  %v1970 = vpack.c.b16 %v1538, %v1530
  %v1971 = vpack.c.b16 %v1539, %v1531
  %v1972 = vpack.c.b16 %v1548, %v1540
  %v1973 = vpack.c.b16 %v1549, %v1541
  %v1974 = vpack.c.b16 %v1550, %v1542
  %v1975 = vpack.c.b16 %v1551, %v1543
  %v1976 = vpack.c.b16 %v1552, %v1544
  %v1977 = vpack.c.b16 %v1553, %v1545
  %v1978 = vpack.c.b16 %v1554, %v1546
  %v1979 = vpack.c.b16 %v1555, %v1547
  %v1980 = vpack.c.b16 %v1564, %v1556
  %v1981 = vpack.c.b16 %v1565, %v1557
  %v1982 = vpack.c.b16 %v1566, %v1558
  %v1983 = vpack.c.b16 %v1567, %v1559
  %v1984 = vpack.c.b16 %v1568, %v1560
  %v1985 = vpack.c.b16 %v1569, %v1561
  %v1986 = vpack.c.b16 %v1570, %v1562
  %v1987 = vpack.c.b16 %v1571, %v1563
  %v1988 = vpack.c.b16 %v1580, %v1572
  %v1989 = vpack.c.b16 %v1581, %v1573
  %v1990 = vpack.c.b16 %v1582, %v1574
  %v1991 = vpack.c.b16 %v1583, %v1575
  %v1992 = vpack.c.b16 %v1584, %v1576
  %v1993 = vpack.c.b16 %v1585, %v1577
  %v1994 = vpack.c.b16 %v1586, %v1578
  %v1995 = vpack.c.b16 %v1587, %v1579
  %v1996 = vpack.c.b16 %v1596, %v1588
  %v1997 = vpack.c.b16 %v1597, %v1589
  %v1998 = vpack.c.b16 %v1598, %v1590
  %v1999 = vpack.c.b16 %v1599, %v1591
  %v2000 = vpack.c.b16 %v1600, %v1592
  %v2001 = vpack.c.b16 %v1601, %v1593
  %v2002 = vpack.c.b16 %v1602, %v1594
  %v2003 = vpack.c.b16 %v1603, %v1595
  %v2004 = vpack.c.b16 %v1612, %v1604
  %v2005 = vpack.c.b16 %v1613, %v1605
  %v2006 = vpack.c.b16 %v1614, %v1606
  %v2007 = vpack.c.b16 %v1615, %v1607
  %v2008 = vpack.c.b16 %v1616, %v1608
  %v2009 = vpack.c.b16 %v1617, %v1609
  %v2010 = vpack.c.b16 %v1618, %v1610
  %v2011 = vpack.c.b16 %v1619, %v1611
  %v2012 = vpack.c.b16 %v1628, %v1620
  %v2013 = vpack.c.b16 %v1629, %v1621
  %v2014 = vpack.c.b16 %v1630, %v1622
  %v2015 = vpack.c.b16 %v1631, %v1623
  %v2016 = vpack.c.b16 %v1632, %v1624
  %v2017 = vpack.c.b16 %v1633, %v1625
  %v2018 = vpack.c.b16 %v1634, %v1626
  %v2019 = vpack.c.b16 %v1635, %v1627
  %v2020 = vpack.c.b16 %v1644, %v1636
  %v2021 = vpack.c.b16 %v1645, %v1637
  %v2022 = vpack.c.b16 %v1646, %v1638
  %v2023 = vpack.c.b16 %v1647, %v1639
  %v2024 = vpack.c.b16 %v1648, %v1640
  %v2025 = vpack.c.b16 %v1649, %v1641
  %v2026 = vpack.c.b16 %v1650, %v1642
  %v2027 = vpack.c.b16 %v1651, %v1643
  %v2028 = vpack.c.b16 %v1660, %v1652
  %v2029 = vpack.c.b16 %v1661, %v1653
  %v2030 = vpack.c.b16 %v1662, %v1654
  %v2031 = vpack.c.b16 %v1663, %v1655
  %v2032 = vpack.c.b16 %v1664, %v1656
  %v2033 = vpack.c.b16 %v1665, %v1657
  %v2034 = vpack.c.b16 %v1666, %v1658
  %v2035 = vpack.c.b16 %v1667, %v1659
  %v2036 = vpack.c.b16 %v1676, %v1668
  %v2037 = vpack.c.b16 %v1677, %v1669
  %v2038 = vpack.c.b16 %v1678, %v1670
  %v2039 = vpack.c.b16 %v1679, %v1671
  %v2040 = vpack.c.b16 %v1680, %v1672
  %v2041 = vpack.c.b16 %v1681, %v1673
  %v2042 = vpack.c.b16 %v1682, %v1674
  %v2043 = vpack.c.b16 %v1683, %v1675
  %v2044 = vpack.c.b16 %v1692, %v1684
  %v2045 = vpack.c.b16 %v1693, %v1685
  %v2046 = vpack.c.b16 %v1694, %v1686
  %v2047 = vpack.c.b16 %v1695, %v1687
  %v2048 = vpack.c.b16 %v1696, %v1688
  %v2049 = vpack.c.b16 %v1697, %v1689
  %v2050 = vpack.c.b16 %v1698, %v1690
  %v2051 = vpack.c.b16 %v1699, %v1691
  %v2052 = vpack.c.b16 %v1708, %v1700
  %v2053 = vpack.c.b16 %v1709, %v1701
  %v2054 = vpack.c.b16 %v1710, %v1702
  %v2055 = vpack.c.b16 %v1711, %v1703
  %v2056 = vpack.c.b16 %v1712, %v1704
  %v2057 = vpack.c.b16 %v1713, %v1705
  %v2058 = vpack.c.b16 %v1714, %v1706
  %v2059 = vpack.c.b16 %v1715, %v1707
  %v2060 = vpack.c.b16 %v1724, %v1716
  %v2061 = vpack.c.b16 %v1725, %v1717
  %v2062 = vpack.c.b16 %v1726, %v1718
  %v2063 = vpack.c.b16 %v1727, %v1719
  %v2064 = vpack.c.b16 %v1728, %v1720
  %v2065 = vpack.c.b16 %v1729, %v1721
  %v2066 = vpack.c.b16 %v1730, %v1722
  %v2067 = vpack.c.b16 %v1731, %v1723
  %v2068 = vpack.c.b16 %v1740, %v1732
  %v2069 = vpack.c.b16 %v1741, %v1733
  %v2070 = vpack.c.b16 %v1742, %v1734
  %v2071 = vpack.c.b16 %v1743, %v1735
  %v2072 = vpack.c.b16 %v1744, %v1736
  %v2073 = vpack.c.b16 %v1745, %v1737
  %v2074 = vpack.c.b16 %v1746, %v1738
  %v2075 = vpack.c.b16 %v1747, %v1739
  %v2076 = vpack.c.b16 %v1756, %v1748
  %v2077 = vpack.c.b16 %v1757, %v1749
  %v2078 = vpack.c.b16 %v1758, %v1750
  %v2079 = vpack.c.b16 %v1759, %v1751
  %v2080 = vpack.c.b16 %v1760, %v1752
  %v2081 = vpack.c.b16 %v1761, %v1753
  %v2082 = vpack.c.b16 %v1762, %v1754
  %v2083 = vpack.c.b16 %v1763, %v1755
  %v2084 = vpack.c.b16 %v1772, %v1764
  %v2085 = vpack.c.b16 %v1773, %v1765
  %v2086 = vpack.c.b16 %v1774, %v1766
  %v2087 = vpack.c.b16 %v1775, %v1767
  %v2088 = vpack.c.b16 %v1776, %v1768
  %v2089 = vpack.c.b16 %v1777, %v1769
  %v2090 = vpack.c.b16 %v1778, %v1770
  %v2091 = vpack.c.b16 %v1779, %v1771
  %v2092 = vpack.c.b16 %v1788, %v1780
  %v2093 = vpack.c.b16 %v1789, %v1781
  %v2094 = vpack.c.b16 %v1790, %v1782
  %v2095 = vpack.c.b16 %v1791, %v1783
  %v2096 = vpack.c.b16 %v1792, %v1784
  %v2097 = vpack.c.b16 %v1793, %v1785
  %v2098 = vpack.c.b16 %v1794, %v1786
  %v2099 = vpack.c.b16 %v1795, %v1787
  %v2100 = vpack.c.b16 %v1804, %v1796
  %v2101 = vpack.c.b16 %v1805, %v1797
  %v2102 = vpack.c.b16 %v1806, %v1798
  %v2103 = vpack.c.b16 %v1807, %v1799
  %v2104 = vpack.c.b16 %v1808, %v1800
  %v2105 = vpack.c.b16 %v1809, %v1801
  %v2106 = vpack.c.b16 %v1810, %v1802
  %v2107 = vpack.c.b16 %v1811, %v1803
  %v2108 = vpack.c.b16 %v1820, %v1812
  %v2109 = vpack.c.b16 %v1821, %v1813
  %v2110 = vpack.c.b16 %v1822, %v1814
  %v2111 = vpack.c.b16 %v1823, %v1815
  %v2112 = vpack.c.b16 %v1824, %v1816
  %v2113 = vpack.c.b16 %v1825, %v1817
  %v2114 = vpack.c.b16 %v1826, %v1818
  %v2115 = vpack.c.b16 %v1827, %v1819
  %v2116 = vpack.c.b16 %v1836, %v1828
  %v2117 = vpack.c.b16 %v1837, %v1829
  %v2118 = vpack.c.b16 %v1838, %v1830
  %v2119 = vpack.c.b16 %v1839, %v1831
  %v2120 = vpack.c.b16 %v1840, %v1832
  %v2121 = vpack.c.b16 %v1841, %v1833
  %v2122 = vpack.c.b16 %v1842, %v1834
  %v2123 = vpack.c.b16 %v1843, %v1835
  %v2124 = vpack.c.b16 %v1852, %v1844
  %v2125 = vpack.c.b16 %v1853, %v1845
  %v2126 = vpack.c.b16 %v1854, %v1846
  %v2127 = vpack.c.b16 %v1855, %v1847
  %v2128 = vpack.c.b16 %v1856, %v1848
  %v2129 = vpack.c.b16 %v1857, %v1849
  %v2130 = vpack.c.b16 %v1858, %v1850
  %v2131 = vpack.c.b16 %v1859, %v1851
  %v2132 = vpack.c.b16 %v1868, %v1860
  %v2133 = vpack.c.b16 %v1869, %v1861
  %v2134 = vpack.c.b16 %v1870, %v1862
  %v2135 = vpack.c.b16 %v1871, %v1863
  %v2136 = vpack.c.b16 %v1872, %v1864
  %v2137 = vpack.c.b16 %v1873, %v1865
  %v2138 = vpack.c.b16 %v1874, %v1866
  %v2139 = vpack.c.b16 %v1875, %v1867
  %v2140 = vpack.c.b16 %v1884, %v1876
  %v2141 = vpack.c.b16 %v1885, %v1877
  %v2142 = vpack.c.b16 %v1886, %v1878
  %v2143 = vpack.c.b16 %v1887, %v1879
  %v2144 = vpack.c.b16 %v1888, %v1880
  %v2145 = vpack.c.b16 %v1889, %v1881
  %v2146 = vpack.c.b16 %v1890, %v1882
  %v2147 = vpack.c.b16 %v1891, %v1883
  %2404 = vmatprep.subr.bf16.mxu0 %v1949
  %2405 = vmatpush1.bf16.msra.mxu0 %v1948
  %2406 = vmatprep.subr.bf16.mxu0 %v1941
  %2407 = vmatpush1.bf16.msra.mxu0 %v1940
  %2408 = vmatprep.subr.bf16.mxu0 %v1933
  %2409 = vmatpush1.bf16.msra.mxu0 %v1932
  %2410 = vmatprep.subr.bf16.mxu0 %v1925
  %2411 = vmatpush1.bf16.msra.mxu0 %v1924
  %2412 = vmatprep.subr.bf16.mxu0 %v1917
  %2413 = vmatpush1.bf16.msra.mxu0 %v1916
  %2414 = vmatprep.subr.bf16.mxu0 %v1909
  %2415 = vmatpush1.bf16.msra.mxu0 %v1908
  %2416 = vmatprep.subr.bf16.mxu0 %v1901
  %2417 = vmatpush1.bf16.msra.mxu0 %v1900
  %2418 = vmatprep.subr.bf16.mxu0 %v1893
  %2419 = vmatpush1.bf16.msra.mxu0 %v1892
  %2420 = vmatprep.subr.bf16.mxu0 %v2013
  %2421 = vmatpush2.bf16.msra.mxu0 %v2012
  %2422 = vmatprep.subr.bf16.mxu0 %v2005
  %2423 = vmatpush2.bf16.msra.mxu0 %v2004
  %2424 = vmatprep.subr.bf16.mxu0 %v1997
  %2425 = vmatpush2.bf16.msra.mxu0 %v1996
  %2426 = vmatprep.subr.bf16.mxu0 %v1989
  %2427 = vmatpush2.bf16.msra.mxu0 %v1988
  %2428 = vmatprep.subr.bf16.mxu0 %v1981
  %2429 = vmatpush2.bf16.msra.mxu0 %v1980
  %2430 = vmatprep.subr.bf16.mxu0 %v1973
  %2431 = vmatpush2.bf16.msra.mxu0 %v1972
  %2432 = vmatprep.subr.bf16.mxu0 %v1965
  %2433 = vmatpush2.bf16.msra.mxu0 %v1964
  %2434 = vmatprep.subr.bf16.mxu0 %v1957
  %2435 = vmatpush2.bf16.msra.mxu0 %v1956
  %2436 = vmatprep.mubr.bf16.mxu0 %v823
  %2437 = vmatmul.mubr.bf16.gmra.mxu0 %v822
  %v2438 = vpop.f32.mrf.mxu0
  %v2439 = vadd.f32 %v1087, %v2438
  %v2440 = vpop.f32.mrf.mxu0
  %v2441 = vadd.f32 %v1091, %v2440
  %v2442 = vpop.f32.mrf.mxu0
  %v2443 = vadd.f32 %v1087, %v2442
  %v2444 = vpop.f32.mrf.mxu0
  %v2445 = vadd.f32 %v1091, %v2444
  %2446 = vdwg.mxu0
  %2447 = vmatprep.subr.bf16.mxu0 %v2077
  %2448 = vmatpush1.bf16.msra.mxu0 %v2076
  %2449 = vmatprep.subr.bf16.mxu0 %v2069
  %2450 = vmatpush1.bf16.msra.mxu0 %v2068
  %2451 = vmatprep.subr.bf16.mxu0 %v2061
  %2452 = vmatpush1.bf16.msra.mxu0 %v2060
  %2453 = vmatprep.subr.bf16.mxu0 %v2053
  %2454 = vmatpush1.bf16.msra.mxu0 %v2052
  %2455 = vmatprep.subr.bf16.mxu0 %v2045
  %2456 = vmatpush1.bf16.msra.mxu0 %v2044
  %2457 = vmatprep.subr.bf16.mxu0 %v2037
  %2458 = vmatpush1.bf16.msra.mxu0 %v2036
  %2459 = vmatprep.subr.bf16.mxu0 %v2029
  %2460 = vmatpush1.bf16.msra.mxu0 %v2028
  %2461 = vmatprep.subr.bf16.mxu0 %v2021
  %2462 = vmatpush1.bf16.msra.mxu0 %v2020
  %2463 = vmatprep.subr.bf16.mxu0 %v2141
  %2464 = vmatpush2.bf16.msra.mxu0 %v2140
  %2465 = vmatprep.subr.bf16.mxu0 %v2133
  %2466 = vmatpush2.bf16.msra.mxu0 %v2132
  %2467 = vmatprep.subr.bf16.mxu0 %v2125
  %2468 = vmatpush2.bf16.msra.mxu0 %v2124
  %2469 = vmatprep.subr.bf16.mxu0 %v2117
  %2470 = vmatpush2.bf16.msra.mxu0 %v2116
  %2471 = vmatprep.subr.bf16.mxu0 %v2109
  %2472 = vmatpush2.bf16.msra.mxu0 %v2108
  %2473 = vmatprep.subr.bf16.mxu0 %v2101
  %2474 = vmatpush2.bf16.msra.mxu0 %v2100
  %2475 = vmatprep.subr.bf16.mxu0 %v2093
  %2476 = vmatpush2.bf16.msra.mxu0 %v2092
  %2477 = vmatprep.subr.bf16.mxu0 %v2085
  %2478 = vmatpush2.bf16.msra.mxu0 %v2084
  %2479 = vmatprep.mubr.bf16.mxu0 %v825
  %2480 = vmatmul.mubr.bf16.gmra.mxu0 %v824
  %v2481 = vpop.f32.mrf.mxu0
  %v2482 = vadd.f32 %v2439, %v2481
  %v2483 = vpop.f32.mrf.mxu0
  %v2484 = vadd.f32 %v2441, %v2483
  %v2485 = vpop.f32.mrf.mxu0
  %v2486 = vadd.f32 %v2443, %v2485
  %v2487 = vpop.f32.mrf.mxu0
  %v2488 = vadd.f32 %v2445, %v2487
  %2489 = vdwg.mxu0
  %2490 = vmatprep.subr.bf16.mxu0 %v1951
  %2491 = vmatpush1.bf16.msra.mxu0 %v1950
  %2492 = vmatprep.subr.bf16.mxu0 %v1943
  %2493 = vmatpush1.bf16.msra.mxu0 %v1942
  %2494 = vmatprep.subr.bf16.mxu0 %v1935
  %2495 = vmatpush1.bf16.msra.mxu0 %v1934
  %2496 = vmatprep.subr.bf16.mxu0 %v1927
  %2497 = vmatpush1.bf16.msra.mxu0 %v1926
  %2498 = vmatprep.subr.bf16.mxu0 %v1919
  %2499 = vmatpush1.bf16.msra.mxu0 %v1918
  %2500 = vmatprep.subr.bf16.mxu0 %v1911
  %2501 = vmatpush1.bf16.msra.mxu0 %v1910
  %2502 = vmatprep.subr.bf16.mxu0 %v1903
  %2503 = vmatpush1.bf16.msra.mxu0 %v1902
  %2504 = vmatprep.subr.bf16.mxu0 %v1895
  %2505 = vmatpush1.bf16.msra.mxu0 %v1894
  %2506 = vmatprep.subr.bf16.mxu0 %v2015
  %2507 = vmatpush2.bf16.msra.mxu0 %v2014
  %2508 = vmatprep.subr.bf16.mxu0 %v2007
  %2509 = vmatpush2.bf16.msra.mxu0 %v2006
  %2510 = vmatprep.subr.bf16.mxu0 %v1999
  %2511 = vmatpush2.bf16.msra.mxu0 %v1998
  %2512 = vmatprep.subr.bf16.mxu0 %v1991
  %2513 = vmatpush2.bf16.msra.mxu0 %v1990
  %2514 = vmatprep.subr.bf16.mxu0 %v1983
  %2515 = vmatpush2.bf16.msra.mxu0 %v1982
  %2516 = vmatprep.subr.bf16.mxu0 %v1975
  %2517 = vmatpush2.bf16.msra.mxu0 %v1974
  %2518 = vmatprep.subr.bf16.mxu0 %v1967
  %2519 = vmatpush2.bf16.msra.mxu0 %v1966
  %2520 = vmatprep.subr.bf16.mxu0 %v1959
  %2521 = vmatpush2.bf16.msra.mxu0 %v1958
  %2522 = vmatprep.mubr.bf16.mxu0 %v823
  %2523 = vmatmul.mubr.bf16.gmra.mxu0 %v822
  %v2524 = vpop.f32.mrf.mxu0
  %v2525 = vadd.f32 %v1095, %v2524
  %v2526 = vpop.f32.mrf.mxu0
  %v2527 = vadd.f32 %v1099, %v2526
  %v2528 = vpop.f32.mrf.mxu0
  %v2529 = vadd.f32 %v1095, %v2528
  %v2530 = vpop.f32.mrf.mxu0
  %v2531 = vadd.f32 %v1099, %v2530
  %2532 = vdwg.mxu0
  %2533 = vmatprep.subr.bf16.mxu0 %v2079
  %2534 = vmatpush1.bf16.msra.mxu0 %v2078
  %2535 = vmatprep.subr.bf16.mxu0 %v2071
  %2536 = vmatpush1.bf16.msra.mxu0 %v2070
  %2537 = vmatprep.subr.bf16.mxu0 %v2063
  %2538 = vmatpush1.bf16.msra.mxu0 %v2062
  %2539 = vmatprep.subr.bf16.mxu0 %v2055
  %2540 = vmatpush1.bf16.msra.mxu0 %v2054
  %2541 = vmatprep.subr.bf16.mxu0 %v2047
  %2542 = vmatpush1.bf16.msra.mxu0 %v2046
  %2543 = vmatprep.subr.bf16.mxu0 %v2039
  %2544 = vmatpush1.bf16.msra.mxu0 %v2038
  %2545 = vmatprep.subr.bf16.mxu0 %v2031
  %2546 = vmatpush1.bf16.msra.mxu0 %v2030
  %2547 = vmatprep.subr.bf16.mxu0 %v2023
  %2548 = vmatpush1.bf16.msra.mxu0 %v2022
  %2549 = vmatprep.subr.bf16.mxu0 %v2143
  %2550 = vmatpush2.bf16.msra.mxu0 %v2142
  %2551 = vmatprep.subr.bf16.mxu0 %v2135
  %2552 = vmatpush2.bf16.msra.mxu0 %v2134
  %2553 = vmatprep.subr.bf16.mxu0 %v2127
  %2554 = vmatpush2.bf16.msra.mxu0 %v2126
  %2555 = vmatprep.subr.bf16.mxu0 %v2119
  %2556 = vmatpush2.bf16.msra.mxu0 %v2118
  %2557 = vmatprep.subr.bf16.mxu0 %v2111
  %2558 = vmatpush2.bf16.msra.mxu0 %v2110
  %2559 = vmatprep.subr.bf16.mxu0 %v2103
  %2560 = vmatpush2.bf16.msra.mxu0 %v2102
  %2561 = vmatprep.subr.bf16.mxu0 %v2095
  %2562 = vmatpush2.bf16.msra.mxu0 %v2094
  %2563 = vmatprep.subr.bf16.mxu0 %v2087
  %2564 = vmatpush2.bf16.msra.mxu0 %v2086
  %2565 = vmatprep.mubr.bf16.mxu0 %v825
  %2566 = vmatmul.mubr.bf16.gmra.mxu0 %v824
  %v2567 = vpop.f32.mrf.mxu0
  %v2568 = vadd.f32 %v2525, %v2567
  %v2569 = vpop.f32.mrf.mxu0
  %v2570 = vadd.f32 %v2527, %v2569
  %v2571 = vpop.f32.mrf.mxu0
  %v2572 = vadd.f32 %v2529, %v2571
  %v2573 = vpop.f32.mrf.mxu0
  %v2574 = vadd.f32 %v2531, %v2573
  %2575 = vdwg.mxu0
  %2576 = vmatprep.subr.bf16.mxu0 %v1953
  %2577 = vmatpush1.bf16.msra.mxu0 %v1952
  %2578 = vmatprep.subr.bf16.mxu0 %v1945
  %2579 = vmatpush1.bf16.msra.mxu0 %v1944
  %2580 = vmatprep.subr.bf16.mxu0 %v1937
  %2581 = vmatpush1.bf16.msra.mxu0 %v1936
  %2582 = vmatprep.subr.bf16.mxu0 %v1929
  %2583 = vmatpush1.bf16.msra.mxu0 %v1928
  %2584 = vmatprep.subr.bf16.mxu0 %v1921
  %2585 = vmatpush1.bf16.msra.mxu0 %v1920
  %2586 = vmatprep.subr.bf16.mxu0 %v1913
  %2587 = vmatpush1.bf16.msra.mxu0 %v1912
  %2588 = vmatprep.subr.bf16.mxu0 %v1905
  %2589 = vmatpush1.bf16.msra.mxu0 %v1904
  %2590 = vmatprep.subr.bf16.mxu0 %v1897
  %2591 = vmatpush1.bf16.msra.mxu0 %v1896
  %2592 = vmatprep.subr.bf16.mxu0 %v2017
  %2593 = vmatpush2.bf16.msra.mxu0 %v2016
  %2594 = vmatprep.subr.bf16.mxu0 %v2009
  %2595 = vmatpush2.bf16.msra.mxu0 %v2008
  %2596 = vmatprep.subr.bf16.mxu0 %v2001
  %2597 = vmatpush2.bf16.msra.mxu0 %v2000
  %2598 = vmatprep.subr.bf16.mxu0 %v1993
  %2599 = vmatpush2.bf16.msra.mxu0 %v1992
  %2600 = vmatprep.subr.bf16.mxu0 %v1985
  %2601 = vmatpush2.bf16.msra.mxu0 %v1984
  %2602 = vmatprep.subr.bf16.mxu0 %v1977
  %2603 = vmatpush2.bf16.msra.mxu0 %v1976
  %2604 = vmatprep.subr.bf16.mxu0 %v1969
  %2605 = vmatpush2.bf16.msra.mxu0 %v1968
  %2606 = vmatprep.subr.bf16.mxu0 %v1961
  %2607 = vmatpush2.bf16.msra.mxu0 %v1960
  %2608 = vmatprep.mubr.bf16.mxu0 %v823
  %2609 = vmatmul.mubr.bf16.gmra.mxu0 %v822
  %v2610 = vpop.f32.mrf.mxu0
  %v2611 = vadd.f32 %v1103, %v2610
  %v2612 = vpop.f32.mrf.mxu0
  %v2613 = vadd.f32 %v1107, %v2612
  %v2614 = vpop.f32.mrf.mxu0
  %v2615 = vadd.f32 %v1103, %v2614
  %v2616 = vpop.f32.mrf.mxu0
  %v2617 = vadd.f32 %v1107, %v2616
  %2618 = vdwg.mxu0
  %2619 = vmatprep.subr.bf16.mxu0 %v2081
  %2620 = vmatpush1.bf16.msra.mxu0 %v2080
  %2621 = vmatprep.subr.bf16.mxu0 %v2073
  %2622 = vmatpush1.bf16.msra.mxu0 %v2072
  %2623 = vmatprep.subr.bf16.mxu0 %v2065
  %2624 = vmatpush1.bf16.msra.mxu0 %v2064
  %2625 = vmatprep.subr.bf16.mxu0 %v2057
  %2626 = vmatpush1.bf16.msra.mxu0 %v2056
  %2627 = vmatprep.subr.bf16.mxu0 %v2049
  %2628 = vmatpush1.bf16.msra.mxu0 %v2048
  %2629 = vmatprep.subr.bf16.mxu0 %v2041
  %2630 = vmatpush1.bf16.msra.mxu0 %v2040
  %2631 = vmatprep.subr.bf16.mxu0 %v2033
  %2632 = vmatpush1.bf16.msra.mxu0 %v2032
  %2633 = vmatprep.subr.bf16.mxu0 %v2025
  %2634 = vmatpush1.bf16.msra.mxu0 %v2024
  %2635 = vmatprep.subr.bf16.mxu0 %v2145
  %2636 = vmatpush2.bf16.msra.mxu0 %v2144
  %2637 = vmatprep.subr.bf16.mxu0 %v2137
  %2638 = vmatpush2.bf16.msra.mxu0 %v2136
  %2639 = vmatprep.subr.bf16.mxu0 %v2129
  %2640 = vmatpush2.bf16.msra.mxu0 %v2128
  %2641 = vmatprep.subr.bf16.mxu0 %v2121
  %2642 = vmatpush2.bf16.msra.mxu0 %v2120
  %2643 = vmatprep.subr.bf16.mxu0 %v2113
  %2644 = vmatpush2.bf16.msra.mxu0 %v2112
  %2645 = vmatprep.subr.bf16.mxu0 %v2105
  %2646 = vmatpush2.bf16.msra.mxu0 %v2104
  %2647 = vmatprep.subr.bf16.mxu0 %v2097
  %2648 = vmatpush2.bf16.msra.mxu0 %v2096
  %2649 = vmatprep.subr.bf16.mxu0 %v2089
  %2650 = vmatpush2.bf16.msra.mxu0 %v2088
  %2651 = vmatprep.mubr.bf16.mxu0 %v825
  %2652 = vmatmul.mubr.bf16.gmra.mxu0 %v824
  %v2653 = vpop.f32.mrf.mxu0
  %v2654 = vadd.f32 %v2611, %v2653
  %v2655 = vpop.f32.mrf.mxu0
  %v2656 = vadd.f32 %v2613, %v2655
  %v2657 = vpop.f32.mrf.mxu0
  %v2658 = vadd.f32 %v2615, %v2657
  %v2659 = vpop.f32.mrf.mxu0
  %v2660 = vadd.f32 %v2617, %v2659
  %2661 = vdwg.mxu0
  %2662 = vmatprep.subr.bf16.mxu0 %v1955
  %2663 = vmatpush1.bf16.msra.mxu0 %v1954
  %2664 = vmatprep.subr.bf16.mxu0 %v1947
  %2665 = vmatpush1.bf16.msra.mxu0 %v1946
  %2666 = vmatprep.subr.bf16.mxu0 %v1939
  %2667 = vmatpush1.bf16.msra.mxu0 %v1938
  %2668 = vmatprep.subr.bf16.mxu0 %v1931
  %2669 = vmatpush1.bf16.msra.mxu0 %v1930
  %2670 = vmatprep.subr.bf16.mxu0 %v1923
  %2671 = vmatpush1.bf16.msra.mxu0 %v1922
  %2672 = vmatprep.subr.bf16.mxu0 %v1915
  %2673 = vmatpush1.bf16.msra.mxu0 %v1914
  %2674 = vmatprep.subr.bf16.mxu0 %v1907
  %2675 = vmatpush1.bf16.msra.mxu0 %v1906
  %2676 = vmatprep.subr.bf16.mxu0 %v1899
  %2677 = vmatpush1.bf16.msra.mxu0 %v1898
  %2678 = vmatprep.subr.bf16.mxu0 %v2019
  %2679 = vmatpush2.bf16.msra.mxu0 %v2018
  %2680 = vmatprep.subr.bf16.mxu0 %v2011
  %2681 = vmatpush2.bf16.msra.mxu0 %v2010
  %2682 = vmatprep.subr.bf16.mxu0 %v2003
  %2683 = vmatpush2.bf16.msra.mxu0 %v2002
  %2684 = vmatprep.subr.bf16.mxu0 %v1995
  %2685 = vmatpush2.bf16.msra.mxu0 %v1994
  %2686 = vmatprep.subr.bf16.mxu0 %v1987
  %2687 = vmatpush2.bf16.msra.mxu0 %v1986
  %2688 = vmatprep.subr.bf16.mxu0 %v1979
  %2689 = vmatpush2.bf16.msra.mxu0 %v1978
  %2690 = vmatprep.subr.bf16.mxu0 %v1971
  %2691 = vmatpush2.bf16.msra.mxu0 %v1970
  %2692 = vmatprep.subr.bf16.mxu0 %v1963
  %2693 = vmatpush2.bf16.msra.mxu0 %v1962
  %2694 = vmatprep.mubr.bf16.mxu0 %v823
  %2695 = vmatmul.mubr.bf16.gmra.mxu0 %v822
  %v2696 = vpop.f32.mrf.mxu0
  %v2697 = vadd.f32 %v1111, %v2696
  %v2698 = vpop.f32.mrf.mxu0
  %v2699 = vadd.f32 %v1115, %v2698
  %v2700 = vpop.f32.mrf.mxu0
  %v2701 = vadd.f32 %v1111, %v2700
  %v2702 = vpop.f32.mrf.mxu0
  %v2703 = vadd.f32 %v1115, %v2702
  %2704 = vdwg.mxu0
  %2705 = vmatprep.subr.bf16.mxu0 %v2083
  %2706 = vmatpush1.bf16.msra.mxu0 %v2082
  %2707 = vmatprep.subr.bf16.mxu0 %v2075
  %2708 = vmatpush1.bf16.msra.mxu0 %v2074
  %2709 = vmatprep.subr.bf16.mxu0 %v2067
  %2710 = vmatpush1.bf16.msra.mxu0 %v2066
  %2711 = vmatprep.subr.bf16.mxu0 %v2059
  %2712 = vmatpush1.bf16.msra.mxu0 %v2058
  %2713 = vmatprep.subr.bf16.mxu0 %v2051
  %2714 = vmatpush1.bf16.msra.mxu0 %v2050
  %2715 = vmatprep.subr.bf16.mxu0 %v2043
  %2716 = vmatpush1.bf16.msra.mxu0 %v2042
  %2717 = vmatprep.subr.bf16.mxu0 %v2035
  %2718 = vmatpush1.bf16.msra.mxu0 %v2034
  %2719 = vmatprep.subr.bf16.mxu0 %v2027
  %2720 = vmatpush1.bf16.msra.mxu0 %v2026
  %2721 = vmatprep.subr.bf16.mxu0 %v2147
  %2722 = vmatpush2.bf16.msra.mxu0 %v2146
  %2723 = vmatprep.subr.bf16.mxu0 %v2139
  %2724 = vmatpush2.bf16.msra.mxu0 %v2138
  %2725 = vmatprep.subr.bf16.mxu0 %v2131
  %2726 = vmatpush2.bf16.msra.mxu0 %v2130
  %2727 = vmatprep.subr.bf16.mxu0 %v2123
  %2728 = vmatpush2.bf16.msra.mxu0 %v2122
  %2729 = vmatprep.subr.bf16.mxu0 %v2115
  %2730 = vmatpush2.bf16.msra.mxu0 %v2114
  %2731 = vmatprep.subr.bf16.mxu0 %v2107
  %2732 = vmatpush2.bf16.msra.mxu0 %v2106
  %2733 = vmatprep.subr.bf16.mxu0 %v2099
  %2734 = vmatpush2.bf16.msra.mxu0 %v2098
  %2735 = vmatprep.subr.bf16.mxu0 %v2091
  %2736 = vmatpush2.bf16.msra.mxu0 %v2090
  %2737 = vmatprep.mubr.bf16.mxu0 %v825
  %2738 = vmatmul.mubr.bf16.gmra.mxu0 %v824
  %v2739 = vpop.f32.mrf.mxu0
  %v2740 = vadd.f32 %v2697, %v2739
  %v2741 = vpop.f32.mrf.mxu0
  %v2742 = vadd.f32 %v2699, %v2741
  %v2743 = vpop.f32.mrf.mxu0
  %v2744 = vadd.f32 %v2701, %v2743
  %v2745 = vpop.f32.mrf.mxu0
  %v2746 = vadd.f32 %v2703, %v2745
  %2747 = vdwg.mxu0
  %v2748 = vmax.f32 %v2482, 0.0
  %v2749 = vmax.f32 %v2484, 0.0
  %v2750 = vmax.f32 %v2568, 0.0
  %v2751 = vmax.f32 %v2570, 0.0
  %v2752 = vmax.f32 %v2654, 0.0
  %v2753 = vmax.f32 %v2656, 0.0
  %v2754 = vmax.f32 %v2740, 0.0
  %v2755 = vmax.f32 %v2742, 0.0
  %v2756 = vmax.f32 %v2486, 0.0
  %v2757 = vmax.f32 %v2488, 0.0
  %v2758 = vmax.f32 %v2572, 0.0
  %v2759 = vmax.f32 %v2574, 0.0
  %v2760 = vmax.f32 %v2658, 0.0
  %v2761 = vmax.f32 %v2660, 0.0
  %v2762 = vmax.f32 %v2744, 0.0
  %v2763 = vmax.f32 %v2746, 0.0
  %v2764 = vpack.c.bf16 %v2756, %v2748
  %v2765 = vpack.c.bf16 %v2757, %v2749
  %v2766 = vpack.c.bf16 %v2758, %v2750
  %v2767 = vpack.c.bf16 %v2759, %v2751
  %v2768 = vpack.c.bf16 %v2760, %v2752
  %v2769 = vpack.c.bf16 %v2761, %v2753
  %v2770 = vpack.c.bf16 %v2762, %v2754
  %v2771 = vpack.c.bf16 %v2763, %v2755
  %v2772 = vld [vmem:[%s5] sm:$0xff]
  %v2773 = vld [vmem:[%s5 + $0x8] sm:$0xff]
  %v2774 = vld [vmem:[%s5 + $0x10] sm:$0xff]
  %v2775 = vld [vmem:[%s5 + $0x18] sm:$0xff]
  %v2776 = vld [vmem:[%s5 + $0x20] sm:$0xff]
  %v2777 = vld [vmem:[%s5 + $0x28] sm:$0xff]
  %v2778 = vld [vmem:[%s5 + $0x30] sm:$0xff]
  %v2779 = vld [vmem:[%s5 + $0x38] sm:$0xff]
  %v2780 = vld [vmem:[%s5 + $0x40] sm:$0xff]
  %v2781 = vld [vmem:[%s5 + $0x48] sm:$0xff]
  %v2782 = vld [vmem:[%s5 + $0x50] sm:$0xff]
  %v2783 = vld [vmem:[%s5 + $0x58] sm:$0xff]
  %v2784 = vld [vmem:[%s5 + $0x60] sm:$0xff]
  %v2785 = vld [vmem:[%s5 + $0x68] sm:$0xff]
  %v2786 = vld [vmem:[%s5 + $0x70] sm:$0xff]
  %v2787 = vld [vmem:[%s5 + $0x78] sm:$0xff]
  %v2788 = vld [vmem:[%s5 + $0x80] sm:$0xff]
  %v2789 = vld [vmem:[%s5 + $0x88] sm:$0xff]
  %v2790 = vld [vmem:[%s5 + $0x90] sm:$0xff]
  %v2791 = vld [vmem:[%s5 + $0x98] sm:$0xff]
  %v2792 = vld [vmem:[%s5 + $0xa0] sm:$0xff]
  %v2793 = vld [vmem:[%s5 + $0xa8] sm:$0xff]
  %v2794 = vld [vmem:[%s5 + $0xb0] sm:$0xff]
  %v2795 = vld [vmem:[%s5 + $0xb8] sm:$0xff]
  %v2796 = vld [vmem:[%s5 + $0xc0] sm:$0xff]
  %v2797 = vld [vmem:[%s5 + $0xc8] sm:$0xff]
  %v2798 = vld [vmem:[%s5 + $0xd0] sm:$0xff]
  %v2799 = vld [vmem:[%s5 + $0xd8] sm:$0xff]
  %v2800 = vld [vmem:[%s5 + $0xe0] sm:$0xff]
  %v2801 = vld [vmem:[%s5 + $0xe8] sm:$0xff]
  %v2802 = vld [vmem:[%s5 + $0xf0] sm:$0xff]
  %v2803 = vld [vmem:[%s5 + $0xf8] sm:$0xff]
  %v2804 = vld [vmem:[%s5 + $0x100] sm:$0xff]
  %v2805 = vld [vmem:[%s5 + $0x108] sm:$0xff]
  %v2806 = vld [vmem:[%s5 + $0x110] sm:$0xff]
  %v2807 = vld [vmem:[%s5 + $0x118] sm:$0xff]
  %v2808 = vld [vmem:[%s5 + $0x120] sm:$0xff]
  %v2809 = vld [vmem:[%s5 + $0x128] sm:$0xff]
  %v2810 = vld [vmem:[%s5 + $0x130] sm:$0xff]
  %v2811 = vld [vmem:[%s5 + $0x138] sm:$0xff]
  %v2812 = vld [vmem:[%s5 + $0x140] sm:$0xff]
  %v2813 = vld [vmem:[%s5 + $0x148] sm:$0xff]
  %v2814 = vld [vmem:[%s5 + $0x150] sm:$0xff]
  %v2815 = vld [vmem:[%s5 + $0x158] sm:$0xff]
  %v2816 = vld [vmem:[%s5 + $0x160] sm:$0xff]
  %v2817 = vld [vmem:[%s5 + $0x168] sm:$0xff]
  %v2818 = vld [vmem:[%s5 + $0x170] sm:$0xff]
  %v2819 = vld [vmem:[%s5 + $0x178] sm:$0xff]
  %v2820 = vld [vmem:[%s5 + $0x180] sm:$0xff]
  %v2821 = vld [vmem:[%s5 + $0x188] sm:$0xff]
  %v2822 = vld [vmem:[%s5 + $0x190] sm:$0xff]
  %v2823 = vld [vmem:[%s5 + $0x198] sm:$0xff]
  %v2824 = vld [vmem:[%s5 + $0x1a0] sm:$0xff]
  %v2825 = vld [vmem:[%s5 + $0x1a8] sm:$0xff]
  %v2826 = vld [vmem:[%s5 + $0x1b0] sm:$0xff]
  %v2827 = vld [vmem:[%s5 + $0x1b8] sm:$0xff]
  %v2828 = vld [vmem:[%s5 + $0x1c0] sm:$0xff]
  %v2829 = vld [vmem:[%s5 + $0x1c8] sm:$0xff]
  %v2830 = vld [vmem:[%s5 + $0x1d0] sm:$0xff]
  %v2831 = vld [vmem:[%s5 + $0x1d8] sm:$0xff]
  %v2832 = vld [vmem:[%s5 + $0x1e0] sm:$0xff]
  %v2833 = vld [vmem:[%s5 + $0x1e8] sm:$0xff]
  %v2834 = vld [vmem:[%s5 + $0x1f0] sm:$0xff]
  %v2835 = vld [vmem:[%s5 + $0x1f8] sm:$0xff]
  %v2836 = vld [vmem:[%s5 + $0x200] sm:$0xff]
  %v2837 = vld [vmem:[%s5 + $0x208] sm:$0xff]
  %v2838 = vld [vmem:[%s5 + $0x210] sm:$0xff]
  %v2839 = vld [vmem:[%s5 + $0x218] sm:$0xff]
  %v2840 = vld [vmem:[%s5 + $0x220] sm:$0xff]
  %v2841 = vld [vmem:[%s5 + $0x228] sm:$0xff]
  %v2842 = vld [vmem:[%s5 + $0x230] sm:$0xff]
  %v2843 = vld [vmem:[%s5 + $0x238] sm:$0xff]
  %v2844 = vld [vmem:[%s5 + $0x240] sm:$0xff]
  %v2845 = vld [vmem:[%s5 + $0x248] sm:$0xff]
  %v2846 = vld [vmem:[%s5 + $0x250] sm:$0xff]
  %v2847 = vld [vmem:[%s5 + $0x258] sm:$0xff]
  %v2848 = vld [vmem:[%s5 + $0x260] sm:$0xff]
  %v2849 = vld [vmem:[%s5 + $0x268] sm:$0xff]
  %v2850 = vld [vmem:[%s5 + $0x270] sm:$0xff]
  %v2851 = vld [vmem:[%s5 + $0x278] sm:$0xff]
  %v2852 = vld [vmem:[%s5 + $0x280] sm:$0xff]
  %v2853 = vld [vmem:[%s5 + $0x288] sm:$0xff]
  %v2854 = vld [vmem:[%s5 + $0x290] sm:$0xff]
  %v2855 = vld [vmem:[%s5 + $0x298] sm:$0xff]
  %v2856 = vld [vmem:[%s5 + $0x2a0] sm:$0xff]
  %v2857 = vld [vmem:[%s5 + $0x2a8] sm:$0xff]
  %v2858 = vld [vmem:[%s5 + $0x2b0] sm:$0xff]
  %v2859 = vld [vmem:[%s5 + $0x2b8] sm:$0xff]
  %v2860 = vld [vmem:[%s5 + $0x2c0] sm:$0xff]
  %v2861 = vld [vmem:[%s5 + $0x2c8] sm:$0xff]
  %v2862 = vld [vmem:[%s5 + $0x2d0] sm:$0xff]
  %v2863 = vld [vmem:[%s5 + $0x2d8] sm:$0xff]
  %v2864 = vld [vmem:[%s5 + $0x2e0] sm:$0xff]
  %v2865 = vld [vmem:[%s5 + $0x2e8] sm:$0xff]
  %v2866 = vld [vmem:[%s5 + $0x2f0] sm:$0xff]
  %v2867 = vld [vmem:[%s5 + $0x2f8] sm:$0xff]
  %v2868 = vld [vmem:[%s5 + $0x300] sm:$0xff]
  %v2869 = vld [vmem:[%s5 + $0x308] sm:$0xff]
  %v2870 = vld [vmem:[%s5 + $0x310] sm:$0xff]
  %v2871 = vld [vmem:[%s5 + $0x318] sm:$0xff]
  %v2872 = vld [vmem:[%s5 + $0x320] sm:$0xff]
  %v2873 = vld [vmem:[%s5 + $0x328] sm:$0xff]
  %v2874 = vld [vmem:[%s5 + $0x330] sm:$0xff]
  %v2875 = vld [vmem:[%s5 + $0x338] sm:$0xff]
  %v2876 = vld [vmem:[%s5 + $0x340] sm:$0xff]
  %v2877 = vld [vmem:[%s5 + $0x348] sm:$0xff]
  %v2878 = vld [vmem:[%s5 + $0x350] sm:$0xff]
  %v2879 = vld [vmem:[%s5 + $0x358] sm:$0xff]
  %v2880 = vld [vmem:[%s5 + $0x360] sm:$0xff]
  %v2881 = vld [vmem:[%s5 + $0x368] sm:$0xff]
  %v2882 = vld [vmem:[%s5 + $0x370] sm:$0xff]
  %v2883 = vld [vmem:[%s5 + $0x378] sm:$0xff]
  %v2884 = vld [vmem:[%s5 + $0x380] sm:$0xff]
  %v2885 = vld [vmem:[%s5 + $0x388] sm:$0xff]
  %v2886 = vld [vmem:[%s5 + $0x390] sm:$0xff]
  %v2887 = vld [vmem:[%s5 + $0x398] sm:$0xff]
  %v2888 = vld [vmem:[%s5 + $0x3a0] sm:$0xff]
  %v2889 = vld [vmem:[%s5 + $0x3a8] sm:$0xff]
  %v2890 = vld [vmem:[%s5 + $0x3b0] sm:$0xff]
  %v2891 = vld [vmem:[%s5 + $0x3b8] sm:$0xff]
  %v2892 = vld [vmem:[%s5 + $0x3c0] sm:$0xff]
  %v2893 = vld [vmem:[%s5 + $0x3c8] sm:$0xff]
  %v2894 = vld [vmem:[%s5 + $0x3d0] sm:$0xff]
  %v2895 = vld [vmem:[%s5 + $0x3d8] sm:$0xff]
  %v2896 = vld [vmem:[%s5 + $0x3e0] sm:$0xff]
  %v2897 = vld [vmem:[%s5 + $0x3e8] sm:$0xff]
  %v2898 = vld [vmem:[%s5 + $0x3f0] sm:$0xff]
  %v2899 = vld [vmem:[%s5 + $0x3f8] sm:$0xff]
  %v2900 = vld [vmem:[%s5 + $0x400] sm:$0xff]
  %v2901 = vld [vmem:[%s5 + $0x408] sm:$0xff]
  %v2902 = vld [vmem:[%s5 + $0x410] sm:$0xff]
  %v2903 = vld [vmem:[%s5 + $0x418] sm:$0xff]
  %v2904 = vld [vmem:[%s5 + $0x420] sm:$0xff]
  %v2905 = vld [vmem:[%s5 + $0x428] sm:$0xff]
  %v2906 = vld [vmem:[%s5 + $0x430] sm:$0xff]
  %v2907 = vld [vmem:[%s5 + $0x438] sm:$0xff]
  %v2908 = vld [vmem:[%s5 + $0x440] sm:$0xff]
  %v2909 = vld [vmem:[%s5 + $0x448] sm:$0xff]
  %v2910 = vld [vmem:[%s5 + $0x450] sm:$0xff]
  %v2911 = vld [vmem:[%s5 + $0x458] sm:$0xff]
  %v2912 = vld [vmem:[%s5 + $0x460] sm:$0xff]
  %v2913 = vld [vmem:[%s5 + $0x468] sm:$0xff]
  %v2914 = vld [vmem:[%s5 + $0x470] sm:$0xff]
  %v2915 = vld [vmem:[%s5 + $0x478] sm:$0xff]
  %v2916 = vld [vmem:[%s5 + $0x480] sm:$0xff]
  %v2917 = vld [vmem:[%s5 + $0x488] sm:$0xff]
  %v2918 = vld [vmem:[%s5 + $0x490] sm:$0xff]
  %v2919 = vld [vmem:[%s5 + $0x498] sm:$0xff]
  %v2920 = vld [vmem:[%s5 + $0x4a0] sm:$0xff]
  %v2921 = vld [vmem:[%s5 + $0x4a8] sm:$0xff]
  %v2922 = vld [vmem:[%s5 + $0x4b0] sm:$0xff]
  %v2923 = vld [vmem:[%s5 + $0x4b8] sm:$0xff]
  %v2924 = vld [vmem:[%s5 + $0x4c0] sm:$0xff]
  %v2925 = vld [vmem:[%s5 + $0x4c8] sm:$0xff]
  %v2926 = vld [vmem:[%s5 + $0x4d0] sm:$0xff]
  %v2927 = vld [vmem:[%s5 + $0x4d8] sm:$0xff]
  %v2928 = vld [vmem:[%s5 + $0x4e0] sm:$0xff]
  %v2929 = vld [vmem:[%s5 + $0x4e8] sm:$0xff]
  %v2930 = vld [vmem:[%s5 + $0x4f0] sm:$0xff]
  %v2931 = vld [vmem:[%s5 + $0x4f8] sm:$0xff]
  %v2932 = vld [vmem:[%s5 + $0x500] sm:$0xff]
  %v2933 = vld [vmem:[%s5 + $0x508] sm:$0xff]
  %v2934 = vld [vmem:[%s5 + $0x510] sm:$0xff]
  %v2935 = vld [vmem:[%s5 + $0x518] sm:$0xff]
  %v2936 = vld [vmem:[%s5 + $0x520] sm:$0xff]
  %v2937 = vld [vmem:[%s5 + $0x528] sm:$0xff]
  %v2938 = vld [vmem:[%s5 + $0x530] sm:$0xff]
  %v2939 = vld [vmem:[%s5 + $0x538] sm:$0xff]
  %v2940 = vld [vmem:[%s5 + $0x540] sm:$0xff]
  %v2941 = vld [vmem:[%s5 + $0x548] sm:$0xff]
  %v2942 = vld [vmem:[%s5 + $0x550] sm:$0xff]
  %v2943 = vld [vmem:[%s5 + $0x558] sm:$0xff]
  %v2944 = vld [vmem:[%s5 + $0x560] sm:$0xff]
  %v2945 = vld [vmem:[%s5 + $0x568] sm:$0xff]
  %v2946 = vld [vmem:[%s5 + $0x570] sm:$0xff]
  %v2947 = vld [vmem:[%s5 + $0x578] sm:$0xff]
  %v2948 = vld [vmem:[%s5 + $0x580] sm:$0xff]
  %v2949 = vld [vmem:[%s5 + $0x588] sm:$0xff]
  %v2950 = vld [vmem:[%s5 + $0x590] sm:$0xff]
  %v2951 = vld [vmem:[%s5 + $0x598] sm:$0xff]
  %v2952 = vld [vmem:[%s5 + $0x5a0] sm:$0xff]
  %v2953 = vld [vmem:[%s5 + $0x5a8] sm:$0xff]
  %v2954 = vld [vmem:[%s5 + $0x5b0] sm:$0xff]
  %v2955 = vld [vmem:[%s5 + $0x5b8] sm:$0xff]
  %v2956 = vld [vmem:[%s5 + $0x5c0] sm:$0xff]
  %v2957 = vld [vmem:[%s5 + $0x5c8] sm:$0xff]
  %v2958 = vld [vmem:[%s5 + $0x5d0] sm:$0xff]
  %v2959 = vld [vmem:[%s5 + $0x5d8] sm:$0xff]
  %v2960 = vld [vmem:[%s5 + $0x5e0] sm:$0xff]
  %v2961 = vld [vmem:[%s5 + $0x5e8] sm:$0xff]
  %v2962 = vld [vmem:[%s5 + $0x5f0] sm:$0xff]
  %v2963 = vld [vmem:[%s5 + $0x5f8] sm:$0xff]
  %v2964 = vld [vmem:[%s5 + $0x600] sm:$0xff]
  %v2965 = vld [vmem:[%s5 + $0x608] sm:$0xff]
  %v2966 = vld [vmem:[%s5 + $0x610] sm:$0xff]
  %v2967 = vld [vmem:[%s5 + $0x618] sm:$0xff]
  %v2968 = vld [vmem:[%s5 + $0x620] sm:$0xff]
  %v2969 = vld [vmem:[%s5 + $0x628] sm:$0xff]
  %v2970 = vld [vmem:[%s5 + $0x630] sm:$0xff]
  %v2971 = vld [vmem:[%s5 + $0x638] sm:$0xff]
  %v2972 = vld [vmem:[%s5 + $0x640] sm:$0xff]
  %v2973 = vld [vmem:[%s5 + $0x648] sm:$0xff]
  %v2974 = vld [vmem:[%s5 + $0x650] sm:$0xff]
  %v2975 = vld [vmem:[%s5 + $0x658] sm:$0xff]
  %v2976 = vld [vmem:[%s5 + $0x660] sm:$0xff]
  %v2977 = vld [vmem:[%s5 + $0x668] sm:$0xff]
  %v2978 = vld [vmem:[%s5 + $0x670] sm:$0xff]
  %v2979 = vld [vmem:[%s5 + $0x678] sm:$0xff]
  %v2980 = vld [vmem:[%s5 + $0x680] sm:$0xff]
  %v2981 = vld [vmem:[%s5 + $0x688] sm:$0xff]
  %v2982 = vld [vmem:[%s5 + $0x690] sm:$0xff]
  %v2983 = vld [vmem:[%s5 + $0x698] sm:$0xff]
  %v2984 = vld [vmem:[%s5 + $0x6a0] sm:$0xff]
  %v2985 = vld [vmem:[%s5 + $0x6a8] sm:$0xff]
  %v2986 = vld [vmem:[%s5 + $0x6b0] sm:$0xff]
  %v2987 = vld [vmem:[%s5 + $0x6b8] sm:$0xff]
  %v2988 = vld [vmem:[%s5 + $0x6c0] sm:$0xff]
  %v2989 = vld [vmem:[%s5 + $0x6c8] sm:$0xff]
  %v2990 = vld [vmem:[%s5 + $0x6d0] sm:$0xff]
  %v2991 = vld [vmem:[%s5 + $0x6d8] sm:$0xff]
  %v2992 = vld [vmem:[%s5 + $0x6e0] sm:$0xff]
  %v2993 = vld [vmem:[%s5 + $0x6e8] sm:$0xff]
  %v2994 = vld [vmem:[%s5 + $0x6f0] sm:$0xff]
  %v2995 = vld [vmem:[%s5 + $0x6f8] sm:$0xff]
  %v2996 = vld [vmem:[%s5 + $0x700] sm:$0xff]
  %v2997 = vld [vmem:[%s5 + $0x708] sm:$0xff]
  %v2998 = vld [vmem:[%s5 + $0x710] sm:$0xff]
  %v2999 = vld [vmem:[%s5 + $0x718] sm:$0xff]
  %v3000 = vld [vmem:[%s5 + $0x720] sm:$0xff]
  %v3001 = vld [vmem:[%s5 + $0x728] sm:$0xff]
  %v3002 = vld [vmem:[%s5 + $0x730] sm:$0xff]
  %v3003 = vld [vmem:[%s5 + $0x738] sm:$0xff]
  %v3004 = vld [vmem:[%s5 + $0x740] sm:$0xff]
  %v3005 = vld [vmem:[%s5 + $0x748] sm:$0xff]
  %v3006 = vld [vmem:[%s5 + $0x750] sm:$0xff]
  %v3007 = vld [vmem:[%s5 + $0x758] sm:$0xff]
  %v3008 = vld [vmem:[%s5 + $0x760] sm:$0xff]
  %v3009 = vld [vmem:[%s5 + $0x768] sm:$0xff]
  %v3010 = vld [vmem:[%s5 + $0x770] sm:$0xff]
  %v3011 = vld [vmem:[%s5 + $0x778] sm:$0xff]
  %v3012 = vld [vmem:[%s5 + $0x780] sm:$0xff]
  %v3013 = vld [vmem:[%s5 + $0x788] sm:$0xff]
  %v3014 = vld [vmem:[%s5 + $0x790] sm:$0xff]
  %v3015 = vld [vmem:[%s5 + $0x798] sm:$0xff]
  %v3016 = vld [vmem:[%s5 + $0x7a0] sm:$0xff]
  %v3017 = vld [vmem:[%s5 + $0x7a8] sm:$0xff]
  %v3018 = vld [vmem:[%s5 + $0x7b0] sm:$0xff]
  %v3019 = vld [vmem:[%s5 + $0x7b8] sm:$0xff]
  %v3020 = vld [vmem:[%s5 + $0x7c0] sm:$0xff]
  %v3021 = vld [vmem:[%s5 + $0x7c8] sm:$0xff]
  %v3022 = vld [vmem:[%s5 + $0x7d0] sm:$0xff]
  %v3023 = vld [vmem:[%s5 + $0x7d8] sm:$0xff]
  %v3024 = vld [vmem:[%s5 + $0x7e0] sm:$0xff]
  %v3025 = vld [vmem:[%s5 + $0x7e8] sm:$0xff]
  %v3026 = vld [vmem:[%s5 + $0x7f0] sm:$0xff]
  %v3027 = vld [vmem:[%s5 + $0x7f8] sm:$0xff]
  %v3028 = vld [vmem:[%s11 + $0xf] sm:$0xf]
  %v3030 = vlaneseq
  %v3031 = vshrl.u32 %v3030, 7
  %v3032 = vsub.s32 0, %v3031
  %v3033 = vrot.slane %v3028, %v3032
  %v3034 = vlaneseq
  %v3035 = vshrl.u32 %v3034, 7
  %v3036 = vsub.s32 1, %v3035
  %v3037 = vrot.slane %v3028, %v3036
  %v3038 = vlaneseq
  %v3039 = vshrl.u32 %v3038, 7
  %v3040 = vsub.s32 2, %v3039
  %v3041 = vrot.slane %v3028, %v3040
  %v3042 = vlaneseq
  %v3043 = vshrl.u32 %v3042, 7
  %v3044 = vsub.s32 3, %v3043
  %v3045 = vrot.slane %v3028, %v3044
  %v3306 = vunpack.c.l.b16 %v2772
  %v3307 = vunpack.c.h.b16 %v2772
  %v3308 = vunpack.c.l.b16 %v2773
  %v3309 = vunpack.c.h.b16 %v2773
  %v3310 = vunpack.c.l.b16 %v2774
  %v3311 = vunpack.c.h.b16 %v2774
  %v3312 = vunpack.c.l.b16 %v2775
  %v3313 = vunpack.c.h.b16 %v2775
  %v3314 = vunpack.c.l.b16 %v2776
  %v3315 = vunpack.c.h.b16 %v2776
  %v3316 = vunpack.c.l.b16 %v2777
  %v3317 = vunpack.c.h.b16 %v2777
  %v3318 = vunpack.c.l.b16 %v2778
  %v3319 = vunpack.c.h.b16 %v2778
  %v3320 = vunpack.c.l.b16 %v2779
  %v3321 = vunpack.c.h.b16 %v2779
  %v3322 = vunpack.c.l.b16 %v2780
  %v3323 = vunpack.c.h.b16 %v2780
  %v3324 = vunpack.c.l.b16 %v2781
  %v3325 = vunpack.c.h.b16 %v2781
  %v3326 = vunpack.c.l.b16 %v2782
  %v3327 = vunpack.c.h.b16 %v2782
  %v3328 = vunpack.c.l.b16 %v2783
  %v3329 = vunpack.c.h.b16 %v2783
  %v3330 = vunpack.c.l.b16 %v2784
  %v3331 = vunpack.c.h.b16 %v2784
  %v3332 = vunpack.c.l.b16 %v2785
  %v3333 = vunpack.c.h.b16 %v2785
  %v3334 = vunpack.c.l.b16 %v2786
  %v3335 = vunpack.c.h.b16 %v2786
  %v3336 = vunpack.c.l.b16 %v2787
  %v3337 = vunpack.c.h.b16 %v2787
  %v3338 = vunpack.c.l.b16 %v2788
  %v3339 = vunpack.c.h.b16 %v2788
  %v3340 = vunpack.c.l.b16 %v2789
  %v3341 = vunpack.c.h.b16 %v2789
  %v3342 = vunpack.c.l.b16 %v2790
  %v3343 = vunpack.c.h.b16 %v2790
  %v3344 = vunpack.c.l.b16 %v2791
  %v3345 = vunpack.c.h.b16 %v2791
  %v3346 = vunpack.c.l.b16 %v2792
  %v3347 = vunpack.c.h.b16 %v2792
  %v3348 = vunpack.c.l.b16 %v2793
  %v3349 = vunpack.c.h.b16 %v2793
  %v3350 = vunpack.c.l.b16 %v2794
  %v3351 = vunpack.c.h.b16 %v2794
  %v3352 = vunpack.c.l.b16 %v2795
  %v3353 = vunpack.c.h.b16 %v2795
  %v3354 = vunpack.c.l.b16 %v2796
  %v3355 = vunpack.c.h.b16 %v2796
  %v3356 = vunpack.c.l.b16 %v2797
  %v3357 = vunpack.c.h.b16 %v2797
  %v3358 = vunpack.c.l.b16 %v2798
  %v3359 = vunpack.c.h.b16 %v2798
  %v3360 = vunpack.c.l.b16 %v2799
  %v3361 = vunpack.c.h.b16 %v2799
  %v3362 = vunpack.c.l.b16 %v2800
  %v3363 = vunpack.c.h.b16 %v2800
  %v3364 = vunpack.c.l.b16 %v2801
  %v3365 = vunpack.c.h.b16 %v2801
  %v3366 = vunpack.c.l.b16 %v2802
  %v3367 = vunpack.c.h.b16 %v2802
  %v3368 = vunpack.c.l.b16 %v2803
  %v3369 = vunpack.c.h.b16 %v2803
  %v3370 = vunpack.c.l.b16 %v2804
  %v3371 = vunpack.c.h.b16 %v2804
  %v3372 = vunpack.c.l.b16 %v2805
  %v3373 = vunpack.c.h.b16 %v2805
  %v3374 = vunpack.c.l.b16 %v2806
  %v3375 = vunpack.c.h.b16 %v2806
  %v3376 = vunpack.c.l.b16 %v2807
  %v3377 = vunpack.c.h.b16 %v2807
  %v3378 = vunpack.c.l.b16 %v2808
  %v3379 = vunpack.c.h.b16 %v2808
  %v3380 = vunpack.c.l.b16 %v2809
  %v3381 = vunpack.c.h.b16 %v2809
  %v3382 = vunpack.c.l.b16 %v2810
  %v3383 = vunpack.c.h.b16 %v2810
  %v3384 = vunpack.c.l.b16 %v2811
  %v3385 = vunpack.c.h.b16 %v2811
  %v3386 = vunpack.c.l.b16 %v2812
  %v3387 = vunpack.c.h.b16 %v2812
  %v3388 = vunpack.c.l.b16 %v2813
  %v3389 = vunpack.c.h.b16 %v2813
  %v3390 = vunpack.c.l.b16 %v2814
  %v3391 = vunpack.c.h.b16 %v2814
  %v3392 = vunpack.c.l.b16 %v2815
  %v3393 = vunpack.c.h.b16 %v2815
  %v3394 = vunpack.c.l.b16 %v2816
  %v3395 = vunpack.c.h.b16 %v2816
  %v3396 = vunpack.c.l.b16 %v2817
  %v3397 = vunpack.c.h.b16 %v2817
  %v3398 = vunpack.c.l.b16 %v2818
  %v3399 = vunpack.c.h.b16 %v2818
  %v3400 = vunpack.c.l.b16 %v2819
  %v3401 = vunpack.c.h.b16 %v2819
  %v3402 = vunpack.c.l.b16 %v2820
  %v3403 = vunpack.c.h.b16 %v2820
  %v3404 = vunpack.c.l.b16 %v2821
  %v3405 = vunpack.c.h.b16 %v2821
  %v3406 = vunpack.c.l.b16 %v2822
  %v3407 = vunpack.c.h.b16 %v2822
  %v3408 = vunpack.c.l.b16 %v2823
  %v3409 = vunpack.c.h.b16 %v2823
  %v3410 = vunpack.c.l.b16 %v2824
  %v3411 = vunpack.c.h.b16 %v2824
  %v3412 = vunpack.c.l.b16 %v2825
  %v3413 = vunpack.c.h.b16 %v2825
  %v3414 = vunpack.c.l.b16 %v2826
  %v3415 = vunpack.c.h.b16 %v2826
  %v3416 = vunpack.c.l.b16 %v2827
  %v3417 = vunpack.c.h.b16 %v2827
  %v3418 = vunpack.c.l.b16 %v2828
  %v3419 = vunpack.c.h.b16 %v2828
  %v3420 = vunpack.c.l.b16 %v2829
  %v3421 = vunpack.c.h.b16 %v2829
  %v3422 = vunpack.c.l.b16 %v2830
  %v3423 = vunpack.c.h.b16 %v2830
  %v3424 = vunpack.c.l.b16 %v2831
  %v3425 = vunpack.c.h.b16 %v2831
  %v3426 = vunpack.c.l.b16 %v2832
  %v3427 = vunpack.c.h.b16 %v2832
  %v3428 = vunpack.c.l.b16 %v2833
  %v3429 = vunpack.c.h.b16 %v2833
  %v3430 = vunpack.c.l.b16 %v2834
  %v3431 = vunpack.c.h.b16 %v2834
  %v3432 = vunpack.c.l.b16 %v2835
  %v3433 = vunpack.c.h.b16 %v2835
  %v3434 = vunpack.c.l.b16 %v2836
  %v3435 = vunpack.c.h.b16 %v2836
  %v3436 = vunpack.c.l.b16 %v2837
  %v3437 = vunpack.c.h.b16 %v2837
  %v3438 = vunpack.c.l.b16 %v2838
  %v3439 = vunpack.c.h.b16 %v2838
  %v3440 = vunpack.c.l.b16 %v2839
  %v3441 = vunpack.c.h.b16 %v2839
  %v3442 = vunpack.c.l.b16 %v2840
  %v3443 = vunpack.c.h.b16 %v2840
  %v3444 = vunpack.c.l.b16 %v2841
  %v3445 = vunpack.c.h.b16 %v2841
  %v3446 = vunpack.c.l.b16 %v2842
  %v3447 = vunpack.c.h.b16 %v2842
  %v3448 = vunpack.c.l.b16 %v2843
  %v3449 = vunpack.c.h.b16 %v2843
  %v3450 = vunpack.c.l.b16 %v2844
  %v3451 = vunpack.c.h.b16 %v2844
  %v3452 = vunpack.c.l.b16 %v2845
  %v3453 = vunpack.c.h.b16 %v2845
  %v3454 = vunpack.c.l.b16 %v2846
  %v3455 = vunpack.c.h.b16 %v2846
  %v3456 = vunpack.c.l.b16 %v2847
  %v3457 = vunpack.c.h.b16 %v2847
  %v3458 = vunpack.c.l.b16 %v2848
  %v3459 = vunpack.c.h.b16 %v2848
  %v3460 = vunpack.c.l.b16 %v2849
  %v3461 = vunpack.c.h.b16 %v2849
  %v3462 = vunpack.c.l.b16 %v2850
  %v3463 = vunpack.c.h.b16 %v2850
  %v3464 = vunpack.c.l.b16 %v2851
  %v3465 = vunpack.c.h.b16 %v2851
  %v3466 = vunpack.c.l.b16 %v2852
  %v3467 = vunpack.c.h.b16 %v2852
  %v3468 = vunpack.c.l.b16 %v2853
  %v3469 = vunpack.c.h.b16 %v2853
  %v3470 = vunpack.c.l.b16 %v2854
  %v3471 = vunpack.c.h.b16 %v2854
  %v3472 = vunpack.c.l.b16 %v2855
  %v3473 = vunpack.c.h.b16 %v2855
  %v3474 = vunpack.c.l.b16 %v2856
  %v3475 = vunpack.c.h.b16 %v2856
  %v3476 = vunpack.c.l.b16 %v2857
  %v3477 = vunpack.c.h.b16 %v2857
  %v3478 = vunpack.c.l.b16 %v2858
  %v3479 = vunpack.c.h.b16 %v2858
  %v3480 = vunpack.c.l.b16 %v2859
  %v3481 = vunpack.c.h.b16 %v2859
  %v3482 = vunpack.c.l.b16 %v2860
  %v3483 = vunpack.c.h.b16 %v2860
  %v3484 = vunpack.c.l.b16 %v2861
  %v3485 = vunpack.c.h.b16 %v2861
  %v3486 = vunpack.c.l.b16 %v2862
  %v3487 = vunpack.c.h.b16 %v2862
  %v3488 = vunpack.c.l.b16 %v2863
  %v3489 = vunpack.c.h.b16 %v2863
  %v3490 = vunpack.c.l.b16 %v2864
  %v3491 = vunpack.c.h.b16 %v2864
  %v3492 = vunpack.c.l.b16 %v2865
  %v3493 = vunpack.c.h.b16 %v2865
  %v3494 = vunpack.c.l.b16 %v2866
  %v3495 = vunpack.c.h.b16 %v2866
  %v3496 = vunpack.c.l.b16 %v2867
  %v3497 = vunpack.c.h.b16 %v2867
  %v3498 = vunpack.c.l.b16 %v2868
  %v3499 = vunpack.c.h.b16 %v2868
  %v3500 = vunpack.c.l.b16 %v2869
  %v3501 = vunpack.c.h.b16 %v2869
  %v3502 = vunpack.c.l.b16 %v2870
  %v3503 = vunpack.c.h.b16 %v2870
  %v3504 = vunpack.c.l.b16 %v2871
  %v3505 = vunpack.c.h.b16 %v2871
  %v3506 = vunpack.c.l.b16 %v2872
  %v3507 = vunpack.c.h.b16 %v2872
  %v3508 = vunpack.c.l.b16 %v2873
  %v3509 = vunpack.c.h.b16 %v2873
  %v3510 = vunpack.c.l.b16 %v2874
  %v3511 = vunpack.c.h.b16 %v2874
  %v3512 = vunpack.c.l.b16 %v2875
  %v3513 = vunpack.c.h.b16 %v2875
  %v3514 = vunpack.c.l.b16 %v2876
  %v3515 = vunpack.c.h.b16 %v2876
  %v3516 = vunpack.c.l.b16 %v2877
  %v3517 = vunpack.c.h.b16 %v2877
  %v3518 = vunpack.c.l.b16 %v2878
  %v3519 = vunpack.c.h.b16 %v2878
  %v3520 = vunpack.c.l.b16 %v2879
  %v3521 = vunpack.c.h.b16 %v2879
  %v3522 = vunpack.c.l.b16 %v2880
  %v3523 = vunpack.c.h.b16 %v2880
  %v3524 = vunpack.c.l.b16 %v2881
  %v3525 = vunpack.c.h.b16 %v2881
  %v3526 = vunpack.c.l.b16 %v2882
  %v3527 = vunpack.c.h.b16 %v2882
  %v3528 = vunpack.c.l.b16 %v2883
  %v3529 = vunpack.c.h.b16 %v2883
  %v3530 = vunpack.c.l.b16 %v2884
  %v3531 = vunpack.c.h.b16 %v2884
  %v3532 = vunpack.c.l.b16 %v2885
  %v3533 = vunpack.c.h.b16 %v2885
  %v3534 = vunpack.c.l.b16 %v2886
  %v3535 = vunpack.c.h.b16 %v2886
  %v3536 = vunpack.c.l.b16 %v2887
  %v3537 = vunpack.c.h.b16 %v2887
  %v3538 = vunpack.c.l.b16 %v2888
  %v3539 = vunpack.c.h.b16 %v2888
  %v3540 = vunpack.c.l.b16 %v2889
  %v3541 = vunpack.c.h.b16 %v2889
  %v3542 = vunpack.c.l.b16 %v2890
  %v3543 = vunpack.c.h.b16 %v2890
  %v3544 = vunpack.c.l.b16 %v2891
  %v3545 = vunpack.c.h.b16 %v2891
  %v3546 = vunpack.c.l.b16 %v2892
  %v3547 = vunpack.c.h.b16 %v2892
  %v3548 = vunpack.c.l.b16 %v2893
  %v3549 = vunpack.c.h.b16 %v2893
  %v3550 = vunpack.c.l.b16 %v2894
  %v3551 = vunpack.c.h.b16 %v2894
  %v3552 = vunpack.c.l.b16 %v2895
  %v3553 = vunpack.c.h.b16 %v2895
  %v3554 = vunpack.c.l.b16 %v2896
  %v3555 = vunpack.c.h.b16 %v2896
  %v3556 = vunpack.c.l.b16 %v2897
  %v3557 = vunpack.c.h.b16 %v2897
  %v3558 = vunpack.c.l.b16 %v2898
  %v3559 = vunpack.c.h.b16 %v2898
  %v3560 = vunpack.c.l.b16 %v2899
  %v3561 = vunpack.c.h.b16 %v2899
  %v3562 = vunpack.c.l.b16 %v2900
  %v3563 = vunpack.c.h.b16 %v2900
  %v3564 = vunpack.c.l.b16 %v2901
  %v3565 = vunpack.c.h.b16 %v2901
  %v3566 = vunpack.c.l.b16 %v2902
  %v3567 = vunpack.c.h.b16 %v2902
  %v3568 = vunpack.c.l.b16 %v2903
  %v3569 = vunpack.c.h.b16 %v2903
  %v3570 = vunpack.c.l.b16 %v2904
  %v3571 = vunpack.c.h.b16 %v2904
  %v3572 = vunpack.c.l.b16 %v2905
  %v3573 = vunpack.c.h.b16 %v2905
  %v3574 = vunpack.c.l.b16 %v2906
  %v3575 = vunpack.c.h.b16 %v2906
  %v3576 = vunpack.c.l.b16 %v2907
  %v3577 = vunpack.c.h.b16 %v2907
  %v3578 = vunpack.c.l.b16 %v2908
  %v3579 = vunpack.c.h.b16 %v2908
  %v3580 = vunpack.c.l.b16 %v2909
  %v3581 = vunpack.c.h.b16 %v2909
  %v3582 = vunpack.c.l.b16 %v2910
  %v3583 = vunpack.c.h.b16 %v2910
  %v3584 = vunpack.c.l.b16 %v2911
  %v3585 = vunpack.c.h.b16 %v2911
  %v3586 = vunpack.c.l.b16 %v2912
  %v3587 = vunpack.c.h.b16 %v2912
  %v3588 = vunpack.c.l.b16 %v2913
  %v3589 = vunpack.c.h.b16 %v2913
  %v3590 = vunpack.c.l.b16 %v2914
  %v3591 = vunpack.c.h.b16 %v2914
  %v3592 = vunpack.c.l.b16 %v2915
  %v3593 = vunpack.c.h.b16 %v2915
  %v3594 = vunpack.c.l.b16 %v2916
  %v3595 = vunpack.c.h.b16 %v2916
  %v3596 = vunpack.c.l.b16 %v2917
  %v3597 = vunpack.c.h.b16 %v2917
  %v3598 = vunpack.c.l.b16 %v2918
  %v3599 = vunpack.c.h.b16 %v2918
  %v3600 = vunpack.c.l.b16 %v2919
  %v3601 = vunpack.c.h.b16 %v2919
  %v3602 = vunpack.c.l.b16 %v2920
  %v3603 = vunpack.c.h.b16 %v2920
  %v3604 = vunpack.c.l.b16 %v2921
  %v3605 = vunpack.c.h.b16 %v2921
  %v3606 = vunpack.c.l.b16 %v2922
  %v3607 = vunpack.c.h.b16 %v2922
  %v3608 = vunpack.c.l.b16 %v2923
  %v3609 = vunpack.c.h.b16 %v2923
  %v3610 = vunpack.c.l.b16 %v2924
  %v3611 = vunpack.c.h.b16 %v2924
  %v3612 = vunpack.c.l.b16 %v2925
  %v3613 = vunpack.c.h.b16 %v2925
  %v3614 = vunpack.c.l.b16 %v2926
  %v3615 = vunpack.c.h.b16 %v2926
  %v3616 = vunpack.c.l.b16 %v2927
  %v3617 = vunpack.c.h.b16 %v2927
  %v3618 = vunpack.c.l.b16 %v2928
  %v3619 = vunpack.c.h.b16 %v2928
  %v3620 = vunpack.c.l.b16 %v2929
  %v3621 = vunpack.c.h.b16 %v2929
  %v3622 = vunpack.c.l.b16 %v2930
  %v3623 = vunpack.c.h.b16 %v2930
  %v3624 = vunpack.c.l.b16 %v2931
  %v3625 = vunpack.c.h.b16 %v2931
  %v3626 = vunpack.c.l.b16 %v2932
  %v3627 = vunpack.c.h.b16 %v2932
  %v3628 = vunpack.c.l.b16 %v2933
  %v3629 = vunpack.c.h.b16 %v2933
  %v3630 = vunpack.c.l.b16 %v2934
  %v3631 = vunpack.c.h.b16 %v2934
  %v3632 = vunpack.c.l.b16 %v2935
  %v3633 = vunpack.c.h.b16 %v2935
  %v3634 = vunpack.c.l.b16 %v2936
  %v3635 = vunpack.c.h.b16 %v2936
  %v3636 = vunpack.c.l.b16 %v2937
  %v3637 = vunpack.c.h.b16 %v2937
  %v3638 = vunpack.c.l.b16 %v2938
  %v3639 = vunpack.c.h.b16 %v2938
  %v3640 = vunpack.c.l.b16 %v2939
  %v3641 = vunpack.c.h.b16 %v2939
  %v3642 = vunpack.c.l.b16 %v2940
  %v3643 = vunpack.c.h.b16 %v2940
  %v3644 = vunpack.c.l.b16 %v2941
  %v3645 = vunpack.c.h.b16 %v2941
  %v3646 = vunpack.c.l.b16 %v2942
  %v3647 = vunpack.c.h.b16 %v2942
  %v3648 = vunpack.c.l.b16 %v2943
  %v3649 = vunpack.c.h.b16 %v2943
  %v3650 = vunpack.c.l.b16 %v2944
  %v3651 = vunpack.c.h.b16 %v2944
  %v3652 = vunpack.c.l.b16 %v2945
  %v3653 = vunpack.c.h.b16 %v2945
  %v3654 = vunpack.c.l.b16 %v2946
  %v3655 = vunpack.c.h.b16 %v2946
  %v3656 = vunpack.c.l.b16 %v2947
  %v3657 = vunpack.c.h.b16 %v2947
  %v3658 = vunpack.c.l.b16 %v2948
  %v3659 = vunpack.c.h.b16 %v2948
  %v3660 = vunpack.c.l.b16 %v2949
  %v3661 = vunpack.c.h.b16 %v2949
  %v3662 = vunpack.c.l.b16 %v2950
  %v3663 = vunpack.c.h.b16 %v2950
  %v3664 = vunpack.c.l.b16 %v2951
  %v3665 = vunpack.c.h.b16 %v2951
  %v3666 = vunpack.c.l.b16 %v2952
  %v3667 = vunpack.c.h.b16 %v2952
  %v3668 = vunpack.c.l.b16 %v2953
  %v3669 = vunpack.c.h.b16 %v2953
  %v3670 = vunpack.c.l.b16 %v2954
  %v3671 = vunpack.c.h.b16 %v2954
  %v3672 = vunpack.c.l.b16 %v2955
  %v3673 = vunpack.c.h.b16 %v2955
  %v3674 = vunpack.c.l.b16 %v2956
  %v3675 = vunpack.c.h.b16 %v2956
  %v3676 = vunpack.c.l.b16 %v2957
  %v3677 = vunpack.c.h.b16 %v2957
  %v3678 = vunpack.c.l.b16 %v2958
  %v3679 = vunpack.c.h.b16 %v2958
  %v3680 = vunpack.c.l.b16 %v2959
  %v3681 = vunpack.c.h.b16 %v2959
  %v3682 = vunpack.c.l.b16 %v2960
  %v3683 = vunpack.c.h.b16 %v2960
  %v3684 = vunpack.c.l.b16 %v2961
  %v3685 = vunpack.c.h.b16 %v2961
  %v3686 = vunpack.c.l.b16 %v2962
  %v3687 = vunpack.c.h.b16 %v2962
  %v3688 = vunpack.c.l.b16 %v2963
  %v3689 = vunpack.c.h.b16 %v2963
  %v3690 = vunpack.c.l.b16 %v2964
  %v3691 = vunpack.c.h.b16 %v2964
  %v3692 = vunpack.c.l.b16 %v2965
  %v3693 = vunpack.c.h.b16 %v2965
  %v3694 = vunpack.c.l.b16 %v2966
  %v3695 = vunpack.c.h.b16 %v2966
  %v3696 = vunpack.c.l.b16 %v2967
  %v3697 = vunpack.c.h.b16 %v2967
  %v3698 = vunpack.c.l.b16 %v2968
  %v3699 = vunpack.c.h.b16 %v2968
  %v3700 = vunpack.c.l.b16 %v2969
  %v3701 = vunpack.c.h.b16 %v2969
  %v3702 = vunpack.c.l.b16 %v2970
  %v3703 = vunpack.c.h.b16 %v2970
  %v3704 = vunpack.c.l.b16 %v2971
  %v3705 = vunpack.c.h.b16 %v2971
  %v3706 = vunpack.c.l.b16 %v2972
  %v3707 = vunpack.c.h.b16 %v2972
  %v3708 = vunpack.c.l.b16 %v2973
  %v3709 = vunpack.c.h.b16 %v2973
  %v3710 = vunpack.c.l.b16 %v2974
  %v3711 = vunpack.c.h.b16 %v2974
  %v3712 = vunpack.c.l.b16 %v2975
  %v3713 = vunpack.c.h.b16 %v2975
  %v3714 = vunpack.c.l.b16 %v2976
  %v3715 = vunpack.c.h.b16 %v2976
  %v3716 = vunpack.c.l.b16 %v2977
  %v3717 = vunpack.c.h.b16 %v2977
  %v3718 = vunpack.c.l.b16 %v2978
  %v3719 = vunpack.c.h.b16 %v2978
  %v3720 = vunpack.c.l.b16 %v2979
  %v3721 = vunpack.c.h.b16 %v2979
  %v3722 = vunpack.c.l.b16 %v2980
  %v3723 = vunpack.c.h.b16 %v2980
  %v3724 = vunpack.c.l.b16 %v2981
  %v3725 = vunpack.c.h.b16 %v2981
  %v3726 = vunpack.c.l.b16 %v2982
  %v3727 = vunpack.c.h.b16 %v2982
  %v3728 = vunpack.c.l.b16 %v2983
  %v3729 = vunpack.c.h.b16 %v2983
  %v3730 = vunpack.c.l.b16 %v2984
  %v3731 = vunpack.c.h.b16 %v2984
  %v3732 = vunpack.c.l.b16 %v2985
  %v3733 = vunpack.c.h.b16 %v2985
  %v3734 = vunpack.c.l.b16 %v2986
  %v3735 = vunpack.c.h.b16 %v2986
  %v3736 = vunpack.c.l.b16 %v2987
  %v3737 = vunpack.c.h.b16 %v2987
  %v3738 = vunpack.c.l.b16 %v2988
  %v3739 = vunpack.c.h.b16 %v2988
  %v3740 = vunpack.c.l.b16 %v2989
  %v3741 = vunpack.c.h.b16 %v2989
  %v3742 = vunpack.c.l.b16 %v2990
  %v3743 = vunpack.c.h.b16 %v2990
  %v3744 = vunpack.c.l.b16 %v2991
  %v3745 = vunpack.c.h.b16 %v2991
  %v3746 = vunpack.c.l.b16 %v2992
  %v3747 = vunpack.c.h.b16 %v2992
  %v3748 = vunpack.c.l.b16 %v2993
  %v3749 = vunpack.c.h.b16 %v2993
  %v3750 = vunpack.c.l.b16 %v2994
  %v3751 = vunpack.c.h.b16 %v2994
  %v3752 = vunpack.c.l.b16 %v2995
  %v3753 = vunpack.c.h.b16 %v2995
  %v3754 = vunpack.c.l.b16 %v2996
  %v3755 = vunpack.c.h.b16 %v2996
  %v3756 = vunpack.c.l.b16 %v2997
  %v3757 = vunpack.c.h.b16 %v2997
  %v3758 = vunpack.c.l.b16 %v2998
  %v3759 = vunpack.c.h.b16 %v2998
  %v3760 = vunpack.c.l.b16 %v2999
  %v3761 = vunpack.c.h.b16 %v2999
  %v3762 = vunpack.c.l.b16 %v3000
  %v3763 = vunpack.c.h.b16 %v3000
  %v3764 = vunpack.c.l.b16 %v3001
  %v3765 = vunpack.c.h.b16 %v3001
  %v3766 = vunpack.c.l.b16 %v3002
  %v3767 = vunpack.c.h.b16 %v3002
  %v3768 = vunpack.c.l.b16 %v3003
  %v3769 = vunpack.c.h.b16 %v3003
  %v3770 = vunpack.c.l.b16 %v3004
  %v3771 = vunpack.c.h.b16 %v3004
  %v3772 = vunpack.c.l.b16 %v3005
  %v3773 = vunpack.c.h.b16 %v3005
  %v3774 = vunpack.c.l.b16 %v3006
  %v3775 = vunpack.c.h.b16 %v3006
  %v3776 = vunpack.c.l.b16 %v3007
  %v3777 = vunpack.c.h.b16 %v3007
  %v3778 = vunpack.c.l.b16 %v3008
  %v3779 = vunpack.c.h.b16 %v3008
  %v3780 = vunpack.c.l.b16 %v3009
  %v3781 = vunpack.c.h.b16 %v3009
  %v3782 = vunpack.c.l.b16 %v3010
  %v3783 = vunpack.c.h.b16 %v3010
  %v3784 = vunpack.c.l.b16 %v3011
  %v3785 = vunpack.c.h.b16 %v3011
  %v3786 = vunpack.c.l.b16 %v3012
  %v3787 = vunpack.c.h.b16 %v3012
  %v3788 = vunpack.c.l.b16 %v3013
  %v3789 = vunpack.c.h.b16 %v3013
  %v3790 = vunpack.c.l.b16 %v3014
  %v3791 = vunpack.c.h.b16 %v3014
  %v3792 = vunpack.c.l.b16 %v3015
  %v3793 = vunpack.c.h.b16 %v3015
  %v3794 = vunpack.c.l.b16 %v3016
  %v3795 = vunpack.c.h.b16 %v3016
  %v3796 = vunpack.c.l.b16 %v3017
  %v3797 = vunpack.c.h.b16 %v3017
  %v3798 = vunpack.c.l.b16 %v3018
  %v3799 = vunpack.c.h.b16 %v3018
  %v3800 = vunpack.c.l.b16 %v3019
  %v3801 = vunpack.c.h.b16 %v3019
  %v3802 = vunpack.c.l.b16 %v3020
  %v3803 = vunpack.c.h.b16 %v3020
  %v3804 = vunpack.c.l.b16 %v3021
  %v3805 = vunpack.c.h.b16 %v3021
  %v3806 = vunpack.c.l.b16 %v3022
  %v3807 = vunpack.c.h.b16 %v3022
  %v3808 = vunpack.c.l.b16 %v3023
  %v3809 = vunpack.c.h.b16 %v3023
  %v3810 = vunpack.c.l.b16 %v3024
  %v3811 = vunpack.c.h.b16 %v3024
  %v3812 = vunpack.c.l.b16 %v3025
  %v3813 = vunpack.c.h.b16 %v3025
  %v3814 = vunpack.c.l.b16 %v3026
  %v3815 = vunpack.c.h.b16 %v3026
  %v3816 = vunpack.c.l.b16 %v3027
  %v3817 = vunpack.c.h.b16 %v3027
  %v3818 = vpack.c.b16 %v3310, %v3306
  %v3819 = vpack.c.b16 %v3311, %v3307
  %v3820 = vpack.c.b16 %v3312, %v3308
  %v3821 = vpack.c.b16 %v3313, %v3309
  %v3822 = vpack.c.b16 %v3318, %v3314
  %v3823 = vpack.c.b16 %v3319, %v3315
  %v3824 = vpack.c.b16 %v3320, %v3316
  %v3825 = vpack.c.b16 %v3321, %v3317
  %v3826 = vpack.c.b16 %v3326, %v3322
  %v3827 = vpack.c.b16 %v3327, %v3323
  %v3828 = vpack.c.b16 %v3328, %v3324
  %v3829 = vpack.c.b16 %v3329, %v3325
  %v3830 = vpack.c.b16 %v3334, %v3330
  %v3831 = vpack.c.b16 %v3335, %v3331
  %v3832 = vpack.c.b16 %v3336, %v3332
  %v3833 = vpack.c.b16 %v3337, %v3333
  %v3834 = vpack.c.b16 %v3342, %v3338
  %v3835 = vpack.c.b16 %v3343, %v3339
  %v3836 = vpack.c.b16 %v3344, %v3340
  %v3837 = vpack.c.b16 %v3345, %v3341
  %v3838 = vpack.c.b16 %v3350, %v3346
  %v3839 = vpack.c.b16 %v3351, %v3347
  %v3840 = vpack.c.b16 %v3352, %v3348
  %v3841 = vpack.c.b16 %v3353, %v3349
  %v3842 = vpack.c.b16 %v3358, %v3354
  %v3843 = vpack.c.b16 %v3359, %v3355
  %v3844 = vpack.c.b16 %v3360, %v3356
  %v3845 = vpack.c.b16 %v3361, %v3357
  %v3846 = vpack.c.b16 %v3366, %v3362
  %v3847 = vpack.c.b16 %v3367, %v3363
  %v3848 = vpack.c.b16 %v3368, %v3364
  %v3849 = vpack.c.b16 %v3369, %v3365
  %v3850 = vpack.c.b16 %v3374, %v3370
  %v3851 = vpack.c.b16 %v3375, %v3371
  %v3852 = vpack.c.b16 %v3376, %v3372
  %v3853 = vpack.c.b16 %v3377, %v3373
  %v3854 = vpack.c.b16 %v3382, %v3378
  %v3855 = vpack.c.b16 %v3383, %v3379
  %v3856 = vpack.c.b16 %v3384, %v3380
  %v3857 = vpack.c.b16 %v3385, %v3381
  %v3858 = vpack.c.b16 %v3390, %v3386
  %v3859 = vpack.c.b16 %v3391, %v3387
  %v3860 = vpack.c.b16 %v3392, %v3388
  %v3861 = vpack.c.b16 %v3393, %v3389
  %v3862 = vpack.c.b16 %v3398, %v3394
  %v3863 = vpack.c.b16 %v3399, %v3395
  %v3864 = vpack.c.b16 %v3400, %v3396
  %v3865 = vpack.c.b16 %v3401, %v3397
  %v3866 = vpack.c.b16 %v3406, %v3402
  %v3867 = vpack.c.b16 %v3407, %v3403
  %v3868 = vpack.c.b16 %v3408, %v3404
  %v3869 = vpack.c.b16 %v3409, %v3405
  %v3870 = vpack.c.b16 %v3414, %v3410
  %v3871 = vpack.c.b16 %v3415, %v3411
  %v3872 = vpack.c.b16 %v3416, %v3412
  %v3873 = vpack.c.b16 %v3417, %v3413
  %v3874 = vpack.c.b16 %v3422, %v3418
  %v3875 = vpack.c.b16 %v3423, %v3419
  %v3876 = vpack.c.b16 %v3424, %v3420
  %v3877 = vpack.c.b16 %v3425, %v3421
  %v3878 = vpack.c.b16 %v3430, %v3426
  %v3879 = vpack.c.b16 %v3431, %v3427
  %v3880 = vpack.c.b16 %v3432, %v3428
  %v3881 = vpack.c.b16 %v3433, %v3429
  %v3882 = vpack.c.b16 %v3438, %v3434
  %v3883 = vpack.c.b16 %v3439, %v3435
  %v3884 = vpack.c.b16 %v3440, %v3436
  %v3885 = vpack.c.b16 %v3441, %v3437
  %v3886 = vpack.c.b16 %v3446, %v3442
  %v3887 = vpack.c.b16 %v3447, %v3443
  %v3888 = vpack.c.b16 %v3448, %v3444
  %v3889 = vpack.c.b16 %v3449, %v3445
  %v3890 = vpack.c.b16 %v3454, %v3450
  %v3891 = vpack.c.b16 %v3455, %v3451
  %v3892 = vpack.c.b16 %v3456, %v3452
  %v3893 = vpack.c.b16 %v3457, %v3453
  %v3894 = vpack.c.b16 %v3462, %v3458
  %v3895 = vpack.c.b16 %v3463, %v3459
  %v3896 = vpack.c.b16 %v3464, %v3460
  %v3897 = vpack.c.b16 %v3465, %v3461
  %v3898 = vpack.c.b16 %v3470, %v3466
  %v3899 = vpack.c.b16 %v3471, %v3467
  %v3900 = vpack.c.b16 %v3472, %v3468
  %v3901 = vpack.c.b16 %v3473, %v3469
  %v3902 = vpack.c.b16 %v3478, %v3474
  %v3903 = vpack.c.b16 %v3479, %v3475
  %v3904 = vpack.c.b16 %v3480, %v3476
  %v3905 = vpack.c.b16 %v3481, %v3477
  %v3906 = vpack.c.b16 %v3486, %v3482
  %v3907 = vpack.c.b16 %v3487, %v3483
  %v3908 = vpack.c.b16 %v3488, %v3484
  %v3909 = vpack.c.b16 %v3489, %v3485
  %v3910 = vpack.c.b16 %v3494, %v3490
  %v3911 = vpack.c.b16 %v3495, %v3491
  %v3912 = vpack.c.b16 %v3496, %v3492
  %v3913 = vpack.c.b16 %v3497, %v3493
  %v3914 = vpack.c.b16 %v3502, %v3498
  %v3915 = vpack.c.b16 %v3503, %v3499
  %v3916 = vpack.c.b16 %v3504, %v3500
  %v3917 = vpack.c.b16 %v3505, %v3501
  %v3918 = vpack.c.b16 %v3510, %v3506
  %v3919 = vpack.c.b16 %v3511, %v3507
  %v3920 = vpack.c.b16 %v3512, %v3508
  %v3921 = vpack.c.b16 %v3513, %v3509
  %v3922 = vpack.c.b16 %v3518, %v3514
  %v3923 = vpack.c.b16 %v3519, %v3515
  %v3924 = vpack.c.b16 %v3520, %v3516
  %v3925 = vpack.c.b16 %v3521, %v3517
  %v3926 = vpack.c.b16 %v3526, %v3522
  %v3927 = vpack.c.b16 %v3527, %v3523
  %v3928 = vpack.c.b16 %v3528, %v3524
  %v3929 = vpack.c.b16 %v3529, %v3525
  %v3930 = vpack.c.b16 %v3534, %v3530
  %v3931 = vpack.c.b16 %v3535, %v3531
  %v3932 = vpack.c.b16 %v3536, %v3532
  %v3933 = vpack.c.b16 %v3537, %v3533
  %v3934 = vpack.c.b16 %v3542, %v3538
  %v3935 = vpack.c.b16 %v3543, %v3539
  %v3936 = vpack.c.b16 %v3544, %v3540
  %v3937 = vpack.c.b16 %v3545, %v3541
  %v3938 = vpack.c.b16 %v3550, %v3546
  %v3939 = vpack.c.b16 %v3551, %v3547
  %v3940 = vpack.c.b16 %v3552, %v3548
  %v3941 = vpack.c.b16 %v3553, %v3549
  %v3942 = vpack.c.b16 %v3558, %v3554
  %v3943 = vpack.c.b16 %v3559, %v3555
  %v3944 = vpack.c.b16 %v3560, %v3556
  %v3945 = vpack.c.b16 %v3561, %v3557
  %v3946 = vpack.c.b16 %v3566, %v3562
  %v3947 = vpack.c.b16 %v3567, %v3563
  %v3948 = vpack.c.b16 %v3568, %v3564
  %v3949 = vpack.c.b16 %v3569, %v3565
  %v3950 = vpack.c.b16 %v3574, %v3570
  %v3951 = vpack.c.b16 %v3575, %v3571
  %v3952 = vpack.c.b16 %v3576, %v3572
  %v3953 = vpack.c.b16 %v3577, %v3573
  %v3954 = vpack.c.b16 %v3582, %v3578
  %v3955 = vpack.c.b16 %v3583, %v3579
  %v3956 = vpack.c.b16 %v3584, %v3580
  %v3957 = vpack.c.b16 %v3585, %v3581
  %v3958 = vpack.c.b16 %v3590, %v3586
  %v3959 = vpack.c.b16 %v3591, %v3587
  %v3960 = vpack.c.b16 %v3592, %v3588
  %v3961 = vpack.c.b16 %v3593, %v3589
  %v3962 = vpack.c.b16 %v3598, %v3594
  %v3963 = vpack.c.b16 %v3599, %v3595
  %v3964 = vpack.c.b16 %v3600, %v3596
  %v3965 = vpack.c.b16 %v3601, %v3597
  %v3966 = vpack.c.b16 %v3606, %v3602
  %v3967 = vpack.c.b16 %v3607, %v3603
  %v3968 = vpack.c.b16 %v3608, %v3604
  %v3969 = vpack.c.b16 %v3609, %v3605
  %v3970 = vpack.c.b16 %v3614, %v3610
  %v3971 = vpack.c.b16 %v3615, %v3611
  %v3972 = vpack.c.b16 %v3616, %v3612
  %v3973 = vpack.c.b16 %v3617, %v3613
  %v3974 = vpack.c.b16 %v3622, %v3618
  %v3975 = vpack.c.b16 %v3623, %v3619
  %v3976 = vpack.c.b16 %v3624, %v3620
  %v3977 = vpack.c.b16 %v3625, %v3621
  %v3978 = vpack.c.b16 %v3630, %v3626
  %v3979 = vpack.c.b16 %v3631, %v3627
  %v3980 = vpack.c.b16 %v3632, %v3628
  %v3981 = vpack.c.b16 %v3633, %v3629
  %v3982 = vpack.c.b16 %v3638, %v3634
  %v3983 = vpack.c.b16 %v3639, %v3635
  %v3984 = vpack.c.b16 %v3640, %v3636
  %v3985 = vpack.c.b16 %v3641, %v3637
  %v3986 = vpack.c.b16 %v3646, %v3642
  %v3987 = vpack.c.b16 %v3647, %v3643
  %v3988 = vpack.c.b16 %v3648, %v3644
  %v3989 = vpack.c.b16 %v3649, %v3645
  %v3990 = vpack.c.b16 %v3654, %v3650
  %v3991 = vpack.c.b16 %v3655, %v3651
  %v3992 = vpack.c.b16 %v3656, %v3652
  %v3993 = vpack.c.b16 %v3657, %v3653
  %v3994 = vpack.c.b16 %v3662, %v3658
  %v3995 = vpack.c.b16 %v3663, %v3659
  %v3996 = vpack.c.b16 %v3664, %v3660
  %v3997 = vpack.c.b16 %v3665, %v3661
  %v3998 = vpack.c.b16 %v3670, %v3666
  %v3999 = vpack.c.b16 %v3671, %v3667
  %v4000 = vpack.c.b16 %v3672, %v3668
  %v4001 = vpack.c.b16 %v3673, %v3669
  %v4002 = vpack.c.b16 %v3678, %v3674
  %v4003 = vpack.c.b16 %v3679, %v3675
  %v4004 = vpack.c.b16 %v3680, %v3676
  %v4005 = vpack.c.b16 %v3681, %v3677
  %v4006 = vpack.c.b16 %v3686, %v3682
  %v4007 = vpack.c.b16 %v3687, %v3683
  %v4008 = vpack.c.b16 %v3688, %v3684
  %v4009 = vpack.c.b16 %v3689, %v3685
  %v4010 = vpack.c.b16 %v3694, %v3690
  %v4011 = vpack.c.b16 %v3695, %v3691
  %v4012 = vpack.c.b16 %v3696, %v3692
  %v4013 = vpack.c.b16 %v3697, %v3693
  %v4014 = vpack.c.b16 %v3702, %v3698
  %v4015 = vpack.c.b16 %v3703, %v3699
  %v4016 = vpack.c.b16 %v3704, %v3700
  %v4017 = vpack.c.b16 %v3705, %v3701
  %v4018 = vpack.c.b16 %v3710, %v3706
  %v4019 = vpack.c.b16 %v3711, %v3707
  %v4020 = vpack.c.b16 %v3712, %v3708
  %v4021 = vpack.c.b16 %v3713, %v3709
  %v4022 = vpack.c.b16 %v3718, %v3714
  %v4023 = vpack.c.b16 %v3719, %v3715
  %v4024 = vpack.c.b16 %v3720, %v3716
  %v4025 = vpack.c.b16 %v3721, %v3717
  %v4026 = vpack.c.b16 %v3726, %v3722
  %v4027 = vpack.c.b16 %v3727, %v3723
  %v4028 = vpack.c.b16 %v3728, %v3724
  %v4029 = vpack.c.b16 %v3729, %v3725
  %v4030 = vpack.c.b16 %v3734, %v3730
  %v4031 = vpack.c.b16 %v3735, %v3731
  %v4032 = vpack.c.b16 %v3736, %v3732
  %v4033 = vpack.c.b16 %v3737, %v3733
  %v4034 = vpack.c.b16 %v3742, %v3738
  %v4035 = vpack.c.b16 %v3743, %v3739
  %v4036 = vpack.c.b16 %v3744, %v3740
  %v4037 = vpack.c.b16 %v3745, %v3741
  %v4038 = vpack.c.b16 %v3750, %v3746
  %v4039 = vpack.c.b16 %v3751, %v3747
  %v4040 = vpack.c.b16 %v3752, %v3748
  %v4041 = vpack.c.b16 %v3753, %v3749
  %v4042 = vpack.c.b16 %v3758, %v3754
  %v4043 = vpack.c.b16 %v3759, %v3755
  %v4044 = vpack.c.b16 %v3760, %v3756
  %v4045 = vpack.c.b16 %v3761, %v3757
  %v4046 = vpack.c.b16 %v3766, %v3762
  %v4047 = vpack.c.b16 %v3767, %v3763
  %v4048 = vpack.c.b16 %v3768, %v3764
  %v4049 = vpack.c.b16 %v3769, %v3765
  %v4050 = vpack.c.b16 %v3774, %v3770
  %v4051 = vpack.c.b16 %v3775, %v3771
  %v4052 = vpack.c.b16 %v3776, %v3772
  %v4053 = vpack.c.b16 %v3777, %v3773
  %v4054 = vpack.c.b16 %v3782, %v3778
  %v4055 = vpack.c.b16 %v3783, %v3779
  %v4056 = vpack.c.b16 %v3784, %v3780
  %v4057 = vpack.c.b16 %v3785, %v3781
  %v4058 = vpack.c.b16 %v3790, %v3786
  %v4059 = vpack.c.b16 %v3791, %v3787
  %v4060 = vpack.c.b16 %v3792, %v3788
  %v4061 = vpack.c.b16 %v3793, %v3789
  %v4062 = vpack.c.b16 %v3798, %v3794
  %v4063 = vpack.c.b16 %v3799, %v3795
  %v4064 = vpack.c.b16 %v3800, %v3796
  %v4065 = vpack.c.b16 %v3801, %v3797
  %v4066 = vpack.c.b16 %v3806, %v3802
  %v4067 = vpack.c.b16 %v3807, %v3803
  %v4068 = vpack.c.b16 %v3808, %v3804
  %v4069 = vpack.c.b16 %v3809, %v3805
  %v4070 = vpack.c.b16 %v3814, %v3810
  %v4071 = vpack.c.b16 %v3815, %v3811
  %v4072 = vpack.c.b16 %v3816, %v3812
  %v4073 = vpack.c.b16 %v3817, %v3813
  %4330 = vmatprep.subr.bf16.mxu0 %v3847
  %4331 = vmatpush1.bf16.msra.mxu0 %v3846
  %4332 = vmatprep.subr.bf16.mxu0 %v3843
  %4333 = vmatpush1.bf16.msra.mxu0 %v3842
  %4334 = vmatprep.subr.bf16.mxu0 %v3839
  %4335 = vmatpush1.bf16.msra.mxu0 %v3838
  %4336 = vmatprep.subr.bf16.mxu0 %v3835
  %4337 = vmatpush1.bf16.msra.mxu0 %v3834
  %4338 = vmatprep.subr.bf16.mxu0 %v3831
  %4339 = vmatpush1.bf16.msra.mxu0 %v3830
  %4340 = vmatprep.subr.bf16.mxu0 %v3827
  %4341 = vmatpush1.bf16.msra.mxu0 %v3826
  %4342 = vmatprep.subr.bf16.mxu0 %v3823
  %4343 = vmatpush1.bf16.msra.mxu0 %v3822
  %4344 = vmatprep.subr.bf16.mxu0 %v3819
  %4345 = vmatpush1.bf16.msra.mxu0 %v3818
  %4346 = vmatprep.subr.bf16.mxu0 %v3879
  %4347 = vmatpush2.bf16.msra.mxu0 %v3878
  %4348 = vmatprep.subr.bf16.mxu0 %v3875
  %4349 = vmatpush2.bf16.msra.mxu0 %v3874
  %4350 = vmatprep.subr.bf16.mxu0 %v3871
  %4351 = vmatpush2.bf16.msra.mxu0 %v3870
  %4352 = vmatprep.subr.bf16.mxu0 %v3867
  %4353 = vmatpush2.bf16.msra.mxu0 %v3866
  %4354 = vmatprep.subr.bf16.mxu0 %v3863
  %4355 = vmatpush2.bf16.msra.mxu0 %v3862
  %4356 = vmatprep.subr.bf16.mxu0 %v3859
  %4357 = vmatpush2.bf16.msra.mxu0 %v3858
  %4358 = vmatprep.subr.bf16.mxu0 %v3855
  %4359 = vmatpush2.bf16.msra.mxu0 %v3854
  %4360 = vmatprep.subr.bf16.mxu0 %v3851
  %4361 = vmatpush2.bf16.msra.mxu0 %v3850
  %4362 = vmatprep.mubr.bf16.mxu0 %v2765
  %4363 = vmatmul.mubr.bf16.gmra.mxu0 %v2764
  %v4364 = vpop.f32.mrf.mxu0
  %v4365 = vadd.f32 %v3033, %v4364
  %v4366 = vpop.f32.mrf.mxu0
  %v4367 = vadd.f32 %v3037, %v4366
  %v4368 = vpop.f32.mrf.mxu0
  %v4369 = vadd.f32 %v3033, %v4368
  %v4370 = vpop.f32.mrf.mxu0
  %v4371 = vadd.f32 %v3037, %v4370
  %4372 = vdwg.mxu0
  %4373 = vmatprep.subr.bf16.mxu0 %v3911
  %4374 = vmatpush1.bf16.msra.mxu0 %v3910
  %4375 = vmatprep.subr.bf16.mxu0 %v3907
  %4376 = vmatpush1.bf16.msra.mxu0 %v3906
  %4377 = vmatprep.subr.bf16.mxu0 %v3903
  %4378 = vmatpush1.bf16.msra.mxu0 %v3902
  %4379 = vmatprep.subr.bf16.mxu0 %v3899
  %4380 = vmatpush1.bf16.msra.mxu0 %v3898
  %4381 = vmatprep.subr.bf16.mxu0 %v3895
  %4382 = vmatpush1.bf16.msra.mxu0 %v3894
  %4383 = vmatprep.subr.bf16.mxu0 %v3891
  %4384 = vmatpush1.bf16.msra.mxu0 %v3890
  %4385 = vmatprep.subr.bf16.mxu0 %v3887
  %4386 = vmatpush1.bf16.msra.mxu0 %v3886
  %4387 = vmatprep.subr.bf16.mxu0 %v3883
  %4388 = vmatpush1.bf16.msra.mxu0 %v3882
  %4389 = vmatprep.subr.bf16.mxu0 %v3943
  %4390 = vmatpush2.bf16.msra.mxu0 %v3942
  %4391 = vmatprep.subr.bf16.mxu0 %v3939
  %4392 = vmatpush2.bf16.msra.mxu0 %v3938
  %4393 = vmatprep.subr.bf16.mxu0 %v3935
  %4394 = vmatpush2.bf16.msra.mxu0 %v3934
  %4395 = vmatprep.subr.bf16.mxu0 %v3931
  %4396 = vmatpush2.bf16.msra.mxu0 %v3930
  %4397 = vmatprep.subr.bf16.mxu0 %v3927
  %4398 = vmatpush2.bf16.msra.mxu0 %v3926
  %4399 = vmatprep.subr.bf16.mxu0 %v3923
  %4400 = vmatpush2.bf16.msra.mxu0 %v3922
  %4401 = vmatprep.subr.bf16.mxu0 %v3919
  %4402 = vmatpush2.bf16.msra.mxu0 %v3918
  %4403 = vmatprep.subr.bf16.mxu0 %v3915
  %4404 = vmatpush2.bf16.msra.mxu0 %v3914
  %4405 = vmatprep.mubr.bf16.mxu0 %v2767
  %4406 = vmatmul.mubr.bf16.gmra.mxu0 %v2766
  %v4407 = vpop.f32.mrf.mxu0
  %v4408 = vadd.f32 %v4365, %v4407
  %v4409 = vpop.f32.mrf.mxu0
  %v4410 = vadd.f32 %v4367, %v4409
  %v4411 = vpop.f32.mrf.mxu0
  %v4412 = vadd.f32 %v4369, %v4411
  %v4413 = vpop.f32.mrf.mxu0
  %v4414 = vadd.f32 %v4371, %v4413
  %4415 = vdwg.mxu0
  %4416 = vmatprep.subr.bf16.mxu0 %v3975
  %4417 = vmatpush1.bf16.msra.mxu0 %v3974
  %4418 = vmatprep.subr.bf16.mxu0 %v3971
  %4419 = vmatpush1.bf16.msra.mxu0 %v3970
  %4420 = vmatprep.subr.bf16.mxu0 %v3967
  %4421 = vmatpush1.bf16.msra.mxu0 %v3966
  %4422 = vmatprep.subr.bf16.mxu0 %v3963
  %4423 = vmatpush1.bf16.msra.mxu0 %v3962
  %4424 = vmatprep.subr.bf16.mxu0 %v3959
  %4425 = vmatpush1.bf16.msra.mxu0 %v3958
  %4426 = vmatprep.subr.bf16.mxu0 %v3955
  %4427 = vmatpush1.bf16.msra.mxu0 %v3954
  %4428 = vmatprep.subr.bf16.mxu0 %v3951
  %4429 = vmatpush1.bf16.msra.mxu0 %v3950
  %4430 = vmatprep.subr.bf16.mxu0 %v3947
  %4431 = vmatpush1.bf16.msra.mxu0 %v3946
  %4432 = vmatprep.subr.bf16.mxu0 %v4007
  %4433 = vmatpush2.bf16.msra.mxu0 %v4006
  %4434 = vmatprep.subr.bf16.mxu0 %v4003
  %4435 = vmatpush2.bf16.msra.mxu0 %v4002
  %4436 = vmatprep.subr.bf16.mxu0 %v3999
  %4437 = vmatpush2.bf16.msra.mxu0 %v3998
  %4438 = vmatprep.subr.bf16.mxu0 %v3995
  %4439 = vmatpush2.bf16.msra.mxu0 %v3994
  %4440 = vmatprep.subr.bf16.mxu0 %v3991
  %4441 = vmatpush2.bf16.msra.mxu0 %v3990
  %4442 = vmatprep.subr.bf16.mxu0 %v3987
  %4443 = vmatpush2.bf16.msra.mxu0 %v3986
  %4444 = vmatprep.subr.bf16.mxu0 %v3983
  %4445 = vmatpush2.bf16.msra.mxu0 %v3982
  %4446 = vmatprep.subr.bf16.mxu0 %v3979
  %4447 = vmatpush2.bf16.msra.mxu0 %v3978
  %4448 = vmatprep.mubr.bf16.mxu0 %v2769
  %4449 = vmatmul.mubr.bf16.gmra.mxu0 %v2768
  %v4450 = vpop.f32.mrf.mxu0
  %v4451 = vadd.f32 %v4408, %v4450
  %v4452 = vpop.f32.mrf.mxu0
  %v4453 = vadd.f32 %v4410, %v4452
  %v4454 = vpop.f32.mrf.mxu0
  %v4455 = vadd.f32 %v4412, %v4454
  %v4456 = vpop.f32.mrf.mxu0
  %v4457 = vadd.f32 %v4414, %v4456
  %4458 = vdwg.mxu0
  %4459 = vmatprep.subr.bf16.mxu0 %v4039
  %4460 = vmatpush1.bf16.msra.mxu0 %v4038
  %4461 = vmatprep.subr.bf16.mxu0 %v4035
  %4462 = vmatpush1.bf16.msra.mxu0 %v4034
  %4463 = vmatprep.subr.bf16.mxu0 %v4031
  %4464 = vmatpush1.bf16.msra.mxu0 %v4030
  %4465 = vmatprep.subr.bf16.mxu0 %v4027
  %4466 = vmatpush1.bf16.msra.mxu0 %v4026
  %4467 = vmatprep.subr.bf16.mxu0 %v4023
  %4468 = vmatpush1.bf16.msra.mxu0 %v4022
  %4469 = vmatprep.subr.bf16.mxu0 %v4019
  %4470 = vmatpush1.bf16.msra.mxu0 %v4018
  %4471 = vmatprep.subr.bf16.mxu0 %v4015
  %4472 = vmatpush1.bf16.msra.mxu0 %v4014
  %4473 = vmatprep.subr.bf16.mxu0 %v4011
  %4474 = vmatpush1.bf16.msra.mxu0 %v4010
  %4475 = vmatprep.subr.bf16.mxu0 %v4071
  %4476 = vmatpush2.bf16.msra.mxu0 %v4070
  %4477 = vmatprep.subr.bf16.mxu0 %v4067
  %4478 = vmatpush2.bf16.msra.mxu0 %v4066
  %4479 = vmatprep.subr.bf16.mxu0 %v4063
  %4480 = vmatpush2.bf16.msra.mxu0 %v4062
  %4481 = vmatprep.subr.bf16.mxu0 %v4059
  %4482 = vmatpush2.bf16.msra.mxu0 %v4058
  %4483 = vmatprep.subr.bf16.mxu0 %v4055
  %4484 = vmatpush2.bf16.msra.mxu0 %v4054
  %4485 = vmatprep.subr.bf16.mxu0 %v4051
  %4486 = vmatpush2.bf16.msra.mxu0 %v4050
  %4487 = vmatprep.subr.bf16.mxu0 %v4047
  %4488 = vmatpush2.bf16.msra.mxu0 %v4046
  %4489 = vmatprep.subr.bf16.mxu0 %v4043
  %4490 = vmatpush2.bf16.msra.mxu0 %v4042
  %4491 = vmatprep.mubr.bf16.mxu0 %v2771
  %4492 = vmatmul.mubr.bf16.gmra.mxu0 %v2770
  %v4493 = vpop.f32.mrf.mxu0
  %v4494 = vadd.f32 %v4451, %v4493
  %v4495 = vpop.f32.mrf.mxu0
  %v4496 = vadd.f32 %v4453, %v4495
  %v4497 = vpop.f32.mrf.mxu0
  %v4498 = vadd.f32 %v4455, %v4497
  %v4499 = vpop.f32.mrf.mxu0
  %v4500 = vadd.f32 %v4457, %v4499
  %4501 = vdwg.mxu0
  %4502 = vmatprep.subr.bf16.mxu0 %v3849
  %4503 = vmatpush1.bf16.msra.mxu0 %v3848
  %4504 = vmatprep.subr.bf16.mxu0 %v3845
  %4505 = vmatpush1.bf16.msra.mxu0 %v3844
  %4506 = vmatprep.subr.bf16.mxu0 %v3841
  %4507 = vmatpush1.bf16.msra.mxu0 %v3840
  %4508 = vmatprep.subr.bf16.mxu0 %v3837
  %4509 = vmatpush1.bf16.msra.mxu0 %v3836
  %4510 = vmatprep.subr.bf16.mxu0 %v3833
  %4511 = vmatpush1.bf16.msra.mxu0 %v3832
  %4512 = vmatprep.subr.bf16.mxu0 %v3829
  %4513 = vmatpush1.bf16.msra.mxu0 %v3828
  %4514 = vmatprep.subr.bf16.mxu0 %v3825
  %4515 = vmatpush1.bf16.msra.mxu0 %v3824
  %4516 = vmatprep.subr.bf16.mxu0 %v3821
  %4517 = vmatpush1.bf16.msra.mxu0 %v3820
  %4518 = vmatprep.subr.bf16.mxu0 %v3881
  %4519 = vmatpush2.bf16.msra.mxu0 %v3880
  %4520 = vmatprep.subr.bf16.mxu0 %v3877
  %4521 = vmatpush2.bf16.msra.mxu0 %v3876
  %4522 = vmatprep.subr.bf16.mxu0 %v3873
  %4523 = vmatpush2.bf16.msra.mxu0 %v3872
  %4524 = vmatprep.subr.bf16.mxu0 %v3869
  %4525 = vmatpush2.bf16.msra.mxu0 %v3868
  %4526 = vmatprep.subr.bf16.mxu0 %v3865
  %4527 = vmatpush2.bf16.msra.mxu0 %v3864
  %4528 = vmatprep.subr.bf16.mxu0 %v3861
  %4529 = vmatpush2.bf16.msra.mxu0 %v3860
  %4530 = vmatprep.subr.bf16.mxu0 %v3857
  %4531 = vmatpush2.bf16.msra.mxu0 %v3856
  %4532 = vmatprep.subr.bf16.mxu0 %v3853
  %4533 = vmatpush2.bf16.msra.mxu0 %v3852
  %4534 = vmatprep.mubr.bf16.mxu0 %v2765
  %4535 = vmatmul.mubr.bf16.gmra.mxu0 %v2764
  %v4536 = vpop.f32.mrf.mxu0
  %v4537 = vadd.f32 %v3041, %v4536
  %v4538 = vpop.f32.mrf.mxu0
  %v4539 = vadd.f32 %v3045, %v4538
  %v4540 = vpop.f32.mrf.mxu0
  %v4541 = vadd.f32 %v3041, %v4540
  %v4542 = vpop.f32.mrf.mxu0
  %v4543 = vadd.f32 %v3045, %v4542
  %4544 = vdwg.mxu0
  %4545 = vmatprep.subr.bf16.mxu0 %v3913
  %4546 = vmatpush1.bf16.msra.mxu0 %v3912
  %4547 = vmatprep.subr.bf16.mxu0 %v3909
  %4548 = vmatpush1.bf16.msra.mxu0 %v3908
  %4549 = vmatprep.subr.bf16.mxu0 %v3905
  %4550 = vmatpush1.bf16.msra.mxu0 %v3904
  %4551 = vmatprep.subr.bf16.mxu0 %v3901
  %4552 = vmatpush1.bf16.msra.mxu0 %v3900
  %4553 = vmatprep.subr.bf16.mxu0 %v3897
  %4554 = vmatpush1.bf16.msra.mxu0 %v3896
  %4555 = vmatprep.subr.bf16.mxu0 %v3893
  %4556 = vmatpush1.bf16.msra.mxu0 %v3892
  %4557 = vmatprep.subr.bf16.mxu0 %v3889
  %4558 = vmatpush1.bf16.msra.mxu0 %v3888
  %4559 = vmatprep.subr.bf16.mxu0 %v3885
  %4560 = vmatpush1.bf16.msra.mxu0 %v3884
  %4561 = vmatprep.subr.bf16.mxu0 %v3945
  %4562 = vmatpush2.bf16.msra.mxu0 %v3944
  %4563 = vmatprep.subr.bf16.mxu0 %v3941
  %4564 = vmatpush2.bf16.msra.mxu0 %v3940
  %4565 = vmatprep.subr.bf16.mxu0 %v3937
  %4566 = vmatpush2.bf16.msra.mxu0 %v3936
  %4567 = vmatprep.subr.bf16.mxu0 %v3933
  %4568 = vmatpush2.bf16.msra.mxu0 %v3932
  %4569 = vmatprep.subr.bf16.mxu0 %v3929
  %4570 = vmatpush2.bf16.msra.mxu0 %v3928
  %4571 = vmatprep.subr.bf16.mxu0 %v3925
  %4572 = vmatpush2.bf16.msra.mxu0 %v3924
  %4573 = vmatprep.subr.bf16.mxu0 %v3921
  %4574 = vmatpush2.bf16.msra.mxu0 %v3920
  %4575 = vmatprep.subr.bf16.mxu0 %v3917
  %4576 = vmatpush2.bf16.msra.mxu0 %v3916
  %4577 = vmatprep.mubr.bf16.mxu0 %v2767
  %4578 = vmatmul.mubr.bf16.gmra.mxu0 %v2766
  %v4579 = vpop.f32.mrf.mxu0
  %v4580 = vadd.f32 %v4537, %v4579
  %v4581 = vpop.f32.mrf.mxu0
  %v4582 = vadd.f32 %v4539, %v4581
  %v4583 = vpop.f32.mrf.mxu0
  %v4584 = vadd.f32 %v4541, %v4583
  %v4585 = vpop.f32.mrf.mxu0
  %v4586 = vadd.f32 %v4543, %v4585
  %4587 = vdwg.mxu0
  %4588 = vmatprep.subr.bf16.mxu0 %v3977
  %4589 = vmatpush1.bf16.msra.mxu0 %v3976
  %4590 = vmatprep.subr.bf16.mxu0 %v3973
  %4591 = vmatpush1.bf16.msra.mxu0 %v3972
  %4592 = vmatprep.subr.bf16.mxu0 %v3969
  %4593 = vmatpush1.bf16.msra.mxu0 %v3968
  %4594 = vmatprep.subr.bf16.mxu0 %v3965
  %4595 = vmatpush1.bf16.msra.mxu0 %v3964
  %4596 = vmatprep.subr.bf16.mxu0 %v3961
  %4597 = vmatpush1.bf16.msra.mxu0 %v3960
  %4598 = vmatprep.subr.bf16.mxu0 %v3957
  %4599 = vmatpush1.bf16.msra.mxu0 %v3956
  %4600 = vmatprep.subr.bf16.mxu0 %v3953
  %4601 = vmatpush1.bf16.msra.mxu0 %v3952
  %4602 = vmatprep.subr.bf16.mxu0 %v3949
  %4603 = vmatpush1.bf16.msra.mxu0 %v3948
  %4604 = vmatprep.subr.bf16.mxu0 %v4009
  %4605 = vmatpush2.bf16.msra.mxu0 %v4008
  %4606 = vmatprep.subr.bf16.mxu0 %v4005
  %4607 = vmatpush2.bf16.msra.mxu0 %v4004
  %4608 = vmatprep.subr.bf16.mxu0 %v4001
  %4609 = vmatpush2.bf16.msra.mxu0 %v4000
  %4610 = vmatprep.subr.bf16.mxu0 %v3997
  %4611 = vmatpush2.bf16.msra.mxu0 %v3996
  %4612 = vmatprep.subr.bf16.mxu0 %v3993
  %4613 = vmatpush2.bf16.msra.mxu0 %v3992
  %4614 = vmatprep.subr.bf16.mxu0 %v3989
  %4615 = vmatpush2.bf16.msra.mxu0 %v3988
  %4616 = vmatprep.subr.bf16.mxu0 %v3985
  %4617 = vmatpush2.bf16.msra.mxu0 %v3984
  %4618 = vmatprep.subr.bf16.mxu0 %v3981
  %4619 = vmatpush2.bf16.msra.mxu0 %v3980
  %4620 = vmatprep.mubr.bf16.mxu0 %v2769
  %4621 = vmatmul.mubr.bf16.gmra.mxu0 %v2768
  %v4622 = vpop.f32.mrf.mxu0
  %v4623 = vadd.f32 %v4580, %v4622
  %v4624 = vpop.f32.mrf.mxu0
  %v4625 = vadd.f32 %v4582, %v4624
  %v4626 = vpop.f32.mrf.mxu0
  %v4627 = vadd.f32 %v4584, %v4626
  %v4628 = vpop.f32.mrf.mxu0
  %v4629 = vadd.f32 %v4586, %v4628
  %4630 = vdwg.mxu0
  %4631 = vmatprep.subr.bf16.mxu0 %v4041
  %4632 = vmatpush1.bf16.msra.mxu0 %v4040
  %4633 = vmatprep.subr.bf16.mxu0 %v4037
  %4634 = vmatpush1.bf16.msra.mxu0 %v4036
  %4635 = vmatprep.subr.bf16.mxu0 %v4033
  %4636 = vmatpush1.bf16.msra.mxu0 %v4032
  %4637 = vmatprep.subr.bf16.mxu0 %v4029
  %4638 = vmatpush1.bf16.msra.mxu0 %v4028
  %4639 = vmatprep.subr.bf16.mxu0 %v4025
  %4640 = vmatpush1.bf16.msra.mxu0 %v4024
  %4641 = vmatprep.subr.bf16.mxu0 %v4021
  %4642 = vmatpush1.bf16.msra.mxu0 %v4020
  %4643 = vmatprep.subr.bf16.mxu0 %v4017
  %4644 = vmatpush1.bf16.msra.mxu0 %v4016
  %4645 = vmatprep.subr.bf16.mxu0 %v4013
  %4646 = vmatpush1.bf16.msra.mxu0 %v4012
  %4647 = vmatprep.subr.bf16.mxu0 %v4073
  %4648 = vmatpush2.bf16.msra.mxu0 %v4072
  %4649 = vmatprep.subr.bf16.mxu0 %v4069
  %4650 = vmatpush2.bf16.msra.mxu0 %v4068
  %4651 = vmatprep.subr.bf16.mxu0 %v4065
  %4652 = vmatpush2.bf16.msra.mxu0 %v4064
  %4653 = vmatprep.subr.bf16.mxu0 %v4061
  %4654 = vmatpush2.bf16.msra.mxu0 %v4060
  %4655 = vmatprep.subr.bf16.mxu0 %v4057
  %4656 = vmatpush2.bf16.msra.mxu0 %v4056
  %4657 = vmatprep.subr.bf16.mxu0 %v4053
  %4658 = vmatpush2.bf16.msra.mxu0 %v4052
  %4659 = vmatprep.subr.bf16.mxu0 %v4049
  %4660 = vmatpush2.bf16.msra.mxu0 %v4048
  %4661 = vmatprep.subr.bf16.mxu0 %v4045
  %4662 = vmatpush2.bf16.msra.mxu0 %v4044
  %4663 = vmatprep.mubr.bf16.mxu0 %v2771
  %4664 = vmatmul.mubr.bf16.gmra.mxu0 %v2770
  %v4665 = vpop.f32.mrf.mxu0
  %v4666 = vadd.f32 %v4623, %v4665
  %v4667 = vpop.f32.mrf.mxu0
  %v4668 = vadd.f32 %v4625, %v4667
  %v4669 = vpop.f32.mrf.mxu0
  %v4670 = vadd.f32 %v4627, %v4669
  %v4671 = vpop.f32.mrf.mxu0
  %v4672 = vadd.f32 %v4629, %v4671
  %4673 = vdwg.mxu0
  %v4674 = vmax.f32 %v4494, 0.0
  %v4675 = vmax.f32 %v4496, 0.0
  %v4676 = vmax.f32 %v4666, 0.0
  %v4677 = vmax.f32 %v4668, 0.0
  %v4678 = vmax.f32 %v4498, 0.0
  %v4679 = vmax.f32 %v4500, 0.0
  %v4680 = vmax.f32 %v4670, 0.0
  %v4681 = vmax.f32 %v4672, 0.0
  %v4682 = vpack.c.bf16 %v4678, %v4674
  %v4683 = vpack.c.bf16 %v4679, %v4675
  %v4684 = vpack.c.bf16 %v4680, %v4676
  %v4685 = vpack.c.bf16 %v4681, %v4677
  %v4686 = vld [vmem:[%s6] sm:$0xff]
  %v4687 = vld [vmem:[%s6 + $0x8] sm:$0xff]
  %v4688 = vld [vmem:[%s6 + $0x10] sm:$0xff]
  %v4689 = vld [vmem:[%s6 + $0x18] sm:$0xff]
  %v4690 = vld [vmem:[%s6 + $0x20] sm:$0xff]
  %v4691 = vld [vmem:[%s6 + $0x28] sm:$0xff]
  %v4692 = vld [vmem:[%s6 + $0x30] sm:$0xff]
  %v4693 = vld [vmem:[%s6 + $0x38] sm:$0xff]
  %v4694 = vld [vmem:[%s6 + $0x40] sm:$0xff]
  %v4695 = vld [vmem:[%s6 + $0x48] sm:$0xff]
  %v4696 = vld [vmem:[%s6 + $0x50] sm:$0xff]
  %v4697 = vld [vmem:[%s6 + $0x58] sm:$0xff]
  %v4698 = vld [vmem:[%s6 + $0x60] sm:$0xff]
  %v4699 = vld [vmem:[%s6 + $0x68] sm:$0xff]
  %v4700 = vld [vmem:[%s6 + $0x70] sm:$0xff]
  %v4701 = vld [vmem:[%s6 + $0x78] sm:$0xff]
  %v4702 = vld [vmem:[%s6 + $0x80] sm:$0xff]
  %v4703 = vld [vmem:[%s6 + $0x88] sm:$0xff]
  %v4704 = vld [vmem:[%s6 + $0x90] sm:$0xff]
  %v4705 = vld [vmem:[%s6 + $0x98] sm:$0xff]
  %v4706 = vld [vmem:[%s6 + $0xa0] sm:$0xff]
  %v4707 = vld [vmem:[%s6 + $0xa8] sm:$0xff]
  %v4708 = vld [vmem:[%s6 + $0xb0] sm:$0xff]
  %v4709 = vld [vmem:[%s6 + $0xb8] sm:$0xff]
  %v4710 = vld [vmem:[%s6 + $0xc0] sm:$0xff]
  %v4711 = vld [vmem:[%s6 + $0xc8] sm:$0xff]
  %v4712 = vld [vmem:[%s6 + $0xd0] sm:$0xff]
  %v4713 = vld [vmem:[%s6 + $0xd8] sm:$0xff]
  %v4714 = vld [vmem:[%s6 + $0xe0] sm:$0xff]
  %v4715 = vld [vmem:[%s6 + $0xe8] sm:$0xff]
  %v4716 = vld [vmem:[%s6 + $0xf0] sm:$0xff]
  %v4717 = vld [vmem:[%s6 + $0xf8] sm:$0xff]
  %v4718 = vld [vmem:[%s6 + $0x100] sm:$0xff]
  %v4719 = vld [vmem:[%s6 + $0x108] sm:$0xff]
  %v4720 = vld [vmem:[%s6 + $0x110] sm:$0xff]
  %v4721 = vld [vmem:[%s6 + $0x118] sm:$0xff]
  %v4722 = vld [vmem:[%s6 + $0x120] sm:$0xff]
  %v4723 = vld [vmem:[%s6 + $0x128] sm:$0xff]
  %v4724 = vld [vmem:[%s6 + $0x130] sm:$0xff]
  %v4725 = vld [vmem:[%s6 + $0x138] sm:$0xff]
  %v4726 = vld [vmem:[%s6 + $0x140] sm:$0xff]
  %v4727 = vld [vmem:[%s6 + $0x148] sm:$0xff]
  %v4728 = vld [vmem:[%s6 + $0x150] sm:$0xff]
  %v4729 = vld [vmem:[%s6 + $0x158] sm:$0xff]
  %v4730 = vld [vmem:[%s6 + $0x160] sm:$0xff]
  %v4731 = vld [vmem:[%s6 + $0x168] sm:$0xff]
  %v4732 = vld [vmem:[%s6 + $0x170] sm:$0xff]
  %v4733 = vld [vmem:[%s6 + $0x178] sm:$0xff]
  %v4734 = vld [vmem:[%s6 + $0x180] sm:$0xff]
  %v4735 = vld [vmem:[%s6 + $0x188] sm:$0xff]
  %v4736 = vld [vmem:[%s6 + $0x190] sm:$0xff]
  %v4737 = vld [vmem:[%s6 + $0x198] sm:$0xff]
  %v4738 = vld [vmem:[%s6 + $0x1a0] sm:$0xff]
  %v4739 = vld [vmem:[%s6 + $0x1a8] sm:$0xff]
  %v4740 = vld [vmem:[%s6 + $0x1b0] sm:$0xff]
  %v4741 = vld [vmem:[%s6 + $0x1b8] sm:$0xff]
  %v4742 = vld [vmem:[%s6 + $0x1c0] sm:$0xff]
  %v4743 = vld [vmem:[%s6 + $0x1c8] sm:$0xff]
  %v4744 = vld [vmem:[%s6 + $0x1d0] sm:$0xff]
  %v4745 = vld [vmem:[%s6 + $0x1d8] sm:$0xff]
  %v4746 = vld [vmem:[%s6 + $0x1e0] sm:$0xff]
  %v4747 = vld [vmem:[%s6 + $0x1e8] sm:$0xff]
  %v4748 = vld [vmem:[%s6 + $0x1f0] sm:$0xff]
  %v4749 = vld [vmem:[%s6 + $0x1f8] sm:$0xff]
  %v4750 = vld [vmem:[%s11 + $0x13] sm:$0x3]
  %v4752 = vlaneseq
  %v4753 = vshrl.u32 %v4752, 7
  %v4754 = vsub.s32 0, %v4753
  %v4755 = vrot.slane %v4750, %v4754
  %v4756 = vlaneseq
  %v4757 = vshrl.u32 %v4756, 7
  %v4758 = vsub.s32 1, %v4757
  %v4759 = vrot.slane %v4750, %v4758
  %v4826 = vunpack.c.l.b16 %v4686
  %v4827 = vunpack.c.h.b16 %v4686
  %v4828 = vunpack.c.l.b16 %v4687
  %v4829 = vunpack.c.h.b16 %v4687
  %v4830 = vunpack.c.l.b16 %v4688
  %v4831 = vunpack.c.h.b16 %v4688
  %v4832 = vunpack.c.l.b16 %v4689
  %v4833 = vunpack.c.h.b16 %v4689
  %v4834 = vunpack.c.l.b16 %v4690
  %v4835 = vunpack.c.h.b16 %v4690
  %v4836 = vunpack.c.l.b16 %v4691
  %v4837 = vunpack.c.h.b16 %v4691
  %v4838 = vunpack.c.l.b16 %v4692
  %v4839 = vunpack.c.h.b16 %v4692
  %v4840 = vunpack.c.l.b16 %v4693
  %v4841 = vunpack.c.h.b16 %v4693
  %v4842 = vunpack.c.l.b16 %v4694
  %v4843 = vunpack.c.h.b16 %v4694
  %v4844 = vunpack.c.l.b16 %v4695
  %v4845 = vunpack.c.h.b16 %v4695
  %v4846 = vunpack.c.l.b16 %v4696
  %v4847 = vunpack.c.h.b16 %v4696
  %v4848 = vunpack.c.l.b16 %v4697
  %v4849 = vunpack.c.h.b16 %v4697
  %v4850 = vunpack.c.l.b16 %v4698
  %v4851 = vunpack.c.h.b16 %v4698
  %v4852 = vunpack.c.l.b16 %v4699
  %v4853 = vunpack.c.h.b16 %v4699
  %v4854 = vunpack.c.l.b16 %v4700
  %v4855 = vunpack.c.h.b16 %v4700
  %v4856 = vunpack.c.l.b16 %v4701
  %v4857 = vunpack.c.h.b16 %v4701
  %v4858 = vunpack.c.l.b16 %v4702
  %v4859 = vunpack.c.h.b16 %v4702
  %v4860 = vunpack.c.l.b16 %v4703
  %v4861 = vunpack.c.h.b16 %v4703
  %v4862 = vunpack.c.l.b16 %v4704
  %v4863 = vunpack.c.h.b16 %v4704
  %v4864 = vunpack.c.l.b16 %v4705
  %v4865 = vunpack.c.h.b16 %v4705
  %v4866 = vunpack.c.l.b16 %v4706
  %v4867 = vunpack.c.h.b16 %v4706
  %v4868 = vunpack.c.l.b16 %v4707
  %v4869 = vunpack.c.h.b16 %v4707
  %v4870 = vunpack.c.l.b16 %v4708
  %v4871 = vunpack.c.h.b16 %v4708
  %v4872 = vunpack.c.l.b16 %v4709
  %v4873 = vunpack.c.h.b16 %v4709
  %v4874 = vunpack.c.l.b16 %v4710
  %v4875 = vunpack.c.h.b16 %v4710
  %v4876 = vunpack.c.l.b16 %v4711
  %v4877 = vunpack.c.h.b16 %v4711
  %v4878 = vunpack.c.l.b16 %v4712
  %v4879 = vunpack.c.h.b16 %v4712
  %v4880 = vunpack.c.l.b16 %v4713
  %v4881 = vunpack.c.h.b16 %v4713
  %v4882 = vunpack.c.l.b16 %v4714
  %v4883 = vunpack.c.h.b16 %v4714
  %v4884 = vunpack.c.l.b16 %v4715
  %v4885 = vunpack.c.h.b16 %v4715
  %v4886 = vunpack.c.l.b16 %v4716
  %v4887 = vunpack.c.h.b16 %v4716
  %v4888 = vunpack.c.l.b16 %v4717
  %v4889 = vunpack.c.h.b16 %v4717
  %v4890 = vunpack.c.l.b16 %v4718
  %v4891 = vunpack.c.h.b16 %v4718
  %v4892 = vunpack.c.l.b16 %v4719
  %v4893 = vunpack.c.h.b16 %v4719
  %v4894 = vunpack.c.l.b16 %v4720
  %v4895 = vunpack.c.h.b16 %v4720
  %v4896 = vunpack.c.l.b16 %v4721
  %v4897 = vunpack.c.h.b16 %v4721
  %v4898 = vunpack.c.l.b16 %v4722
  %v4899 = vunpack.c.h.b16 %v4722
  %v4900 = vunpack.c.l.b16 %v4723
  %v4901 = vunpack.c.h.b16 %v4723
  %v4902 = vunpack.c.l.b16 %v4724
  %v4903 = vunpack.c.h.b16 %v4724
  %v4904 = vunpack.c.l.b16 %v4725
  %v4905 = vunpack.c.h.b16 %v4725
  %v4906 = vunpack.c.l.b16 %v4726
  %v4907 = vunpack.c.h.b16 %v4726
  %v4908 = vunpack.c.l.b16 %v4727
  %v4909 = vunpack.c.h.b16 %v4727
  %v4910 = vunpack.c.l.b16 %v4728
  %v4911 = vunpack.c.h.b16 %v4728
  %v4912 = vunpack.c.l.b16 %v4729
  %v4913 = vunpack.c.h.b16 %v4729
  %v4914 = vunpack.c.l.b16 %v4730
  %v4915 = vunpack.c.h.b16 %v4730
  %v4916 = vunpack.c.l.b16 %v4731
  %v4917 = vunpack.c.h.b16 %v4731
  %v4918 = vunpack.c.l.b16 %v4732
  %v4919 = vunpack.c.h.b16 %v4732
  %v4920 = vunpack.c.l.b16 %v4733
  %v4921 = vunpack.c.h.b16 %v4733
  %v4922 = vunpack.c.l.b16 %v4734
  %v4923 = vunpack.c.h.b16 %v4734
  %v4924 = vunpack.c.l.b16 %v4735
  %v4925 = vunpack.c.h.b16 %v4735
  %v4926 = vunpack.c.l.b16 %v4736
  %v4927 = vunpack.c.h.b16 %v4736
  %v4928 = vunpack.c.l.b16 %v4737
  %v4929 = vunpack.c.h.b16 %v4737
  %v4930 = vunpack.c.l.b16 %v4738
  %v4931 = vunpack.c.h.b16 %v4738
  %v4932 = vunpack.c.l.b16 %v4739
  %v4933 = vunpack.c.h.b16 %v4739
  %v4934 = vunpack.c.l.b16 %v4740
  %v4935 = vunpack.c.h.b16 %v4740
  %v4936 = vunpack.c.l.b16 %v4741
  %v4937 = vunpack.c.h.b16 %v4741
  %v4938 = vunpack.c.l.b16 %v4742
  %v4939 = vunpack.c.h.b16 %v4742
  %v4940 = vunpack.c.l.b16 %v4743
  %v4941 = vunpack.c.h.b16 %v4743
  %v4942 = vunpack.c.l.b16 %v4744
  %v4943 = vunpack.c.h.b16 %v4744
  %v4944 = vunpack.c.l.b16 %v4745
  %v4945 = vunpack.c.h.b16 %v4745
  %v4946 = vunpack.c.l.b16 %v4746
  %v4947 = vunpack.c.h.b16 %v4746
  %v4948 = vunpack.c.l.b16 %v4747
  %v4949 = vunpack.c.h.b16 %v4747
  %v4950 = vunpack.c.l.b16 %v4748
  %v4951 = vunpack.c.h.b16 %v4748
  %v4952 = vunpack.c.l.b16 %v4749
  %v4953 = vunpack.c.h.b16 %v4749
  %v4954 = vpack.c.b16 %v4828, %v4826
  %v4955 = vpack.c.b16 %v4829, %v4827
  %v4956 = vpack.c.b16 %v4832, %v4830
  %v4957 = vpack.c.b16 %v4833, %v4831
  %v4958 = vpack.c.b16 %v4836, %v4834
  %v4959 = vpack.c.b16 %v4837, %v4835
  %v4960 = vpack.c.b16 %v4840, %v4838
  %v4961 = vpack.c.b16 %v4841, %v4839
  %v4962 = vpack.c.b16 %v4844, %v4842
  %v4963 = vpack.c.b16 %v4845, %v4843
  %v4964 = vpack.c.b16 %v4848, %v4846
  %v4965 = vpack.c.b16 %v4849, %v4847
  %v4966 = vpack.c.b16 %v4852, %v4850
  %v4967 = vpack.c.b16 %v4853, %v4851
  %v4968 = vpack.c.b16 %v4856, %v4854
  %v4969 = vpack.c.b16 %v4857, %v4855
  %v4970 = vpack.c.b16 %v4860, %v4858
  %v4971 = vpack.c.b16 %v4861, %v4859
  %v4972 = vpack.c.b16 %v4864, %v4862
  %v4973 = vpack.c.b16 %v4865, %v4863
  %v4974 = vpack.c.b16 %v4868, %v4866
  %v4975 = vpack.c.b16 %v4869, %v4867
  %v4976 = vpack.c.b16 %v4872, %v4870
  %v4977 = vpack.c.b16 %v4873, %v4871
  %v4978 = vpack.c.b16 %v4876, %v4874
  %v4979 = vpack.c.b16 %v4877, %v4875
  %v4980 = vpack.c.b16 %v4880, %v4878
  %v4981 = vpack.c.b16 %v4881, %v4879
  %v4982 = vpack.c.b16 %v4884, %v4882
  %v4983 = vpack.c.b16 %v4885, %v4883
  %v4984 = vpack.c.b16 %v4888, %v4886
  %v4985 = vpack.c.b16 %v4889, %v4887
  %v4986 = vpack.c.b16 %v4892, %v4890
  %v4987 = vpack.c.b16 %v4893, %v4891
  %v4988 = vpack.c.b16 %v4896, %v4894
  %v4989 = vpack.c.b16 %v4897, %v4895
  %v4990 = vpack.c.b16 %v4900, %v4898
  %v4991 = vpack.c.b16 %v4901, %v4899
  %v4992 = vpack.c.b16 %v4904, %v4902
  %v4993 = vpack.c.b16 %v4905, %v4903
  %v4994 = vpack.c.b16 %v4908, %v4906
  %v4995 = vpack.c.b16 %v4909, %v4907
  %v4996 = vpack.c.b16 %v4912, %v4910
  %v4997 = vpack.c.b16 %v4913, %v4911
  %v4998 = vpack.c.b16 %v4916, %v4914
  %v4999 = vpack.c.b16 %v4917, %v4915
  %v5000 = vpack.c.b16 %v4920, %v4918
  %v5001 = vpack.c.b16 %v4921, %v4919
  %v5002 = vpack.c.b16 %v4924, %v4922
  %v5003 = vpack.c.b16 %v4925, %v4923
  %v5004 = vpack.c.b16 %v4928, %v4926
  %v5005 = vpack.c.b16 %v4929, %v4927
  %v5006 = vpack.c.b16 %v4932, %v4930
  %v5007 = vpack.c.b16 %v4933, %v4931
  %v5008 = vpack.c.b16 %v4936, %v4934
  %v5009 = vpack.c.b16 %v4937, %v4935
  %v5010 = vpack.c.b16 %v4940, %v4938
  %v5011 = vpack.c.b16 %v4941, %v4939
  %v5012 = vpack.c.b16 %v4944, %v4942
  %v5013 = vpack.c.b16 %v4945, %v4943
  %v5014 = vpack.c.b16 %v4948, %v4946
  %v5015 = vpack.c.b16 %v4949, %v4947
  %v5016 = vpack.c.b16 %v4952, %v4950
  %v5017 = vpack.c.b16 %v4953, %v4951
  %5082 = vmatprep.subr.bf16.mxu0 %v4969
  %5083 = vmatpush1.bf16.msra.mxu0 %v4968
  %5084 = vmatprep.subr.bf16.mxu0 %v4967
  %5085 = vmatpush1.bf16.msra.mxu0 %v4966
  %5086 = vmatprep.subr.bf16.mxu0 %v4965
  %5087 = vmatpush1.bf16.msra.mxu0 %v4964
  %5088 = vmatprep.subr.bf16.mxu0 %v4963
  %5089 = vmatpush1.bf16.msra.mxu0 %v4962
  %5090 = vmatprep.subr.bf16.mxu0 %v4961
  %5091 = vmatpush1.bf16.msra.mxu0 %v4960
  %5092 = vmatprep.subr.bf16.mxu0 %v4959
  %5093 = vmatpush1.bf16.msra.mxu0 %v4958
  %5094 = vmatprep.subr.bf16.mxu0 %v4957
  %5095 = vmatpush1.bf16.msra.mxu0 %v4956
  %5096 = vmatprep.subr.bf16.mxu0 %v4955
  %5097 = vmatpush1.bf16.msra.mxu0 %v4954
  %5098 = vmatprep.subr.bf16.mxu0 %v4985
  %5099 = vmatpush2.bf16.msra.mxu0 %v4984
  %5100 = vmatprep.subr.bf16.mxu0 %v4983
  %5101 = vmatpush2.bf16.msra.mxu0 %v4982
  %5102 = vmatprep.subr.bf16.mxu0 %v4981
  %5103 = vmatpush2.bf16.msra.mxu0 %v4980
  %5104 = vmatprep.subr.bf16.mxu0 %v4979
  %5105 = vmatpush2.bf16.msra.mxu0 %v4978
  %5106 = vmatprep.subr.bf16.mxu0 %v4977
  %5107 = vmatpush2.bf16.msra.mxu0 %v4976
  %5108 = vmatprep.subr.bf16.mxu0 %v4975
  %5109 = vmatpush2.bf16.msra.mxu0 %v4974
  %5110 = vmatprep.subr.bf16.mxu0 %v4973
  %5111 = vmatpush2.bf16.msra.mxu0 %v4972
  %5112 = vmatprep.subr.bf16.mxu0 %v4971
  %5113 = vmatpush2.bf16.msra.mxu0 %v4970
  %5114 = vmatprep.mubr.bf16.mxu0 %v4683
  %5115 = vmatmul.mubr.bf16.gmra.mxu0 %v4682
  %v5116 = vpop.f32.mrf.mxu0
  %v5117 = vadd.f32 %v4755, %v5116
  %v5118 = vpop.f32.mrf.mxu0
  %v5119 = vadd.f32 %v4759, %v5118
  %v5120 = vpop.f32.mrf.mxu0
  %v5121 = vadd.f32 %v4755, %v5120
  %v5122 = vpop.f32.mrf.mxu0
  %v5123 = vadd.f32 %v4759, %v5122
  %5124 = vdwg.mxu0
  %5125 = vmatprep.subr.bf16.mxu0 %v5001
  %5126 = vmatpush1.bf16.msra.mxu0 %v5000
  %5127 = vmatprep.subr.bf16.mxu0 %v4999
  %5128 = vmatpush1.bf16.msra.mxu0 %v4998
  %5129 = vmatprep.subr.bf16.mxu0 %v4997
  %5130 = vmatpush1.bf16.msra.mxu0 %v4996
  %5131 = vmatprep.subr.bf16.mxu0 %v4995
  %5132 = vmatpush1.bf16.msra.mxu0 %v4994
  %5133 = vmatprep.subr.bf16.mxu0 %v4993
  %5134 = vmatpush1.bf16.msra.mxu0 %v4992
  %5135 = vmatprep.subr.bf16.mxu0 %v4991
  %5136 = vmatpush1.bf16.msra.mxu0 %v4990
  %5137 = vmatprep.subr.bf16.mxu0 %v4989
  %5138 = vmatpush1.bf16.msra.mxu0 %v4988
  %5139 = vmatprep.subr.bf16.mxu0 %v4987
  %5140 = vmatpush1.bf16.msra.mxu0 %v4986
  %5141 = vmatprep.subr.bf16.mxu0 %v5017
  %5142 = vmatpush2.bf16.msra.mxu0 %v5016
  %5143 = vmatprep.subr.bf16.mxu0 %v5015
  %5144 = vmatpush2.bf16.msra.mxu0 %v5014
  %5145 = vmatprep.subr.bf16.mxu0 %v5013
  %5146 = vmatpush2.bf16.msra.mxu0 %v5012
  %5147 = vmatprep.subr.bf16.mxu0 %v5011
  %5148 = vmatpush2.bf16.msra.mxu0 %v5010
  %5149 = vmatprep.subr.bf16.mxu0 %v5009
  %5150 = vmatpush2.bf16.msra.mxu0 %v5008
  %5151 = vmatprep.subr.bf16.mxu0 %v5007
  %5152 = vmatpush2.bf16.msra.mxu0 %v5006
  %5153 = vmatprep.subr.bf16.mxu0 %v5005
  %5154 = vmatpush2.bf16.msra.mxu0 %v5004
  %5155 = vmatprep.subr.bf16.mxu0 %v5003
  %5156 = vmatpush2.bf16.msra.mxu0 %v5002
  %5157 = vmatprep.mubr.bf16.mxu0 %v4685
  %5158 = vmatmul.mubr.bf16.gmra.mxu0 %v4684
  %v5159 = vpop.f32.mrf.mxu0
  %v5160 = vadd.f32 %v5117, %v5159
  %v5161 = vpop.f32.mrf.mxu0
  %v5162 = vadd.f32 %v5119, %v5161
  %v5163 = vpop.f32.mrf.mxu0
  %v5164 = vadd.f32 %v5121, %v5163
  %v5165 = vpop.f32.mrf.mxu0
  %v5166 = vadd.f32 %v5123, %v5165
  %5167 = vdwg.mxu0
  %v5168 = vmax.f32 %v5160, 0.0
  %v5169 = vmax.f32 %v5162, 0.0
  %v5170 = vmax.f32 %v5164, 0.0
  %v5171 = vmax.f32 %v5166, 0.0
  %v5172 = vpack.c.bf16 %v5170, %v5168
  %v5173 = vpack.c.bf16 %v5171, %v5169
  %v5174 = vld [vmem:[%s7] sm:$0xf]
  %v5175 = vld [vmem:[%s7 + $0x4] sm:$0xf]
  %v5176 = vld [vmem:[%s7 + $0x8] sm:$0xf]
  %v5177 = vld [vmem:[%s7 + $0xc] sm:$0xf]
  %v5178 = vld [vmem:[%s7 + $0x10] sm:$0xf]
  %v5179 = vld [vmem:[%s7 + $0x14] sm:$0xf]
  %v5180 = vld [vmem:[%s7 + $0x18] sm:$0xf]
  %v5181 = vld [vmem:[%s7 + $0x1c] sm:$0xf]
  %v5182 = vld [vmem:[%s7 + $0x20] sm:$0xf]
  %v5183 = vld [vmem:[%s7 + $0x24] sm:$0xf]
  %v5184 = vld [vmem:[%s7 + $0x28] sm:$0xf]
  %v5185 = vld [vmem:[%s7 + $0x2c] sm:$0xf]
  %v5186 = vld [vmem:[%s7 + $0x30] sm:$0xf]
  %v5187 = vld [vmem:[%s7 + $0x34] sm:$0xf]
  %v5188 = vld [vmem:[%s7 + $0x38] sm:$0xf]
  %v5189 = vld [vmem:[%s7 + $0x3c] sm:$0xf]
  %v5190 = vld [vmem:[%s7 + $0x40] sm:$0xf]
  %v5191 = vld [vmem:[%s7 + $0x44] sm:$0xf]
  %v5192 = vld [vmem:[%s7 + $0x48] sm:$0xf]
  %v5193 = vld [vmem:[%s7 + $0x4c] sm:$0xf]
  %v5194 = vld [vmem:[%s7 + $0x50] sm:$0xf]
  %v5195 = vld [vmem:[%s7 + $0x54] sm:$0xf]
  %v5196 = vld [vmem:[%s7 + $0x58] sm:$0xf]
  %v5197 = vld [vmem:[%s7 + $0x5c] sm:$0xf]
  %v5198 = vld [vmem:[%s7 + $0x60] sm:$0xf]
  %v5199 = vld [vmem:[%s7 + $0x64] sm:$0xf]
  %v5200 = vld [vmem:[%s7 + $0x68] sm:$0xf]
  %v5201 = vld [vmem:[%s7 + $0x6c] sm:$0xf]
  %v5202 = vld [vmem:[%s7 + $0x70] sm:$0xf]
  %v5203 = vld [vmem:[%s7 + $0x74] sm:$0xf]
  %v5204 = vld [vmem:[%s7 + $0x78] sm:$0xf]
  %v5205 = vld [vmem:[%s7 + $0x7c] sm:$0xf]
  %v5206 = vld [vmem:[%s11 + $0x15] sm:$0x1]
  %v5208 = vlaneseq
  %v5209 = vshrl.u32 %v5208, 7
  %v5210 = vsub.s32 0, %v5209
  %v5211 = vrot.slane %v5206, %v5210
  %v5245 = vunpack.c.l.b16 %v5174
  %v5246 = vunpack.c.l.b16 %v5175
  %v5247 = vunpack.c.l.b16 %v5176
  %v5248 = vunpack.c.l.b16 %v5177
  %v5249 = vunpack.c.l.b16 %v5178
  %v5250 = vunpack.c.l.b16 %v5179
  %v5251 = vunpack.c.l.b16 %v5180
  %v5252 = vunpack.c.l.b16 %v5181
  %v5253 = vunpack.c.l.b16 %v5182
  %v5254 = vunpack.c.l.b16 %v5183
  %v5255 = vunpack.c.l.b16 %v5184
  %v5256 = vunpack.c.l.b16 %v5185
  %v5257 = vunpack.c.l.b16 %v5186
  %v5258 = vunpack.c.l.b16 %v5187
  %v5259 = vunpack.c.l.b16 %v5188
  %v5260 = vunpack.c.l.b16 %v5189
  %v5261 = vunpack.c.l.b16 %v5190
  %v5262 = vunpack.c.l.b16 %v5191
  %v5263 = vunpack.c.l.b16 %v5192
  %v5264 = vunpack.c.l.b16 %v5193
  %v5265 = vunpack.c.l.b16 %v5194
  %v5266 = vunpack.c.l.b16 %v5195
  %v5267 = vunpack.c.l.b16 %v5196
  %v5268 = vunpack.c.l.b16 %v5197
  %v5269 = vunpack.c.l.b16 %v5198
  %v5270 = vunpack.c.l.b16 %v5199
  %v5271 = vunpack.c.l.b16 %v5200
  %v5272 = vunpack.c.l.b16 %v5201
  %v5273 = vunpack.c.l.b16 %v5202
  %v5274 = vunpack.c.l.b16 %v5203
  %v5275 = vunpack.c.l.b16 %v5204
  %v5276 = vunpack.c.l.b16 %v5205
  %v5277 = vpack.c.b16 %v5246, %v5245
  %v5278 = vpack.c.b16 %v5248, %v5247
  %v5279 = vpack.c.b16 %v5250, %v5249
  %v5280 = vpack.c.b16 %v5252, %v5251
  %v5281 = vpack.c.b16 %v5254, %v5253
  %v5282 = vpack.c.b16 %v5256, %v5255
  %v5283 = vpack.c.b16 %v5258, %v5257
  %v5284 = vpack.c.b16 %v5260, %v5259
  %v5285 = vpack.c.b16 %v5262, %v5261
  %v5286 = vpack.c.b16 %v5264, %v5263
  %v5287 = vpack.c.b16 %v5266, %v5265
  %v5288 = vpack.c.b16 %v5268, %v5267
  %v5289 = vpack.c.b16 %v5270, %v5269
  %v5290 = vpack.c.b16 %v5272, %v5271
  %v5291 = vpack.c.b16 %v5274, %v5273
  %v5292 = vpack.c.b16 %v5276, %v5275
  %5309 = vmatprep.subr.bf16.mxu0 0
  %5310 = vmatpush1.bf16.msra.mxu0 %v5284
  %5311 = vmatprep.subr.bf16.mxu0 0
  %5312 = vmatpush1.bf16.msra.mxu0 %v5283
  %5313 = vmatprep.subr.bf16.mxu0 0
  %5314 = vmatpush1.bf16.msra.mxu0 %v5282
  %5315 = vmatprep.subr.bf16.mxu0 0
  %5316 = vmatpush1.bf16.msra.mxu0 %v5281
  %5317 = vmatprep.subr.bf16.mxu0 0
  %5318 = vmatpush1.bf16.msra.mxu0 %v5280
  %5319 = vmatprep.subr.bf16.mxu0 0
  %5320 = vmatpush1.bf16.msra.mxu0 %v5279
  %5321 = vmatprep.subr.bf16.mxu0 0
  %5322 = vmatpush1.bf16.msra.mxu0 %v5278
  %5323 = vmatprep.subr.bf16.mxu0 0
  %5324 = vmatpush1.bf16.msra.mxu0 %v5277
  %5325 = vmatprep.subr.bf16.mxu0 0
  %5326 = vmatpush2.bf16.msra.mxu0 %v5292
  %5327 = vmatprep.subr.bf16.mxu0 0
  %5328 = vmatpush2.bf16.msra.mxu0 %v5291
  %5329 = vmatprep.subr.bf16.mxu0 0
  %5330 = vmatpush2.bf16.msra.mxu0 %v5290
  %5331 = vmatprep.subr.bf16.mxu0 0
  %5332 = vmatpush2.bf16.msra.mxu0 %v5289
  %5333 = vmatprep.subr.bf16.mxu0 0
  %5334 = vmatpush2.bf16.msra.mxu0 %v5288
  %5335 = vmatprep.subr.bf16.mxu0 0
  %5336 = vmatpush2.bf16.msra.mxu0 %v5287
  %5337 = vmatprep.subr.bf16.mxu0 0
  %5338 = vmatpush2.bf16.msra.mxu0 %v5286
  %5339 = vmatprep.subr.bf16.mxu0 0
  %5340 = vmatpush2.bf16.msra.mxu0 %v5285
  %5341 = vmatprep.mubr.bf16.mxu0 %v5173
  %5342 = vmatmul.mubr.bf16.gmra.mxu0 %v5172
  %v5343 = vpop.f32.mrf.mxu0
  %v5344 = vadd.f32 %v5211, %v5343
  %v5345 = vpop.f32.mrf.mxu0
  %v5346 = vpop.f32.mrf.mxu0
  %v5347 = vadd.f32 %v5211, %v5346
  %v5348 = vpop.f32.mrf.mxu0
  %5349 = vdwg.mxu0
  %v5350 = vmax.f32 %v5344, 0.0
  %v5351 = vmax.f32 %v5347, 0.0
  %v5352 = vpack.c.bf16 %v5351, %v5350
  %v5353 = vld [vmem:[%s8] sm:$0xf]
  %v5354 = vld [vmem:[%s8 + $0x4] sm:$0xf]
  %v5355 = vld [vmem:[%s8 + $0x8] sm:$0xf]
  %v5356 = vld [vmem:[%s8 + $0xc] sm:$0xf]
  %v5357 = vld [vmem:[%s8 + $0x10] sm:$0xf]
  %v5358 = vld [vmem:[%s8 + $0x14] sm:$0xf]
  %v5359 = vld [vmem:[%s8 + $0x18] sm:$0xf]
  %v5360 = vld [vmem:[%s8 + $0x1c] sm:$0xf]
  %v5361 = vld [vmem:[%s8 + $0x20] sm:$0xf]
  %v5362 = vld [vmem:[%s8 + $0x24] sm:$0xf]
  %v5363 = vld [vmem:[%s8 + $0x28] sm:$0xf]
  %v5364 = vld [vmem:[%s8 + $0x2c] sm:$0xf]
  %v5365 = vld [vmem:[%s8 + $0x30] sm:$0xf]
  %v5366 = vld [vmem:[%s8 + $0x34] sm:$0xf]
  %v5367 = vld [vmem:[%s8 + $0x38] sm:$0xf]
  %v5368 = vld [vmem:[%s8 + $0x3c] sm:$0xf]
  %v5369 = vld [vmem:[%s11 + $0x16] sm:$0x1]
  %v5371 = vlaneseq
  %v5372 = vshrl.u32 %v5371, 7
  %v5373 = vsub.s32 0, %v5372
  %v5374 = vrot.slane %v5369, %v5373
  %v5392 = vunpack.c.l.b16 %v5353
  %v5393 = vunpack.c.l.b16 %v5354
  %v5394 = vunpack.c.l.b16 %v5355
  %v5395 = vunpack.c.l.b16 %v5356
  %v5396 = vunpack.c.l.b16 %v5357
  %v5397 = vunpack.c.l.b16 %v5358
  %v5398 = vunpack.c.l.b16 %v5359
  %v5399 = vunpack.c.l.b16 %v5360
  %v5400 = vunpack.c.l.b16 %v5361
  %v5401 = vunpack.c.l.b16 %v5362
  %v5402 = vunpack.c.l.b16 %v5363
  %v5403 = vunpack.c.l.b16 %v5364
  %v5404 = vunpack.c.l.b16 %v5365
  %v5405 = vunpack.c.l.b16 %v5366
  %v5406 = vunpack.c.l.b16 %v5367
  %v5407 = vunpack.c.l.b16 %v5368
  %v5408 = vpack.c.b16 %v5393, %v5392
  %v5409 = vpack.c.b16 %v5395, %v5394
  %v5410 = vpack.c.b16 %v5397, %v5396
  %v5411 = vpack.c.b16 %v5399, %v5398
  %v5412 = vpack.c.b16 %v5401, %v5400
  %v5413 = vpack.c.b16 %v5403, %v5402
  %v5414 = vpack.c.b16 %v5405, %v5404
  %v5415 = vpack.c.b16 %v5407, %v5406
  %5424 = vmatprep.subr.bf16.mxu0 0
  %5425 = vmatpush1.bf16.msra.mxu0 %v5415
  %5426 = vmatprep.subr.bf16.mxu0 0
  %5427 = vmatpush1.bf16.msra.mxu0 %v5414
  %5428 = vmatprep.subr.bf16.mxu0 0
  %5429 = vmatpush1.bf16.msra.mxu0 %v5413
  %5430 = vmatprep.subr.bf16.mxu0 0
  %5431 = vmatpush1.bf16.msra.mxu0 %v5412
  %5432 = vmatprep.subr.bf16.mxu0 0
  %5433 = vmatpush1.bf16.msra.mxu0 %v5411
  %5434 = vmatprep.subr.bf16.mxu0 0
  %5435 = vmatpush1.bf16.msra.mxu0 %v5410
  %5436 = vmatprep.subr.bf16.mxu0 0
  %5437 = vmatpush1.bf16.msra.mxu0 %v5409
  %5438 = vmatprep.subr.bf16.mxu0 0
  %5439 = vmatpush1.bf16.msra.mxu0 %v5408
  %5440 = vmatprep.subr.bf16.mxu0 0
  %5441 = vmatpush2.bf16.msra.mxu0 0
  %5442 = vmatprep.subr.bf16.mxu0 0
  %5443 = vmatpush2.bf16.msra.mxu0 0
  %5444 = vmatprep.subr.bf16.mxu0 0
  %5445 = vmatpush2.bf16.msra.mxu0 0
  %5446 = vmatprep.subr.bf16.mxu0 0
  %5447 = vmatpush2.bf16.msra.mxu0 0
  %5448 = vmatprep.subr.bf16.mxu0 0
  %5449 = vmatpush2.bf16.msra.mxu0 0
  %5450 = vmatprep.subr.bf16.mxu0 0
  %5451 = vmatpush2.bf16.msra.mxu0 0
  %5452 = vmatprep.subr.bf16.mxu0 0
  %5453 = vmatpush2.bf16.msra.mxu0 0
  %5454 = vmatprep.subr.bf16.mxu0 0
  %5455 = vmatpush2.bf16.msra.mxu0 0
  %5456 = vmatprep.mubr.bf16.mxu0 0
  %5457 = vmatmul.mubr.bf16.gmra.mxu0 %v5352
  %v5458 = vpop.f32.mrf.mxu0
  %v5459 = vadd.f32 %v5374, %v5458
  %v5460 = vpop.f32.mrf.mxu0
  %v5461 = vpop.f32.mrf.mxu0
  %v5462 = vadd.f32 %v5374, %v5461
  %v5463 = vpop.f32.mrf.mxu0
  %5464 = vdwg.mxu0
  %v5465 = vmax.f32 %v5459, 0.0
  %v5466 = vmax.f32 %v5462, 0.0
  %v5467 = vpack.c.bf16 %v5466, %v5465
  %v5468 = vld [vmem:[%s9] sm:$0xf]
  %v5469 = vld [vmem:[%s9 + $0x4] sm:$0xf]
  %v5470 = vld [vmem:[%s9 + $0x8] sm:$0xf]
  %v5471 = vld [vmem:[%s9 + $0xc] sm:$0xf]
  %v5472 = vld [vmem:[%s9 + $0x10] sm:$0xf]
  %v5473 = vld [vmem:[%s9 + $0x14] sm:$0xf]
  %v5474 = vld [vmem:[%s9 + $0x18] sm:$0xf]
  %v5475 = vld [vmem:[%s9 + $0x1c] sm:$0xf]
  %v5476 = vld [vmem:[%s11 + $0x17] sm:$0x1]
  %v5478 = vlaneseq
  %v5479 = vshrl.u32 %v5478, 7
  %v5480 = vsub.s32 0, %v5479
  %v5481 = vrot.slane %v5476, %v5480
  %v5491 = vunpack.c.l.b16 %v5468
  %v5492 = vunpack.c.l.b16 %v5469
  %v5493 = vunpack.c.l.b16 %v5470
  %v5494 = vunpack.c.l.b16 %v5471
  %v5495 = vunpack.c.l.b16 %v5472
  %v5496 = vunpack.c.l.b16 %v5473
  %v5497 = vunpack.c.l.b16 %v5474
  %v5498 = vunpack.c.l.b16 %v5475
  %v5499 = vpack.c.b16 %v5492, %v5491
  %v5500 = vpack.c.b16 %v5494, %v5493
  %v5501 = vpack.c.b16 %v5496, %v5495
  %v5502 = vpack.c.b16 %v5498, %v5497
  %vm5507 = vcmask 523264
  %v5509 = vsel %vm5507, %v5467, 0
  %5511 = vmatprep.subr.bf16.mxu0 0
  %5512 = vmatpush1.bf16.msra.mxu0 0
  %5513 = vmatprep.subr.bf16.mxu0 0
  %5514 = vmatpush1.bf16.msra.mxu0 0
  %5515 = vmatprep.subr.bf16.mxu0 0
  %5516 = vmatpush1.bf16.msra.mxu0 0
  %5517 = vmatprep.subr.bf16.mxu0 0
  %5518 = vmatpush1.bf16.msra.mxu0 0
  %5519 = vmatprep.subr.bf16.mxu0 0
  %5520 = vmatpush1.bf16.msra.mxu0 %v5502
  %5521 = vmatprep.subr.bf16.mxu0 0
  %5522 = vmatpush1.bf16.msra.mxu0 %v5501
  %5523 = vmatprep.subr.bf16.mxu0 0
  %5524 = vmatpush1.bf16.msra.mxu0 %v5500
  %5525 = vmatprep.subr.bf16.mxu0 0
  %5526 = vmatpush1.bf16.msra.mxu0 %v5499
  %5527 = vmatprep.subr.bf16.mxu0 0
  %5528 = vmatpush2.bf16.msra.mxu0 0
  %5529 = vmatprep.subr.bf16.mxu0 0
  %5530 = vmatpush2.bf16.msra.mxu0 0
  %5531 = vmatprep.subr.bf16.mxu0 0
  %5532 = vmatpush2.bf16.msra.mxu0 0
  %5533 = vmatprep.subr.bf16.mxu0 0
  %5534 = vmatpush2.bf16.msra.mxu0 0
  %5535 = vmatprep.subr.bf16.mxu0 0
  %5536 = vmatpush2.bf16.msra.mxu0 0
  %5537 = vmatprep.subr.bf16.mxu0 0
  %5538 = vmatpush2.bf16.msra.mxu0 0
  %5539 = vmatprep.subr.bf16.mxu0 0
  %5540 = vmatpush2.bf16.msra.mxu0 0
  %5541 = vmatprep.subr.bf16.mxu0 0
  %5542 = vmatpush2.bf16.msra.mxu0 0
  %5543 = vmatprep.mubr.bf16.mxu0 0
  %5544 = vmatmul.mubr.bf16.gmra.mxu0 %v5509
  %v5545 = vpop.f32.mrf.mxu0
  %v5546 = vadd.f32 %v5481, %v5545
  %v5547 = vpop.f32.mrf.mxu0
  %v5548 = vpop.f32.mrf.mxu0
  %v5549 = vadd.f32 %v5481, %v5548
  %v5550 = vpop.f32.mrf.mxu0
  %5551 = vdwg.mxu0
  %v5552 = vmax.f32 %v5546, 0.0
  %v5553 = vmax.f32 %v5549, 0.0
  %v5554 = vpack.c.bf16 %v5553, %v5552
  %v5555 = vld [vmem:[%s10] sm:$0xf]
  %v5556 = vld [vmem:[%s10 + $0x4] sm:$0xf]
  %v5557 = vld [vmem:[%s10 + $0x8] sm:$0xf]
  %v5558 = vld [vmem:[%s10 + $0xc] sm:$0xf]
  %v5559 = vld [vmem:[%s11 + $0x18] sm:$0x1]
  %v5561 = vlaneseq
  %v5562 = vshrl.u32 %v5561, 7
  %v5563 = vsub.s32 0, %v5562
  %v5564 = vrot.slane %v5559, %v5563
  %v5570 = vunpack.c.l.b16 %v5555
  %v5571 = vunpack.c.l.b16 %v5556
  %v5572 = vunpack.c.l.b16 %v5557
  %v5573 = vunpack.c.l.b16 %v5558
  %v5574 = vpack.c.b16 %v5571, %v5570
  %v5575 = vpack.c.b16 %v5573, %v5572
  %vm5578 = vcmask 261120
  %v5580 = vsel %vm5578, %v5554, 0
  %5582 = vmatprep.subr.bf16.mxu0 0
  %5583 = vmatpush1.bf16.msra.mxu0 0
  %5584 = vmatprep.subr.bf16.mxu0 0
  %5585 = vmatpush1.bf16.msra.mxu0 0
  %5586 = vmatprep.subr.bf16.mxu0 0
  %5587 = vmatpush1.bf16.msra.mxu0 0
  %5588 = vmatprep.subr.bf16.mxu0 0
  %5589 = vmatpush1.bf16.msra.mxu0 0
  %5590 = vmatprep.subr.bf16.mxu0 0
  %5591 = vmatpush1.bf16.msra.mxu0 0
  %5592 = vmatprep.subr.bf16.mxu0 0
  %5593 = vmatpush1.bf16.msra.mxu0 0
  %5594 = vmatprep.subr.bf16.mxu0 0
  %5595 = vmatpush1.bf16.msra.mxu0 %v5575
  %5596 = vmatprep.subr.bf16.mxu0 0
  %5597 = vmatpush1.bf16.msra.mxu0 %v5574
  %5598 = vmatprep.subr.bf16.mxu0 0
  %5599 = vmatpush2.bf16.msra.mxu0 0
  %5600 = vmatprep.subr.bf16.mxu0 0
  %5601 = vmatpush2.bf16.msra.mxu0 0
  %5602 = vmatprep.subr.bf16.mxu0 0
  %5603 = vmatpush2.bf16.msra.mxu0 0
  %5604 = vmatprep.subr.bf16.mxu0 0
  %5605 = vmatpush2.bf16.msra.mxu0 0
  %5606 = vmatprep.subr.bf16.mxu0 0
  %5607 = vmatpush2.bf16.msra.mxu0 0
  %5608 = vmatprep.subr.bf16.mxu0 0
  %5609 = vmatpush2.bf16.msra.mxu0 0
  %5610 = vmatprep.subr.bf16.mxu0 0
  %5611 = vmatpush2.bf16.msra.mxu0 0
  %5612 = vmatprep.subr.bf16.mxu0 0
  %5613 = vmatpush2.bf16.msra.mxu0 0
  %5614 = vmatprep.mubr.bf16.mxu0 0
  %5615 = vmatmul.mubr.bf16.gmra.mxu0 %v5580
  %v5616 = vpop.f32.mrf.mxu0
  %v5617 = vadd.f32 %v5564, %v5616
  %v5618 = vpop.f32.mrf.mxu0
  %v5619 = vpop.f32.mrf.mxu0
  %v5620 = vadd.f32 %v5564, %v5619
  %v5621 = vpop.f32.mrf.mxu0
  %5622 = vdwg.mxu0
  %vm5623 = vcmask 15360
  %5624 = vst.msk [vmem:[%s12] sm:$0xff] %vm5623, %v5617
  %5625 = vst.msk [vmem:[%s12 + $0x8] sm:$0xff] %vm5623, %v5620
  // Predicated region
  $region50: #{mynet_forward.1} parent=0 // pred_check
    _
  $region51: #{mynet_forward.1} parent=0 // pred_check_branch
    %5627 = sbr.rel (0) target = $region53
  $region52: #{mynet_forward.1} parent=0 // pred_region
    _
  $region53: #{mynet_forward.1} parent=0 // pred_fallthru
    _
  // Predicated region
  $region54: #{mynet_forward.1} parent=0 // pred_check
    _
  $region55: #{mynet_forward.1} parent=0 // pred_check_branch
    %5629 = sbr.rel (0) target = $region57
  $region56: #{mynet_forward.1} parent=0 // pred_region
    _
  $region57: #{mynet_forward.1} parent=0 // pred_fallthru
    _

</llo_original>
